<compile_context>
chip_gen: v6e
topology: v6e:2x2x1
jax: 0.10.0
libtpu: 0.0.40
codegen_flags: <defaults>
</compile_context>

<pallas_src>
import functools

import jax
import jax.numpy as jnp
import numpy as np
from jax.experimental import pallas as pl
from jax.experimental.pallas import tpu as pltpu


# ----------------------------------------------------------------------------
# Kernel: one batch element per grid step.
#   xt_ref : (1, node, T*dim_in)            node-major features, cols = (t, c)
#   sup_ref: (S, node, node)                stacked graph supports (constant)
#   w_ref  : (n_hops, kt*dim_in, 2*dim_out) per-hop GConv weight slabs
#   b_ref  : (1, 2*dim_out)                 GConv bias
#   o_ref  : (1, node, Tp*dim_out)          lane-dense output, cols = (t', o)
#   acc_ref: (node, Tp*2*dim_out)           persistent f32 accumulator scratch
# ----------------------------------------------------------------------------
def gonv_st_kernel(xt_ref, sup_ref, w_ref, b_ref, o_ref, acc_ref, *,
                   kt, dim_in, dim_out, order, t_prime, matmul_dtype):
    ko = 2 * dim_out

    def mm(a, bm):
        # MXU matmul; optionally feed bf16 operands (v6e/v7x), accumulate f32.
        if matmul_dtype is not None:
            a = a.astype(matmul_dtype)
            bm = bm.astype(matmul_dtype)
        return jnp.dot(a, bm, preferred_element_type=jnp.float32)

    xt = xt_ref[0]                                       # (node, T*dim_in)

    def accumulate(p, hop, init):
        # Window t' of hop-feature p is the contiguous column slice
        # [t'*dim_in : (t'+kt)*dim_in]  (cols are (time, channel)).
        wh = w_ref[hop]                                  # (kt*dim_in, 2*dim_out)
        for t in range(t_prime):                         # static unroll (small)
            contrib = mm(p[:, t * dim_in:(t + kt) * dim_in], wh)
            if init:
                acc_ref[:, t * ko:(t + 1) * ko] = contrib
            else:
                acc_ref[:, t * ko:(t + 1) * ko] += contrib

    # hop 0: identity features
    accumulate(xt, 0, init=True)

    # hops 1..S*order: folded propagation, one wide matmul per hop
    hop = 1
    n_sup = sup_ref.shape[0]
    for s in range(n_sup):                               # static unroll: S small
        a = sup_ref[s]                                   # (node, node)
        p = xt
        for _ in range(order):                           # static unroll
            p = mm(a, p)                                 # (node, T*dim_in)
            accumulate(p, hop, init=False)
            hop += 1

    # Epilogue: residual + bias + GLU, all f32, written into the lane-dense
    # (node, Tp*dim_out) output block in one pass over windows.
    bv = b_ref[:, :dim_out]                              # (1, dim_out)
    bg = b_ref[:, dim_out:]                              # (1, dim_out)
    for t in range(t_prime):
        # residual = x at time t+kt-1, zero-padded to dim_out (only the first
        # dim_in channels carry data); (gemm + res) + bias == (gemm+bias)+res.
        acc_ref[:, t * ko:t * ko + dim_in] += \
            xt[:, (t + kt - 1) * dim_in:(t + kt) * dim_in]
        val = acc_ref[:, t * ko:t * ko + dim_out] + bv
        gate = acc_ref[:, t * ko + dim_out:(t + 1) * ko] + bg
        o_ref[0, :, t * dim_out:(t + 1) * dim_out] = (
            val * jax.nn.sigmoid(gate)).astype(o_ref.dtype)


# ----------------------------------------------------------------------------
# Wrapper: layout plumbing only (one transpose of x, weight reshape); no
# materialized sliding windows and no materialized residual tensor.
# ----------------------------------------------------------------------------
def gonv_st(x, supports, w, b, *, kt, dim_out, order, matmul_dtype=None):
    B, T, node, dim_in = x.shape
    Tp = T - kt + 1
    S = supports.shape[0]
    n_hops = S * order + 1
    f_in = kt * dim_in
    f_cat = n_hops * f_in
    assert w.shape == (f_cat, 2 * dim_out)
    if dim_in > dim_out:
        raise ValueError("dim_in > dim_out not supported by the module")

    # node-major slab per batch: cols ordered (time, channel)
    xt = x.transpose(0, 2, 1, 3).reshape(B, node, T * dim_in)
    # W rows are ordered (hop, time-in-window, channel) -> per-hop slabs
    w_hops = w.reshape(n_hops, f_in, 2 * dim_out)
    b2 = b.reshape(1, 2 * dim_out)

    kernel = functools.partial(
        gonv_st_kernel, kt=kt, dim_in=dim_in, dim_out=dim_out, order=order,
        t_prime=Tp, matmul_dtype=matmul_dtype)

    # NOTE(v7x, 64 MiB VMEM): supports/w have constant index maps, so the
    # pipeline does not re-fetch them, but they are still double-buffered.
    # At very large node counts, move supports to memory_space=pl.ANY and DMA
    # them once into a VMEM scratch, and raise vmem_limit_bytes with headroom.
    out_flat = pl.pallas_call(
        kernel,
        out_shape=jax.ShapeDtypeStruct((B, node, Tp * dim_out), x.dtype),
        grid=(B,),
        in_specs=[
            pl.BlockSpec((1, node, T * dim_in), lambda bi: (bi, 0, 0)),
            pl.BlockSpec((S, node, node), lambda bi: (0, 0, 0)),
            pl.BlockSpec((n_hops, f_in, 2 * dim_out), lambda bi: (0, 0, 0)),
            pl.BlockSpec((1, 2 * dim_out), lambda bi: (0, 0)),
        ],
        out_specs=pl.BlockSpec((1, node, Tp * dim_out), lambda bi: (bi, 0, 0)),
        scratch_shapes=[pltpu.VMEM((node, Tp * 2 * dim_out), jnp.float32)],
        compiler_params=pltpu.CompilerParams(
            dimension_semantics=("parallel",)),
    )(xt, supports, w_hops, b2)

    # (B, node, Tp, dim_out) -> (B, Tp, node, dim_out)
    return out_flat.reshape(B, node, Tp, dim_out).transpose(0, 2, 1, 3)


# ----------------------------------------------------------------------------
# Pure-JAX reference (mirrors the PyTorch forward) for verification.
# ----------------------------------------------------------------------------
def gonv_st_ref(x, supports, w, b, *, kt, dim_out, order):
    B, T, node, dim_in = x.shape
    Tp = T - kt + 1
    if dim_in == dim_out:
        res = x
    else:
        pad = jnp.zeros((B, T, node, dim_out - dim_in), x.dtype)
        res = jnp.concatenate([x, pad], axis=3)
    res = res[:, kt - 1:, :, :]
    xw = jnp.stack([x[:, i:i + kt] for i in range(Tp)], axis=1)
    xw = xw.reshape(B * Tp, kt, node, dim_in)
    xw = xw.transpose(0, 2, 1, 3).reshape(B * Tp, node, kt * dim_in)

    feats = [xw]
    for s in range(supports.shape[0]):
        a = supports[s]
        xk = xw
        for _ in range(order):
            xk = jnp.einsum("nm,bmf->bnf", a, xk)
            feats.append(xk)
    h = jnp.concatenate(feats, axis=-1)
    o = jnp.einsum("bnf,fd->bnd", h, w) + b
    o = o.reshape(B, Tp, node, 2 * dim_out)
    return (o[..., :dim_out] + res) * jax.nn.sigmoid(o[..., dim_out:])


if __name__ == "__main__":
    # Small shapes consistent with the module's forward.
    B, T, node = 2, 8, 16
    dim_in, dim_out = 4, 4          # dim_in == dim_out -> identity residual
    kt, order, n_supports = 3, 2, 2

    key = jax.random.PRNGKey(0)
    k_x, k_a, k_w, k_b = jax.random.split(key, 4)

    x = jax.random.normal(k_x, (B, T, node, dim_in), dtype=jnp.float32)

    # Deterministic, row-normalized random supports (S, node, node).
    a = jax.random.uniform(k_a, (n_supports, node, node), dtype=jnp.float32)
    supports = a / jnp.sum(a, axis=-1, keepdims=True)

    f_in = kt * dim_in
    f_cat = (n_supports * order + 1) * f_in
    w = 0.1 * jax.random.normal(k_w, (f_cat, 2 * dim_out), dtype=jnp.float32)
    b = 0.1 * jax.random.normal(k_b, (2 * dim_out,), dtype=jnp.float32)

    # f32 MXU operands here to keep the check tight; pass
    # matmul_dtype=jnp.bfloat16 on v6e/v7x for throughput.
    out = gonv_st(x, supports, w, b, kt=kt, dim_out=dim_out, order=order)
    out = jax.block_until_ready(out)

    ref = gonv_st_ref(x, supports, w, b, kt=kt, dim_out=dim_out, order=order)
    np.testing.assert_allclose(np.asarray(out), np.asarray(ref),
                               rtol=1e-5, atol=1e-5)
    assert out.shape == (B, T - kt + 1, node, dim_out)
    print("KERNEL_OK")
</pallas_src>

<mosaic_0001>
module attributes {stable_mosaic.version = 11 : i64} {
  func.func @gonv_st_kernel(%arg0: i32, %arg1: memref<1x16x32xf32, #tpu.memory_space<vmem>>, %arg2: memref<2x16x16xf32, #tpu.memory_space<vmem>>, %arg3: memref<5x12x8xf32, #tpu.memory_space<vmem>>, %arg4: memref<1x8xf32, #tpu.memory_space<vmem>>, %arg5: memref<1x16x24xf32, #tpu.memory_space<vmem>>, %arg6: memref<16x48xf32, #tpu.memory_space<vmem>>) attributes {dimension_semantics = [#tpu.dimension_semantics<parallel>], iteration_bounds = array<i64: 2>, scalar_prefetch = 0 : i64, scratch_operands = 1 : i64, tpu.core_type = #tpu.core_type<tc>, window_params = [{transform_indices = @transform_0, window_bounds = array<i64: 1, 16, 32>}, {pipeline_mode = #tpu.pipeline_mode<synchronous>, transform_indices = @transform_1, window_bounds = array<i64: 2, 16, 16>}, {pipeline_mode = #tpu.pipeline_mode<synchronous>, transform_indices = @transform_2, window_bounds = array<i64: 5, 12, 8>}, {pipeline_mode = #tpu.pipeline_mode<synchronous>, transform_indices = @transform_3, window_bounds = array<i64: 1, 8>}, {transform_indices = @transform_4, window_bounds = array<i64: 1, 16, 24>}]} {
    %c0 = arith.constant 0 : index
    %c0_0 = arith.constant 0 : index
    %c0_1 = arith.constant 0 : index
    %0 = vector.load %arg1[%c0, %c0_0, %c0_1] : memref<1x16x32xf32, #tpu.memory_space<vmem>>, vector<1x16x32xf32>
    %1 = vector.shape_cast %0 : vector<1x16x32xf32> to vector<16x32xf32>
    %c0_2 = arith.constant 0 : index
    %c0_3 = arith.constant 0 : index
    %c0_4 = arith.constant 0 : index
    %2 = vector.load %arg3[%c0_2, %c0_3, %c0_4] : memref<5x12x8xf32, #tpu.memory_space<vmem>>, vector<1x12x8xf32>
    %3 = vector.shape_cast %2 : vector<1x12x8xf32> to vector<12x8xf32>
    %4 = vector.extract_strided_slice %1 {offsets = [0, 0], sizes = [16, 12], strides = [1, 1]} : vector<16x32xf32> to vector<16x12xf32>
    %cst = arith.constant dense<0.000000e+00> : vector<16x8xf32>
    %5 = tpu.matmul %4, %3, %cst {dimension_numbers = #tpu.dot_dimension_numbers<[1], [0], [0], [1], [0, 0, 1, 1], [], []>} : vector<16x12xf32>, vector<12x8xf32>, vector<16x8xf32> -> vector<16x8xf32>
    %c0_5 = arith.constant 0 : index
    %c0_6 = arith.constant 0 : index
    %6 = vector.load %arg6[%c0_5, %c0_6] : memref<16x48xf32, #tpu.memory_space<vmem>>, vector<16x8xf32>
    tpu.vector_store %arg6[%c0_5, %c0_6], %5 {strides = array<i32>} : memref<16x48xf32, #tpu.memory_space<vmem>>, vector<16x8xf32>,
    %7 = vector.extract_strided_slice %1 {offsets = [0, 4], sizes = [16, 12], strides = [1, 1]} : vector<16x32xf32> to vector<16x12xf32>
    %cst_7 = arith.constant dense<0.000000e+00> : vector<16x8xf32>
    %8 = tpu.matmul %7, %3, %cst_7 {dimension_numbers = #tpu.dot_dimension_numbers<[1], [0], [0], [1], [0, 0, 1, 1], [], []>} : vector<16x12xf32>, vector<12x8xf32>, vector<16x8xf32> -> vector<16x8xf32>
    %c0_8 = arith.constant 0 : index
    %c8 = arith.constant 8 : index
    %9 = vector.load %arg6[%c0_8, %c8] : memref<16x48xf32, #tpu.memory_space<vmem>>, vector<16x8xf32>
    tpu.vector_store %arg6[%c0_8, %c8], %8 {strides = array<i32>} : memref<16x48xf32, #tpu.memory_space<vmem>>, vector<16x8xf32>,
    %10 = vector.extract_strided_slice %1 {offsets = [0, 8], sizes = [16, 12], strides = [1, 1]} : vector<16x32xf32> to vector<16x12xf32>
    %cst_9 = arith.constant dense<0.000000e+00> : vector<16x8xf32>
    %11 = tpu.matmul %10, %3, %cst_9 {dimension_numbers = #tpu.dot_dimension_numbers<[1], [0], [0], [1], [0, 0, 1, 1], [], []>} : vector<16x12xf32>, vector<12x8xf32>, vector<16x8xf32> -> vector<16x8xf32>
    %c0_10 = arith.constant 0 : index
    %c16 = arith.constant 16 : index
    %12 = vector.load %arg6[%c0_10, %c16] : memref<16x48xf32, #tpu.memory_space<vmem>>, vector<16x8xf32>
    tpu.vector_store %arg6[%c0_10, %c16], %11 {strides = array<i32>} : memref<16x48xf32, #tpu.memory_space<vmem>>, vector<16x8xf32>,
    %13 = vector.extract_strided_slice %1 {offsets = [0, 12], sizes = [16, 12], strides = [1, 1]} : vector<16x32xf32> to vector<16x12xf32>
    %cst_11 = arith.constant dense<0.000000e+00> : vector<16x8xf32>
    %14 = tpu.matmul %13, %3, %cst_11 {dimension_numbers = #tpu.dot_dimension_numbers<[1], [0], [0], [1], [0, 0, 1, 1], [], []>} : vector<16x12xf32>, vector<12x8xf32>, vector<16x8xf32> -> vector<16x8xf32>
    %c0_12 = arith.constant 0 : index
    %c24 = arith.constant 24 : index
    %15 = vector.load %arg6[%c0_12, %c24] : memref<16x48xf32, #tpu.memory_space<vmem>>, vector<16x8xf32>
    tpu.vector_store %arg6[%c0_12, %c24], %14 {strides = array<i32>} : memref<16x48xf32, #tpu.memory_space<vmem>>, vector<16x8xf32>,
    %16 = vector.extract_strided_slice %1 {offsets = [0, 16], sizes = [16, 12], strides = [1, 1]} : vector<16x32xf32> to vector<16x12xf32>
    %cst_13 = arith.constant dense<0.000000e+00> : vector<16x8xf32>
    %17 = tpu.matmul %16, %3, %cst_13 {dimension_numbers = #tpu.dot_dimension_numbers<[1], [0], [0], [1], [0, 0, 1, 1], [], []>} : vector<16x12xf32>, vector<12x8xf32>, vector<16x8xf32> -> vector<16x8xf32>
    %c0_14 = arith.constant 0 : index
    %c32 = arith.constant 32 : index
    %18 = vector.load %arg6[%c0_14, %c32] : memref<16x48xf32, #tpu.memory_space<vmem>>, vector<16x8xf32>
    tpu.vector_store %arg6[%c0_14, %c32], %17 {strides = array<i32>} : memref<16x48xf32, #tpu.memory_space<vmem>>, vector<16x8xf32>,
    %19 = vector.extract_strided_slice %1 {offsets = [0, 20], sizes = [16, 12], strides = [1, 1]} : vector<16x32xf32> to vector<16x12xf32>
    %cst_15 = arith.constant dense<0.000000e+00> : vector<16x8xf32>
    %20 = tpu.matmul %19, %3, %cst_15 {dimension_numbers = #tpu.dot_dimension_numbers<[1], [0], [0], [1], [0, 0, 1, 1], [], []>} : vector<16x12xf32>, vector<12x8xf32>, vector<16x8xf32> -> vector<16x8xf32>
    %c0_16 = arith.constant 0 : index
    %c40 = arith.constant 40 : index
    %21 = vector.load %arg6[%c0_16, %c40] : memref<16x48xf32, #tpu.memory_space<vmem>>, vector<16x8xf32>
    tpu.vector_store %arg6[%c0_16, %c40], %20 {strides = array<i32>} : memref<16x48xf32, #tpu.memory_space<vmem>>, vector<16x8xf32>,
    %c0_17 = arith.constant 0 : index
    %c0_18 = arith.constant 0 : index
    %c0_19 = arith.constant 0 : index
    %22 = vector.load %arg2[%c0_17, %c0_18, %c0_19] : memref<2x16x16xf32, #tpu.memory_space<vmem>>, vector<1x16x16xf32>
    %23 = vector.shape_cast %22 : vector<1x16x16xf32> to vector<16x16xf32>
    %cst_20 = arith.constant dense<0.000000e+00> : vector<16x32xf32>
    %24 = tpu.matmul %23, %1, %cst_20 {dimension_numbers = #tpu.dot_dimension_numbers<[1], [0], [0], [1], [0, 0, 1, 1], [], []>} : vector<16x16xf32>, vector<16x32xf32>, vector<16x32xf32> -> vector<16x32xf32>
    %c1 = arith.constant 1 : index
    %c0_21 = arith.constant 0 : index
    %c0_22 = arith.constant 0 : index
    %25 = vector.load %arg3[%c1, %c0_21, %c0_22] : memref<5x12x8xf32, #tpu.memory_space<vmem>>, vector<1x12x8xf32>
    %26 = vector.shape_cast %25 : vector<1x12x8xf32> to vector<12x8xf32>
    %27 = vector.extract_strided_slice %24 {offsets = [0, 0], sizes = [16, 12], strides = [1, 1]} : vector<16x32xf32> to vector<16x12xf32>
    %cst_23 = arith.constant dense<0.000000e+00> : vector<16x8xf32>
    %28 = tpu.matmul %27, %26, %cst_23 {dimension_numbers = #tpu.dot_dimension_numbers<[1], [0], [0], [1], [0, 0, 1, 1], [], []>} : vector<16x12xf32>, vector<12x8xf32>, vector<16x8xf32> -> vector<16x8xf32>
    %c0_24 = arith.constant 0 : index
    %c0_25 = arith.constant 0 : index
    %29 = vector.load %arg6[%c0_24, %c0_25] : memref<16x48xf32, #tpu.memory_space<vmem>>, vector<16x8xf32>
    %30 = arith.addf %29, %28 : vector<16x8xf32>
    %c0_26 = arith.constant 0 : index
    %c0_27 = arith.constant 0 : index
    %31 = vector.load %arg6[%c0_26, %c0_27] : memref<16x48xf32, #tpu.memory_space<vmem>>, vector<16x8xf32>
    tpu.vector_store %arg6[%c0_26, %c0_27], %30 {strides = array<i32>} : memref<16x48xf32, #tpu.memory_space<vmem>>, vector<16x8xf32>,
    %32 = vector.extract_strided_slice %24 {offsets = [0, 4], sizes = [16, 12], strides = [1, 1]} : vector<16x32xf32> to vector<16x12xf32>
    %cst_28 = arith.constant dense<0.000000e+00> : vector<16x8xf32>
    %33 = tpu.matmul %32, %26, %cst_28 {dimension_numbers = #tpu.dot_dimension_numbers<[1], [0], [0], [1], [0, 0, 1, 1], [], []>} : vector<16x12xf32>, vector<12x8xf32>, vector<16x8xf32> -> vector<16x8xf32>
    %c0_29 = arith.constant 0 : index
    %c8_30 = arith.constant 8 : index
    %34 = vector.load %arg6[%c0_29, %c8_30] : memref<16x48xf32, #tpu.memory_space<vmem>>, vector<16x8xf32>
    %35 = arith.addf %34, %33 : vector<16x8xf32>
    %c0_31 = arith.constant 0 : index
    %c8_32 = arith.constant 8 : index
    %36 = vector.load %arg6[%c0_31, %c8_32] : memref<16x48xf32, #tpu.memory_space<vmem>>, vector<16x8xf32>
    tpu.vector_store %arg6[%c0_31, %c8_32], %35 {strides = array<i32>} : memref<16x48xf32, #tpu.memory_space<vmem>>, vector<16x8xf32>,
    %37 = vector.extract_strided_slice %24 {offsets = [0, 8], sizes = [16, 12], strides = [1, 1]} : vector<16x32xf32> to vector<16x12xf32>
    %cst_33 = arith.constant dense<0.000000e+00> : vector<16x8xf32>
    %38 = tpu.matmul %37, %26, %cst_33 {dimension_numbers = #tpu.dot_dimension_numbers<[1], [0], [0], [1], [0, 0, 1, 1], [], []>} : vector<16x12xf32>, vector<12x8xf32>, vector<16x8xf32> -> vector<16x8xf32>
    %c0_34 = arith.constant 0 : index
    %c16_35 = arith.constant 16 : index
    %39 = vector.load %arg6[%c0_34, %c16_35] : memref<16x48xf32, #tpu.memory_space<vmem>>, vector<16x8xf32>
    %40 = arith.addf %39, %38 : vector<16x8xf32>
    %c0_36 = arith.constant 0 : index
    %c16_37 = arith.constant 16 : index
    %41 = vector.load %arg6[%c0_36, %c16_37] : memref<16x48xf32, #tpu.memory_space<vmem>>, vector<16x8xf32>
    tpu.vector_store %arg6[%c0_36, %c16_37], %40 {strides = array<i32>} : memref<16x48xf32, #tpu.memory_space<vmem>>, vector<16x8xf32>,
    %42 = vector.extract_strided_slice %24 {offsets = [0, 12], sizes = [16, 12], strides = [1, 1]} : vector<16x32xf32> to vector<16x12xf32>
    %cst_38 = arith.constant dense<0.000000e+00> : vector<16x8xf32>
    %43 = tpu.matmul %42, %26, %cst_38 {dimension_numbers = #tpu.dot_dimension_numbers<[1], [0], [0], [1], [0, 0, 1, 1], [], []>} : vector<16x12xf32>, vector<12x8xf32>, vector<16x8xf32> -> vector<16x8xf32>
    %c0_39 = arith.constant 0 : index
    %c24_40 = arith.constant 24 : index
    %44 = vector.load %arg6[%c0_39, %c24_40] : memref<16x48xf32, #tpu.memory_space<vmem>>, vector<16x8xf32>
    %45 = arith.addf %44, %43 : vector<16x8xf32>
    %c0_41 = arith.constant 0 : index
    %c24_42 = arith.constant 24 : index
    %46 = vector.load %arg6[%c0_41, %c24_42] : memref<16x48xf32, #tpu.memory_space<vmem>>, vector<16x8xf32>
    tpu.vector_store %arg6[%c0_41, %c24_42], %45 {strides = array<i32>} : memref<16x48xf32, #tpu.memory_space<vmem>>, vector<16x8xf32>,
    %47 = vector.extract_strided_slice %24 {offsets = [0, 16], sizes = [16, 12], strides = [1, 1]} : vector<16x32xf32> to vector<16x12xf32>
    %cst_43 = arith.constant dense<0.000000e+00> : vector<16x8xf32>
    %48 = tpu.matmul %47, %26, %cst_43 {dimension_numbers = #tpu.dot_dimension_numbers<[1], [0], [0], [1], [0, 0, 1, 1], [], []>} : vector<16x12xf32>, vector<12x8xf32>, vector<16x8xf32> -> vector<16x8xf32>
    %c0_44 = arith.constant 0 : index
    %c32_45 = arith.constant 32 : index
    %49 = vector.load %arg6[%c0_44, %c32_45] : memref<16x48xf32, #tpu.memory_space<vmem>>, vector<16x8xf32>
    %50 = arith.addf %49, %48 : vector<16x8xf32>
    %c0_46 = arith.constant 0 : index
    %c32_47 = arith.constant 32 : index
    %51 = vector.load %arg6[%c0_46, %c32_47] : memref<16x48xf32, #tpu.memory_space<vmem>>, vector<16x8xf32>
    tpu.vector_store %arg6[%c0_46, %c32_47], %50 {strides = array<i32>} : memref<16x48xf32, #tpu.memory_space<vmem>>, vector<16x8xf32>,
    %52 = vector.extract_strided_slice %24 {offsets = [0, 20], sizes = [16, 12], strides = [1, 1]} : vector<16x32xf32> to vector<16x12xf32>
    %cst_48 = arith.constant dense<0.000000e+00> : vector<16x8xf32>
    %53 = tpu.matmul %52, %26, %cst_48 {dimension_numbers = #tpu.dot_dimension_numbers<[1], [0], [0], [1], [0, 0, 1, 1], [], []>} : vector<16x12xf32>, vector<12x8xf32>, vector<16x8xf32> -> vector<16x8xf32>
    %c0_49 = arith.constant 0 : index
    %c40_50 = arith.constant 40 : index
    %54 = vector.load %arg6[%c0_49, %c40_50] : memref<16x48xf32, #tpu.memory_space<vmem>>, vector<16x8xf32>
    %55 = arith.addf %54, %53 : vector<16x8xf32>
    %c0_51 = arith.constant 0 : index
    %c40_52 = arith.constant 40 : index
    %56 = vector.load %arg6[%c0_51, %c40_52] : memref<16x48xf32, #tpu.memory_space<vmem>>, vector<16x8xf32>
    tpu.vector_store %arg6[%c0_51, %c40_52], %55 {strides = array<i32>} : memref<16x48xf32, #tpu.memory_space<vmem>>, vector<16x8xf32>,
    %cst_53 = arith.constant dense<0.000000e+00> : vector<16x32xf32>
    %57 = tpu.matmul %23, %24, %cst_53 {dimension_numbers = #tpu.dot_dimension_numbers<[1], [0], [0], [1], [0, 0, 1, 1], [], []>} : vector<16x16xf32>, vector<16x32xf32>, vector<16x32xf32> -> vector<16x32xf32>
    %c2 = arith.constant 2 : index
    %c0_54 = arith.constant 0 : index
    %c0_55 = arith.constant 0 : index
    %58 = vector.load %arg3[%c2, %c0_54, %c0_55] : memref<5x12x8xf32, #tpu.memory_space<vmem>>, vector<1x12x8xf32>
    %59 = vector.shape_cast %58 : vector<1x12x8xf32> to vector<12x8xf32>
    %60 = vector.extract_strided_slice %57 {offsets = [0, 0], sizes = [16, 12], strides = [1, 1]} : vector<16x32xf32> to vector<16x12xf32>
    %cst_56 = arith.constant dense<0.000000e+00> : vector<16x8xf32>
    %61 = tpu.matmul %60, %59, %cst_56 {dimension_numbers = #tpu.dot_dimension_numbers<[1], [0], [0], [1], [0, 0, 1, 1], [], []>} : vector<16x12xf32>, vector<12x8xf32>, vector<16x8xf32> -> vector<16x8xf32>
    %c0_57 = arith.constant 0 : index
    %c0_58 = arith.constant 0 : index
    %62 = vector.load %arg6[%c0_57, %c0_58] : memref<16x48xf32, #tpu.memory_space<vmem>>, vector<16x8xf32>
    %63 = arith.addf %62, %61 : vector<16x8xf32>
    %c0_59 = arith.constant 0 : index
    %c0_60 = arith.constant 0 : index
    %64 = vector.load %arg6[%c0_59, %c0_60] : memref<16x48xf32, #tpu.memory_space<vmem>>, vector<16x8xf32>
    tpu.vector_store %arg6[%c0_59, %c0_60], %63 {strides = array<i32>} : memref<16x48xf32, #tpu.memory_space<vmem>>, vector<16x8xf32>,
    %65 = vector.extract_strided_slice %57 {offsets = [0, 4], sizes = [16, 12], strides = [1, 1]} : vector<16x32xf32> to vector<16x12xf32>
    %cst_61 = arith.constant dense<0.000000e+00> : vector<16x8xf32>
    %66 = tpu.matmul %65, %59, %cst_61 {dimension_numbers = #tpu.dot_dimension_numbers<[1], [0], [0], [1], [0, 0, 1, 1], [], []>} : vector<16x12xf32>, vector<12x8xf32>, vector<16x8xf32> -> vector<16x8xf32>
    %c0_62 = arith.constant 0 : index
    %c8_63 = arith.constant 8 : index
    %67 = vector.load %arg6[%c0_62, %c8_63] : memref<16x48xf32, #tpu.memory_space<vmem>>, vector<16x8xf32>
    %68 = arith.addf %67, %66 : vector<16x8xf32>
    %c0_64 = arith.constant 0 : index
    %c8_65 = arith.constant 8 : index
    %69 = vector.load %arg6[%c0_64, %c8_65] : memref<16x48xf32, #tpu.memory_space<vmem>>, vector<16x8xf32>
    tpu.vector_store %arg6[%c0_64, %c8_65], %68 {strides = array<i32>} : memref<16x48xf32, #tpu.memory_space<vmem>>, vector<16x8xf32>,
    %70 = vector.extract_strided_slice %57 {offsets = [0, 8], sizes = [16, 12], strides = [1, 1]} : vector<16x32xf32> to vector<16x12xf32>
    %cst_66 = arith.constant dense<0.000000e+00> : vector<16x8xf32>
    %71 = tpu.matmul %70, %59, %cst_66 {dimension_numbers = #tpu.dot_dimension_numbers<[1], [0], [0], [1], [0, 0, 1, 1], [], []>} : vector<16x12xf32>, vector<12x8xf32>, vector<16x8xf32> -> vector<16x8xf32>
    %c0_67 = arith.constant 0 : index
    %c16_68 = arith.constant 16 : index
    %72 = vector.load %arg6[%c0_67, %c16_68] : memref<16x48xf32, #tpu.memory_space<vmem>>, vector<16x8xf32>
    %73 = arith.addf %72, %71 : vector<16x8xf32>
    %c0_69 = arith.constant 0 : index
    %c16_70 = arith.constant 16 : index
    %74 = vector.load %arg6[%c0_69, %c16_70] : memref<16x48xf32, #tpu.memory_space<vmem>>, vector<16x8xf32>
    tpu.vector_store %arg6[%c0_69, %c16_70], %73 {strides = array<i32>} : memref<16x48xf32, #tpu.memory_space<vmem>>, vector<16x8xf32>,
    %75 = vector.extract_strided_slice %57 {offsets = [0, 12], sizes = [16, 12], strides = [1, 1]} : vector<16x32xf32> to vector<16x12xf32>
    %cst_71 = arith.constant dense<0.000000e+00> : vector<16x8xf32>
    %76 = tpu.matmul %75, %59, %cst_71 {dimension_numbers = #tpu.dot_dimension_numbers<[1], [0], [0], [1], [0, 0, 1, 1], [], []>} : vector<16x12xf32>, vector<12x8xf32>, vector<16x8xf32> -> vector<16x8xf32>
    %c0_72 = arith.constant 0 : index
    %c24_73 = arith.constant 24 : index
    %77 = vector.load %arg6[%c0_72, %c24_73] : memref<16x48xf32, #tpu.memory_space<vmem>>, vector<16x8xf32>
    %78 = arith.addf %77, %76 : vector<16x8xf32>
    %c0_74 = arith.constant 0 : index
    %c24_75 = arith.constant 24 : index
    %79 = vector.load %arg6[%c0_74, %c24_75] : memref<16x48xf32, #tpu.memory_space<vmem>>, vector<16x8xf32>
    tpu.vector_store %arg6[%c0_74, %c24_75], %78 {strides = array<i32>} : memref<16x48xf32, #tpu.memory_space<vmem>>, vector<16x8xf32>,
    %80 = vector.extract_strided_slice %57 {offsets = [0, 16], sizes = [16, 12], strides = [1, 1]} : vector<16x32xf32> to vector<16x12xf32>
    %cst_76 = arith.constant dense<0.000000e+00> : vector<16x8xf32>
    %81 = tpu.matmul %80, %59, %cst_76 {dimension_numbers = #tpu.dot_dimension_numbers<[1], [0], [0], [1], [0, 0, 1, 1], [], []>} : vector<16x12xf32>, vector<12x8xf32>, vector<16x8xf32> -> vector<16x8xf32>
    %c0_77 = arith.constant 0 : index
    %c32_78 = arith.constant 32 : index
    %82 = vector.load %arg6[%c0_77, %c32_78] : memref<16x48xf32, #tpu.memory_space<vmem>>, vector<16x8xf32>
    %83 = arith.addf %82, %81 : vector<16x8xf32>
    %c0_79 = arith.constant 0 : index
    %c32_80 = arith.constant 32 : index
    %84 = vector.load %arg6[%c0_79, %c32_80] : memref<16x48xf32, #tpu.memory_space<vmem>>, vector<16x8xf32>
    tpu.vector_store %arg6[%c0_79, %c32_80], %83 {strides = array<i32>} : memref<16x48xf32, #tpu.memory_space<vmem>>, vector<16x8xf32>,
    %85 = vector.extract_strided_slice %57 {offsets = [0, 20], sizes = [16, 12], strides = [1, 1]} : vector<16x32xf32> to vector<16x12xf32>
    %cst_81 = arith.constant dense<0.000000e+00> : vector<16x8xf32>
    %86 = tpu.matmul %85, %59, %cst_81 {dimension_numbers = #tpu.dot_dimension_numbers<[1], [0], [0], [1], [0, 0, 1, 1], [], []>} : vector<16x12xf32>, vector<12x8xf32>, vector<16x8xf32> -> vector<16x8xf32>
    %c0_82 = arith.constant 0 : index
    %c40_83 = arith.constant 40 : index
    %87 = vector.load %arg6[%c0_82, %c40_83] : memref<16x48xf32, #tpu.memory_space<vmem>>, vector<16x8xf32>
    %88 = arith.addf %87, %86 : vector<16x8xf32>
    %c0_84 = arith.constant 0 : index
    %c40_85 = arith.constant 40 : index
    %89 = vector.load %arg6[%c0_84, %c40_85] : memref<16x48xf32, #tpu.memory_space<vmem>>, vector<16x8xf32>
    tpu.vector_store %arg6[%c0_84, %c40_85], %88 {strides = array<i32>} : memref<16x48xf32, #tpu.memory_space<vmem>>, vector<16x8xf32>,
    %c1_86 = arith.constant 1 : index
    %c0_87 = arith.constant 0 : index
    %c0_88 = arith.constant 0 : index
    %90 = vector.load %arg2[%c1_86, %c0_87, %c0_88] : memref<2x16x16xf32, #tpu.memory_space<vmem>>, vector<1x16x16xf32>
    %91 = vector.shape_cast %90 : vector<1x16x16xf32> to vector<16x16xf32>
    %cst_89 = arith.constant dense<0.000000e+00> : vector<16x32xf32>
    %92 = tpu.matmul %91, %1, %cst_89 {dimension_numbers = #tpu.dot_dimension_numbers<[1], [0], [0], [1], [0, 0, 1, 1], [], []>} : vector<16x16xf32>, vector<16x32xf32>, vector<16x32xf32> -> vector<16x32xf32>
    %c3 = arith.constant 3 : index
    %c0_90 = arith.constant 0 : index
    %c0_91 = arith.constant 0 : index
    %93 = vector.load %arg3[%c3, %c0_90, %c0_91] : memref<5x12x8xf32, #tpu.memory_space<vmem>>, vector<1x12x8xf32>
    %94 = vector.shape_cast %93 : vector<1x12x8xf32> to vector<12x8xf32>
    %95 = vector.extract_strided_slice %92 {offsets = [0, 0], sizes = [16, 12], strides = [1, 1]} : vector<16x32xf32> to vector<16x12xf32>
    %cst_92 = arith.constant dense<0.000000e+00> : vector<16x8xf32>
    %96 = tpu.matmul %95, %94, %cst_92 {dimension_numbers = #tpu.dot_dimension_numbers<[1], [0], [0], [1], [0, 0, 1, 1], [], []>} : vector<16x12xf32>, vector<12x8xf32>, vector<16x8xf32> -> vector<16x8xf32>
    %c0_93 = arith.constant 0 : index
    %c0_94 = arith.constant 0 : index
    %97 = vector.load %arg6[%c0_93, %c0_94] : memref<16x48xf32, #tpu.memory_space<vmem>>, vector<16x8xf32>
    %98 = arith.addf %97, %96 : vector<16x8xf32>
    %c0_95 = arith.constant 0 : index
    %c0_96 = arith.constant 0 : index
    %99 = vector.load %arg6[%c0_95, %c0_96] : memref<16x48xf32, #tpu.memory_space<vmem>>, vector<16x8xf32>
    tpu.vector_store %arg6[%c0_95, %c0_96], %98 {strides = array<i32>} : memref<16x48xf32, #tpu.memory_space<vmem>>, vector<16x8xf32>,
    %100 = vector.extract_strided_slice %92 {offsets = [0, 4], sizes = [16, 12], strides = [1, 1]} : vector<16x32xf32> to vector<16x12xf32>
    %cst_97 = arith.constant dense<0.000000e+00> : vector<16x8xf32>
    %101 = tpu.matmul %100, %94, %cst_97 {dimension_numbers = #tpu.dot_dimension_numbers<[1], [0], [0], [1], [0, 0, 1, 1], [], []>} : vector<16x12xf32>, vector<12x8xf32>, vector<16x8xf32> -> vector<16x8xf32>
    %c0_98 = arith.constant 0 : index
    %c8_99 = arith.constant 8 : index
    %102 = vector.load %arg6[%c0_98, %c8_99] : memref<16x48xf32, #tpu.memory_space<vmem>>, vector<16x8xf32>
    %103 = arith.addf %102, %101 : vector<16x8xf32>
    %c0_100 = arith.constant 0 : index
    %c8_101 = arith.constant 8 : index
    %104 = vector.load %arg6[%c0_100, %c8_101] : memref<16x48xf32, #tpu.memory_space<vmem>>, vector<16x8xf32>
    tpu.vector_store %arg6[%c0_100, %c8_101], %103 {strides = array<i32>} : memref<16x48xf32, #tpu.memory_space<vmem>>, vector<16x8xf32>,
    %105 = vector.extract_strided_slice %92 {offsets = [0, 8], sizes = [16, 12], strides = [1, 1]} : vector<16x32xf32> to vector<16x12xf32>
    %cst_102 = arith.constant dense<0.000000e+00> : vector<16x8xf32>
    %106 = tpu.matmul %105, %94, %cst_102 {dimension_numbers = #tpu.dot_dimension_numbers<[1], [0], [0], [1], [0, 0, 1, 1], [], []>} : vector<16x12xf32>, vector<12x8xf32>, vector<16x8xf32> -> vector<16x8xf32>
    %c0_103 = arith.constant 0 : index
    %c16_104 = arith.constant 16 : index
    %107 = vector.load %arg6[%c0_103, %c16_104] : memref<16x48xf32, #tpu.memory_space<vmem>>, vector<16x8xf32>
    %108 = arith.addf %107, %106 : vector<16x8xf32>
    %c0_105 = arith.constant 0 : index
    %c16_106 = arith.constant 16 : index
    %109 = vector.load %arg6[%c0_105, %c16_106] : memref<16x48xf32, #tpu.memory_space<vmem>>, vector<16x8xf32>
    tpu.vector_store %arg6[%c0_105, %c16_106], %108 {strides = array<i32>} : memref<16x48xf32, #tpu.memory_space<vmem>>, vector<16x8xf32>,
    %110 = vector.extract_strided_slice %92 {offsets = [0, 12], sizes = [16, 12], strides = [1, 1]} : vector<16x32xf32> to vector<16x12xf32>
    %cst_107 = arith.constant dense<0.000000e+00> : vector<16x8xf32>
    %111 = tpu.matmul %110, %94, %cst_107 {dimension_numbers = #tpu.dot_dimension_numbers<[1], [0], [0], [1], [0, 0, 1, 1], [], []>} : vector<16x12xf32>, vector<12x8xf32>, vector<16x8xf32> -> vector<16x8xf32>
    %c0_108 = arith.constant 0 : index
    %c24_109 = arith.constant 24 : index
    %112 = vector.load %arg6[%c0_108, %c24_109] : memref<16x48xf32, #tpu.memory_space<vmem>>, vector<16x8xf32>
    %113 = arith.addf %112, %111 : vector<16x8xf32>
    %c0_110 = arith.constant 0 : index
    %c24_111 = arith.constant 24 : index
    %114 = vector.load %arg6[%c0_110, %c24_111] : memref<16x48xf32, #tpu.memory_space<vmem>>, vector<16x8xf32>
    tpu.vector_store %arg6[%c0_110, %c24_111], %113 {strides = array<i32>} : memref<16x48xf32, #tpu.memory_space<vmem>>, vector<16x8xf32>,
    %115 = vector.extract_strided_slice %92 {offsets = [0, 16], sizes = [16, 12], strides = [1, 1]} : vector<16x32xf32> to vector<16x12xf32>
    %cst_112 = arith.constant dense<0.000000e+00> : vector<16x8xf32>
    %116 = tpu.matmul %115, %94, %cst_112 {dimension_numbers = #tpu.dot_dimension_numbers<[1], [0], [0], [1], [0, 0, 1, 1], [], []>} : vector<16x12xf32>, vector<12x8xf32>, vector<16x8xf32> -> vector<16x8xf32>
    %c0_113 = arith.constant 0 : index
    %c32_114 = arith.constant 32 : index
    %117 = vector.load %arg6[%c0_113, %c32_114] : memref<16x48xf32, #tpu.memory_space<vmem>>, vector<16x8xf32>
    %118 = arith.addf %117, %116 : vector<16x8xf32>
    %c0_115 = arith.constant 0 : index
    %c32_116 = arith.constant 32 : index
    %119 = vector.load %arg6[%c0_115, %c32_116] : memref<16x48xf32, #tpu.memory_space<vmem>>, vector<16x8xf32>
    tpu.vector_store %arg6[%c0_115, %c32_116], %118 {strides = array<i32>} : memref<16x48xf32, #tpu.memory_space<vmem>>, vector<16x8xf32>,
    %120 = vector.extract_strided_slice %92 {offsets = [0, 20], sizes = [16, 12], strides = [1, 1]} : vector<16x32xf32> to vector<16x12xf32>
    %cst_117 = arith.constant dense<0.000000e+00> : vector<16x8xf32>
    %121 = tpu.matmul %120, %94, %cst_117 {dimension_numbers = #tpu.dot_dimension_numbers<[1], [0], [0], [1], [0, 0, 1, 1], [], []>} : vector<16x12xf32>, vector<12x8xf32>, vector<16x8xf32> -> vector<16x8xf32>
    %c0_118 = arith.constant 0 : index
    %c40_119 = arith.constant 40 : index
    %122 = vector.load %arg6[%c0_118, %c40_119] : memref<16x48xf32, #tpu.memory_space<vmem>>, vector<16x8xf32>
    %123 = arith.addf %122, %121 : vector<16x8xf32>
    %c0_120 = arith.constant 0 : index
    %c40_121 = arith.constant 40 : index
    %124 = vector.load %arg6[%c0_120, %c40_121] : memref<16x48xf32, #tpu.memory_space<vmem>>, vector<16x8xf32>
    tpu.vector_store %arg6[%c0_120, %c40_121], %123 {strides = array<i32>} : memref<16x48xf32, #tpu.memory_space<vmem>>, vector<16x8xf32>,
    %cst_122 = arith.constant dense<0.000000e+00> : vector<16x32xf32>
    %125 = tpu.matmul %91, %92, %cst_122 {dimension_numbers = #tpu.dot_dimension_numbers<[1], [0], [0], [1], [0, 0, 1, 1], [], []>} : vector<16x16xf32>, vector<16x32xf32>, vector<16x32xf32> -> vector<16x32xf32>
    %c4 = arith.constant 4 : index
    %c0_123 = arith.constant 0 : index
    %c0_124 = arith.constant 0 : index
    %126 = vector.load %arg3[%c4, %c0_123, %c0_124] : memref<5x12x8xf32, #tpu.memory_space<vmem>>, vector<1x12x8xf32>
    %127 = vector.shape_cast %126 : vector<1x12x8xf32> to vector<12x8xf32>
    %128 = vector.extract_strided_slice %125 {offsets = [0, 0], sizes = [16, 12], strides = [1, 1]} : vector<16x32xf32> to vector<16x12xf32>
    %cst_125 = arith.constant dense<0.000000e+00> : vector<16x8xf32>
    %129 = tpu.matmul %128, %127, %cst_125 {dimension_numbers = #tpu.dot_dimension_numbers<[1], [0], [0], [1], [0, 0, 1, 1], [], []>} : vector<16x12xf32>, vector<12x8xf32>, vector<16x8xf32> -> vector<16x8xf32>
    %c0_126 = arith.constant 0 : index
    %c0_127 = arith.constant 0 : index
    %130 = vector.load %arg6[%c0_126, %c0_127] : memref<16x48xf32, #tpu.memory_space<vmem>>, vector<16x8xf32>
    %131 = arith.addf %130, %129 : vector<16x8xf32>
    %c0_128 = arith.constant 0 : index
    %c0_129 = arith.constant 0 : index
    %132 = vector.load %arg6[%c0_128, %c0_129] : memref<16x48xf32, #tpu.memory_space<vmem>>, vector<16x8xf32>
    tpu.vector_store %arg6[%c0_128, %c0_129], %131 {strides = array<i32>} : memref<16x48xf32, #tpu.memory_space<vmem>>, vector<16x8xf32>,
    %133 = vector.extract_strided_slice %125 {offsets = [0, 4], sizes = [16, 12], strides = [1, 1]} : vector<16x32xf32> to vector<16x12xf32>
    %cst_130 = arith.constant dense<0.000000e+00> : vector<16x8xf32>
    %134 = tpu.matmul %133, %127, %cst_130 {dimension_numbers = #tpu.dot_dimension_numbers<[1], [0], [0], [1], [0, 0, 1, 1], [], []>} : vector<16x12xf32>, vector<12x8xf32>, vector<16x8xf32> -> vector<16x8xf32>
    %c0_131 = arith.constant 0 : index
    %c8_132 = arith.constant 8 : index
    %135 = vector.load %arg6[%c0_131, %c8_132] : memref<16x48xf32, #tpu.memory_space<vmem>>, vector<16x8xf32>
    %136 = arith.addf %135, %134 : vector<16x8xf32>
    %c0_133 = arith.constant 0 : index
    %c8_134 = arith.constant 8 : index
    %137 = vector.load %arg6[%c0_133, %c8_134] : memref<16x48xf32, #tpu.memory_space<vmem>>, vector<16x8xf32>
    tpu.vector_store %arg6[%c0_133, %c8_134], %136 {strides = array<i32>} : memref<16x48xf32, #tpu.memory_space<vmem>>, vector<16x8xf32>,
    %138 = vector.extract_strided_slice %125 {offsets = [0, 8], sizes = [16, 12], strides = [1, 1]} : vector<16x32xf32> to vector<16x12xf32>
    %cst_135 = arith.constant dense<0.000000e+00> : vector<16x8xf32>
    %139 = tpu.matmul %138, %127, %cst_135 {dimension_numbers = #tpu.dot_dimension_numbers<[1], [0], [0], [1], [0, 0, 1, 1], [], []>} : vector<16x12xf32>, vector<12x8xf32>, vector<16x8xf32> -> vector<16x8xf32>
    %c0_136 = arith.constant 0 : index
    %c16_137 = arith.constant 16 : index
    %140 = vector.load %arg6[%c0_136, %c16_137] : memref<16x48xf32, #tpu.memory_space<vmem>>, vector<16x8xf32>
    %141 = arith.addf %140, %139 : vector<16x8xf32>
    %c0_138 = arith.constant 0 : index
    %c16_139 = arith.constant 16 : index
    %142 = vector.load %arg6[%c0_138, %c16_139] : memref<16x48xf32, #tpu.memory_space<vmem>>, vector<16x8xf32>
    tpu.vector_store %arg6[%c0_138, %c16_139], %141 {strides = array<i32>} : memref<16x48xf32, #tpu.memory_space<vmem>>, vector<16x8xf32>,
    %143 = vector.extract_strided_slice %125 {offsets = [0, 12], sizes = [16, 12], strides = [1, 1]} : vector<16x32xf32> to vector<16x12xf32>
    %cst_140 = arith.constant dense<0.000000e+00> : vector<16x8xf32>
    %144 = tpu.matmul %143, %127, %cst_140 {dimension_numbers = #tpu.dot_dimension_numbers<[1], [0], [0], [1], [0, 0, 1, 1], [], []>} : vector<16x12xf32>, vector<12x8xf32>, vector<16x8xf32> -> vector<16x8xf32>
    %c0_141 = arith.constant 0 : index
    %c24_142 = arith.constant 24 : index
    %145 = vector.load %arg6[%c0_141, %c24_142] : memref<16x48xf32, #tpu.memory_space<vmem>>, vector<16x8xf32>
    %146 = arith.addf %145, %144 : vector<16x8xf32>
    %c0_143 = arith.constant 0 : index
    %c24_144 = arith.constant 24 : index
    %147 = vector.load %arg6[%c0_143, %c24_144] : memref<16x48xf32, #tpu.memory_space<vmem>>, vector<16x8xf32>
    tpu.vector_store %arg6[%c0_143, %c24_144], %146 {strides = array<i32>} : memref<16x48xf32, #tpu.memory_space<vmem>>, vector<16x8xf32>,
    %148 = vector.extract_strided_slice %125 {offsets = [0, 16], sizes = [16, 12], strides = [1, 1]} : vector<16x32xf32> to vector<16x12xf32>
    %cst_145 = arith.constant dense<0.000000e+00> : vector<16x8xf32>
    %149 = tpu.matmul %148, %127, %cst_145 {dimension_numbers = #tpu.dot_dimension_numbers<[1], [0], [0], [1], [0, 0, 1, 1], [], []>} : vector<16x12xf32>, vector<12x8xf32>, vector<16x8xf32> -> vector<16x8xf32>
    %c0_146 = arith.constant 0 : index
    %c32_147 = arith.constant 32 : index
    %150 = vector.load %arg6[%c0_146, %c32_147] : memref<16x48xf32, #tpu.memory_space<vmem>>, vector<16x8xf32>
    %151 = arith.addf %150, %149 : vector<16x8xf32>
    %c0_148 = arith.constant 0 : index
    %c32_149 = arith.constant 32 : index
    %152 = vector.load %arg6[%c0_148, %c32_149] : memref<16x48xf32, #tpu.memory_space<vmem>>, vector<16x8xf32>
    tpu.vector_store %arg6[%c0_148, %c32_149], %151 {strides = array<i32>} : memref<16x48xf32, #tpu.memory_space<vmem>>, vector<16x8xf32>,
    %153 = vector.extract_strided_slice %125 {offsets = [0, 20], sizes = [16, 12], strides = [1, 1]} : vector<16x32xf32> to vector<16x12xf32>
    %cst_150 = arith.constant dense<0.000000e+00> : vector<16x8xf32>
    %154 = tpu.matmul %153, %127, %cst_150 {dimension_numbers = #tpu.dot_dimension_numbers<[1], [0], [0], [1], [0, 0, 1, 1], [], []>} : vector<16x12xf32>, vector<12x8xf32>, vector<16x8xf32> -> vector<16x8xf32>
    %c0_151 = arith.constant 0 : index
    %c40_152 = arith.constant 40 : index
    %155 = vector.load %arg6[%c0_151, %c40_152] : memref<16x48xf32, #tpu.memory_space<vmem>>, vector<16x8xf32>
    %156 = arith.addf %155, %154 : vector<16x8xf32>
    %c0_153 = arith.constant 0 : index
    %c40_154 = arith.constant 40 : index
    %157 = vector.load %arg6[%c0_153, %c40_154] : memref<16x48xf32, #tpu.memory_space<vmem>>, vector<16x8xf32>
    tpu.vector_store %arg6[%c0_153, %c40_154], %156 {strides = array<i32>} : memref<16x48xf32, #tpu.memory_space<vmem>>, vector<16x8xf32>,
    %c0_155 = arith.constant 0 : index
    %c0_156 = arith.constant 0 : index
    %158 = vector.load %arg4[%c0_155, %c0_156] : memref<1x8xf32, #tpu.memory_space<vmem>>, vector<1x4xf32>
    %c0_157 = arith.constant 0 : index
    %c4_158 = arith.constant 4 : index
    %159 = vector.load %arg4[%c0_157, %c4_158] : memref<1x8xf32, #tpu.memory_space<vmem>>, vector<1x4xf32>
    %c0_159 = arith.constant 0 : index
    %c0_160 = arith.constant 0 : index
    %160 = vector.load %arg6[%c0_159, %c0_160] : memref<16x48xf32, #tpu.memory_space<vmem>>, vector<16x4xf32>
    %161 = vector.extract_strided_slice %1 {offsets = [0, 8], sizes = [16, 4], strides = [1, 1]} : vector<16x32xf32> to vector<16x4xf32>
    %162 = arith.addf %160, %161 : vector<16x4xf32>
    %c0_161 = arith.constant 0 : index
    %c0_162 = arith.constant 0 : index
    %163 = vector.load %arg6[%c0_161, %c0_162] : memref<16x48xf32, #tpu.memory_space<vmem>>, vector<16x4xf32>
    tpu.vector_store %arg6[%c0_161, %c0_162], %162 {strides = array<i32>} : memref<16x48xf32, #tpu.memory_space<vmem>>, vector<16x4xf32>,
    %c0_163 = arith.constant 0 : index
    %c0_164 = arith.constant 0 : index
    %164 = vector.load %arg6[%c0_163, %c0_164] : memref<16x48xf32, #tpu.memory_space<vmem>>, vector<16x4xf32>
    %165 = vector.broadcast %158 : vector<1x4xf32> to vector<16x4xf32>
    %166 = arith.addf %164, %165 : vector<16x4xf32>
    %c0_165 = arith.constant 0 : index
    %c4_166 = arith.constant 4 : index
    %167 = vector.load %arg6[%c0_165, %c4_166] : memref<16x48xf32, #tpu.memory_space<vmem>>, vector<16x4xf32>
    %168 = vector.broadcast %159 : vector<1x4xf32> to vector<16x4xf32>
    %169 = arith.addf %167, %168 : vector<16x4xf32>
    %170 = arith.negf %169 : vector<16x4xf32>
    %171 = math.exp %170 : vector<16x4xf32>
    %cst_167 = arith.constant 1.000000e+00 : f32
    %172 = vector.broadcast %cst_167 : f32 to vector<16x4xf32>
    %173 = arith.addf %172, %171 : vector<16x4xf32>
    %174 = arith.divf %172, %173 : vector<16x4xf32>
    %175 = arith.mulf %166, %174 : vector<16x4xf32>
    %c0_168 = arith.constant 0 : index
    %c0_169 = arith.constant 0 : index
    %c0_170 = arith.constant 0 : index
    %176 = vector.load %arg5[%c0_168, %c0_169, %c0_170] : memref<1x16x24xf32, #tpu.memory_space<vmem>>, vector<1x16x4xf32>
    %177 = vector.shape_cast %176 : vector<1x16x4xf32> to vector<16x4xf32>
    %178 = vector.shape_cast %175 : vector<16x4xf32> to vector<1x16x4xf32>
    tpu.vector_store %arg5[%c0_168, %c0_169, %c0_170], %178 {strides = array<i32>} : memref<1x16x24xf32, #tpu.memory_space<vmem>>, vector<1x16x4xf32>,
    %c0_171 = arith.constant 0 : index
    %c8_172 = arith.constant 8 : index
    %179 = vector.load %arg6[%c0_171, %c8_172] : memref<16x48xf32, #tpu.memory_space<vmem>>, vector<16x4xf32>
    %180 = vector.extract_strided_slice %1 {offsets = [0, 12], sizes = [16, 4], strides = [1, 1]} : vector<16x32xf32> to vector<16x4xf32>
    %181 = arith.addf %179, %180 : vector<16x4xf32>
    %c0_173 = arith.constant 0 : index
    %c8_174 = arith.constant 8 : index
    %182 = vector.load %arg6[%c0_173, %c8_174] : memref<16x48xf32, #tpu.memory_space<vmem>>, vector<16x4xf32>
    tpu.vector_store %arg6[%c0_173, %c8_174], %181 {strides = array<i32>} : memref<16x48xf32, #tpu.memory_space<vmem>>, vector<16x4xf32>,
    %c0_175 = arith.constant 0 : index
    %c8_176 = arith.constant 8 : index
    %183 = vector.load %arg6[%c0_175, %c8_176] : memref<16x48xf32, #tpu.memory_space<vmem>>, vector<16x4xf32>
    %184 = vector.broadcast %158 : vector<1x4xf32> to vector<16x4xf32>
    %185 = arith.addf %183, %184 : vector<16x4xf32>
    %c0_177 = arith.constant 0 : index
    %c12 = arith.constant 12 : index
    %186 = vector.load %arg6[%c0_177, %c12] : memref<16x48xf32, #tpu.memory_space<vmem>>, vector<16x4xf32>
    %187 = vector.broadcast %159 : vector<1x4xf32> to vector<16x4xf32>
    %188 = arith.addf %186, %187 : vector<16x4xf32>
    %189 = arith.negf %188 : vector<16x4xf32>
    %190 = math.exp %189 : vector<16x4xf32>
    %cst_178 = arith.constant 1.000000e+00 : f32
    %191 = vector.broadcast %cst_178 : f32 to vector<16x4xf32>
    %192 = arith.addf %191, %190 : vector<16x4xf32>
    %193 = arith.divf %191, %192 : vector<16x4xf32>
    %194 = arith.mulf %185, %193 : vector<16x4xf32>
    %c0_179 = arith.constant 0 : index
    %c0_180 = arith.constant 0 : index
    %c4_181 = arith.constant 4 : index
    %195 = vector.load %arg5[%c0_179, %c0_180, %c4_181] : memref<1x16x24xf32, #tpu.memory_space<vmem>>, vector<1x16x4xf32>
    %196 = vector.shape_cast %195 : vector<1x16x4xf32> to vector<16x4xf32>
    %197 = vector.shape_cast %194 : vector<16x4xf32> to vector<1x16x4xf32>
    tpu.vector_store %arg5[%c0_179, %c0_180, %c4_181], %197 {strides = array<i32>} : memref<1x16x24xf32, #tpu.memory_space<vmem>>, vector<1x16x4xf32>,
    %c0_182 = arith.constant 0 : index
    %c16_183 = arith.constant 16 : index
    %198 = vector.load %arg6[%c0_182, %c16_183] : memref<16x48xf32, #tpu.memory_space<vmem>>, vector<16x4xf32>
    %199 = vector.extract_strided_slice %1 {offsets = [0, 16], sizes = [16, 4], strides = [1, 1]} : vector<16x32xf32> to vector<16x4xf32>
    %200 = arith.addf %198, %199 : vector<16x4xf32>
    %c0_184 = arith.constant 0 : index
    %c16_185 = arith.constant 16 : index
    %201 = vector.load %arg6[%c0_184, %c16_185] : memref<16x48xf32, #tpu.memory_space<vmem>>, vector<16x4xf32>
    tpu.vector_store %arg6[%c0_184, %c16_185], %200 {strides = array<i32>} : memref<16x48xf32, #tpu.memory_space<vmem>>, vector<16x4xf32>,
    %c0_186 = arith.constant 0 : index
    %c16_187 = arith.constant 16 : index
    %202 = vector.load %arg6[%c0_186, %c16_187] : memref<16x48xf32, #tpu.memory_space<vmem>>, vector<16x4xf32>
    %203 = vector.broadcast %158 : vector<1x4xf32> to vector<16x4xf32>
    %204 = arith.addf %202, %203 : vector<16x4xf32>
    %c0_188 = arith.constant 0 : index
    %c20 = arith.constant 20 : index
    %205 = vector.load %arg6[%c0_188, %c20] : memref<16x48xf32, #tpu.memory_space<vmem>>, vector<16x4xf32>
    %206 = vector.broadcast %159 : vector<1x4xf32> to vector<16x4xf32>
    %207 = arith.addf %205, %206 : vector<16x4xf32>
    %208 = arith.negf %207 : vector<16x4xf32>
    %209 = math.exp %208 : vector<16x4xf32>
    %cst_189 = arith.constant 1.000000e+00 : f32
    %210 = vector.broadcast %cst_189 : f32 to vector<16x4xf32>
    %211 = arith.addf %210, %209 : vector<16x4xf32>
    %212 = arith.divf %210, %211 : vector<16x4xf32>
    %213 = arith.mulf %204, %212 : vector<16x4xf32>
    %c0_190 = arith.constant 0 : index
    %c0_191 = arith.constant 0 : index
    %c8_192 = arith.constant 8 : index
    %214 = vector.load %arg5[%c0_190, %c0_191, %c8_192] : memref<1x16x24xf32, #tpu.memory_space<vmem>>, vector<1x16x4xf32>
    %215 = vector.shape_cast %214 : vector<1x16x4xf32> to vector<16x4xf32>
    %216 = vector.shape_cast %213 : vector<16x4xf32> to vector<1x16x4xf32>
    tpu.vector_store %arg5[%c0_190, %c0_191, %c8_192], %216 {strides = array<i32>} : memref<1x16x24xf32, #tpu.memory_space<vmem>>, vector<1x16x4xf32>,
    %c0_193 = arith.constant 0 : index
    %c24_194 = arith.constant 24 : index
    %217 = vector.load %arg6[%c0_193, %c24_194] : memref<16x48xf32, #tpu.memory_space<vmem>>, vector<16x4xf32>
    %218 = vector.extract_strided_slice %1 {offsets = [0, 20], sizes = [16, 4], strides = [1, 1]} : vector<16x32xf32> to vector<16x4xf32>
    %219 = arith.addf %217, %218 : vector<16x4xf32>
    %c0_195 = arith.constant 0 : index
    %c24_196 = arith.constant 24 : index
    %220 = vector.load %arg6[%c0_195, %c24_196] : memref<16x48xf32, #tpu.memory_space<vmem>>, vector<16x4xf32>
    tpu.vector_store %arg6[%c0_195, %c24_196], %219 {strides = array<i32>} : memref<16x48xf32, #tpu.memory_space<vmem>>, vector<16x4xf32>,
    %c0_197 = arith.constant 0 : index
    %c24_198 = arith.constant 24 : index
    %221 = vector.load %arg6[%c0_197, %c24_198] : memref<16x48xf32, #tpu.memory_space<vmem>>, vector<16x4xf32>
    %222 = vector.broadcast %158 : vector<1x4xf32> to vector<16x4xf32>
    %223 = arith.addf %221, %222 : vector<16x4xf32>
    %c0_199 = arith.constant 0 : index
    %c28 = arith.constant 28 : index
    %224 = vector.load %arg6[%c0_199, %c28] : memref<16x48xf32, #tpu.memory_space<vmem>>, vector<16x4xf32>
    %225 = vector.broadcast %159 : vector<1x4xf32> to vector<16x4xf32>
    %226 = arith.addf %224, %225 : vector<16x4xf32>
    %227 = arith.negf %226 : vector<16x4xf32>
    %228 = math.exp %227 : vector<16x4xf32>
    %cst_200 = arith.constant 1.000000e+00 : f32
    %229 = vector.broadcast %cst_200 : f32 to vector<16x4xf32>
    %230 = arith.addf %229, %228 : vector<16x4xf32>
    %231 = arith.divf %229, %230 : vector<16x4xf32>
    %232 = arith.mulf %223, %231 : vector<16x4xf32>
    %c0_201 = arith.constant 0 : index
    %c0_202 = arith.constant 0 : index
    %c12_203 = arith.constant 12 : index
    %233 = vector.load %arg5[%c0_201, %c0_202, %c12_203] : memref<1x16x24xf32, #tpu.memory_space<vmem>>, vector<1x16x4xf32>
    %234 = vector.shape_cast %233 : vector<1x16x4xf32> to vector<16x4xf32>
    %235 = vector.shape_cast %232 : vector<16x4xf32> to vector<1x16x4xf32>
    tpu.vector_store %arg5[%c0_201, %c0_202, %c12_203], %235 {strides = array<i32>} : memref<1x16x24xf32, #tpu.memory_space<vmem>>, vector<1x16x4xf32>,
    %c0_204 = arith.constant 0 : index
    %c32_205 = arith.constant 32 : index
    %236 = vector.load %arg6[%c0_204, %c32_205] : memref<16x48xf32, #tpu.memory_space<vmem>>, vector<16x4xf32>
    %237 = vector.extract_strided_slice %1 {offsets = [0, 24], sizes = [16, 4], strides = [1, 1]} : vector<16x32xf32> to vector<16x4xf32>
    %238 = arith.addf %236, %237 : vector<16x4xf32>
    %c0_206 = arith.constant 0 : index
    %c32_207 = arith.constant 32 : index
    %239 = vector.load %arg6[%c0_206, %c32_207] : memref<16x48xf32, #tpu.memory_space<vmem>>, vector<16x4xf32>
    tpu.vector_store %arg6[%c0_206, %c32_207], %238 {strides = array<i32>} : memref<16x48xf32, #tpu.memory_space<vmem>>, vector<16x4xf32>,
    %c0_208 = arith.constant 0 : index
    %c32_209 = arith.constant 32 : index
    %240 = vector.load %arg6[%c0_208, %c32_209] : memref<16x48xf32, #tpu.memory_space<vmem>>, vector<16x4xf32>
    %241 = vector.broadcast %158 : vector<1x4xf32> to vector<16x4xf32>
    %242 = arith.addf %240, %241 : vector<16x4xf32>
    %c0_210 = arith.constant 0 : index
    %c36 = arith.constant 36 : index
    %243 = vector.load %arg6[%c0_210, %c36] : memref<16x48xf32, #tpu.memory_space<vmem>>, vector<16x4xf32>
    %244 = vector.broadcast %159 : vector<1x4xf32> to vector<16x4xf32>
    %245 = arith.addf %243, %244 : vector<16x4xf32>
    %246 = arith.negf %245 : vector<16x4xf32>
    %247 = math.exp %246 : vector<16x4xf32>
    %cst_211 = arith.constant 1.000000e+00 : f32
    %248 = vector.broadcast %cst_211 : f32 to vector<16x4xf32>
    %249 = arith.addf %248, %247 : vector<16x4xf32>
    %250 = arith.divf %248, %249 : vector<16x4xf32>
    %251 = arith.mulf %242, %250 : vector<16x4xf32>
    %c0_212 = arith.constant 0 : index
    %c0_213 = arith.constant 0 : index
    %c16_214 = arith.constant 16 : index
    %252 = vector.load %arg5[%c0_212, %c0_213, %c16_214] : memref<1x16x24xf32, #tpu.memory_space<vmem>>, vector<1x16x4xf32>
    %253 = vector.shape_cast %252 : vector<1x16x4xf32> to vector<16x4xf32>
    %254 = vector.shape_cast %251 : vector<16x4xf32> to vector<1x16x4xf32>
    tpu.vector_store %arg5[%c0_212, %c0_213, %c16_214], %254 {strides = array<i32>} : memref<1x16x24xf32, #tpu.memory_space<vmem>>, vector<1x16x4xf32>,
    %c0_215 = arith.constant 0 : index
    %c40_216 = arith.constant 40 : index
    %255 = vector.load %arg6[%c0_215, %c40_216] : memref<16x48xf32, #tpu.memory_space<vmem>>, vector<16x4xf32>
    %256 = vector.extract_strided_slice %1 {offsets = [0, 28], sizes = [16, 4], strides = [1, 1]} : vector<16x32xf32> to vector<16x4xf32>
    %257 = arith.addf %255, %256 : vector<16x4xf32>
    %c0_217 = arith.constant 0 : index
    %c40_218 = arith.constant 40 : index
    %258 = vector.load %arg6[%c0_217, %c40_218] : memref<16x48xf32, #tpu.memory_space<vmem>>, vector<16x4xf32>
    tpu.vector_store %arg6[%c0_217, %c40_218], %257 {strides = array<i32>} : memref<16x48xf32, #tpu.memory_space<vmem>>, vector<16x4xf32>,
    %c0_219 = arith.constant 0 : index
    %c40_220 = arith.constant 40 : index
    %259 = vector.load %arg6[%c0_219, %c40_220] : memref<16x48xf32, #tpu.memory_space<vmem>>, vector<16x4xf32>
    %260 = vector.broadcast %158 : vector<1x4xf32> to vector<16x4xf32>
    %261 = arith.addf %259, %260 : vector<16x4xf32>
    %c0_221 = arith.constant 0 : index
    %c44 = arith.constant 44 : index
    %262 = vector.load %arg6[%c0_221, %c44] : memref<16x48xf32, #tpu.memory_space<vmem>>, vector<16x4xf32>
    %263 = vector.broadcast %159 : vector<1x4xf32> to vector<16x4xf32>
    %264 = arith.addf %262, %263 : vector<16x4xf32>
    %265 = arith.negf %264 : vector<16x4xf32>
    %266 = math.exp %265 : vector<16x4xf32>
    %cst_222 = arith.constant 1.000000e+00 : f32
    %267 = vector.broadcast %cst_222 : f32 to vector<16x4xf32>
    %268 = arith.addf %267, %266 : vector<16x4xf32>
    %269 = arith.divf %267, %268 : vector<16x4xf32>
    %270 = arith.mulf %261, %269 : vector<16x4xf32>
    %c0_223 = arith.constant 0 : index
    %c0_224 = arith.constant 0 : index
    %c20_225 = arith.constant 20 : index
    %271 = vector.load %arg5[%c0_223, %c0_224, %c20_225] : memref<1x16x24xf32, #tpu.memory_space<vmem>>, vector<1x16x4xf32>
    %272 = vector.shape_cast %271 : vector<1x16x4xf32> to vector<16x4xf32>
    %273 = vector.shape_cast %270 : vector<16x4xf32> to vector<1x16x4xf32>
    tpu.vector_store %arg5[%c0_223, %c0_224, %c20_225], %273 {strides = array<i32>} : memref<1x16x24xf32, #tpu.memory_space<vmem>>, vector<1x16x4xf32>,
    return
  }
  func.func @transform_0(%arg0: i32) -> (i32, i32, i32) {
    %c0_i32 = arith.constant 0 : i32
    %c0_i32_0 = arith.constant 0 : i32
    %c0_i32_1 = arith.constant 0 : i32
    return %arg0, %c0_i32, %c0_i32_0 : i32, i32, i32
  }
  func.func @transform_1(%arg0: i32) -> (i32, i32, i32) {
    %c0_i32 = arith.constant 0 : i32
    %c0_i32_0 = arith.constant 0 : i32
    %c0_i32_1 = arith.constant 0 : i32
    %c0_i32_2 = arith.constant 0 : i32
    return %c0_i32, %c0_i32_0, %c0_i32_1 : i32, i32, i32
  }
  func.func @transform_2(%arg0: i32) -> (i32, i32, i32) {
    %c0_i32 = arith.constant 0 : i32
    %c0_i32_0 = arith.constant 0 : i32
    %c0_i32_1 = arith.constant 0 : i32
    %c0_i32_2 = arith.constant 0 : i32
    return %c0_i32, %c0_i32_0, %c0_i32_1 : i32, i32, i32
  }
  func.func @transform_3(%arg0: i32) -> (i32, i32) {
    %c0_i32 = arith.constant 0 : i32
    %c0_i32_0 = arith.constant 0 : i32
    %c0_i32_1 = arith.constant 0 : i32
    return %c0_i32, %c0_i32_0 : i32, i32
  }
  func.func @transform_4(%arg0: i32) -> (i32, i32, i32) {
    %c0_i32 = arith.constant 0 : i32
    %c0_i32_0 = arith.constant 0 : i32
    %c0_i32_1 = arith.constant 0 : i32
    return %arg0, %c0_i32, %c0_i32_0 : i32, i32, i32
  }
}

</mosaic_0001>

<llo_original>
// kernel: tpu_custom_call.1
$region0: #{tpu_custom_call.1}
  #allocation0 [shape = 'u32[]', space=smem, size = 0x4, offset = 0x4, fixed_abs, tag = 'smem constant byte address 0x4 - core index']
  #allocation1 [shape = 'u32[144,128]{1,0:T(1,128)}', space=vmem, size = 0x12000, scoped, tag = 'internal scratch']
  #allocation2 [shape = 'f32[16,48]{1,0:T(8,128)}', space=vmem, size = 0x2000, scoped, tag = 'scratch operand']
  %s0 = inlined_call_operand.vmem [shape: f32[2,16,32], index: 0, kind: input, shape index: {}]
  %s1 = inlined_call_operand.vmem [shape: f32[2,16,16], index: 1, kind: input, shape index: {}]
  %s2 = inlined_call_operand.vmem [shape: f32[5,12,8], index: 2, kind: input, shape index: {}]
  %s3 = inlined_call_operand.vmem [shape: f32[1,8], index: 3, kind: input, shape index: {}]
  %s4 = inlined_call_operand.hbm [shape: f32[2,16,24], index: 4, kind: output, shape index: {}]
  %s5 = sld [smem:[#allocation0]]
  $region49: #{tpu_custom_call.1} parent=0
    _
  %s7 = ssub.s32 1, %s5
  %s8 = scalar_select 0, %s7, %s5
  $region1: #{tpu_custom_call.1} parent=0
    #allocation3 [shape = 'u8[16384]{0}', space=vmem, size = 0x4000, scoped, tag = 'output window, operand 0']
    #allocation4 [shape = 's32[2]{0}', space=sflag, size = 0x8, scoped, tag = 'scoped memory for tpu_custom_call.1']
    %9 = vsyncpa [#allocation4], 0
    %s10 = scalar_lea.sflag [#allocation4], 1
    %11 = vsyncpa %s10, 0
    loop: start=0, step=1, limit=4
    $region2: #{tpu_custom_call.1} parent=1 // loop_pre_header
      _
    $region3: #{tpu_custom_call.1} parent=1 // loop_header
      %s13 = sphi 0, %s17
      %p14 = scmp.ge.s32.totalorder %s13, 4
      %s23 = sphi 0, %s25
      %s26 = sphi 0, %s23
      %s27 = sphi 0, %s26
      %s43 = sphi 0, %s27
      %s47 = sphi 0, %s47
      %s49 = sphi 0, %s47
      %s50 = sphi 0, %s49
      %s64 = sphi 0, %s50
      %s68 = sphi 0, %s68
      %s70 = sphi 0, %s68
      %s71 = sphi 0, %s70
      %s85 = sphi 0, %s71
      %s89 = sphi 0, %s89
      %s91 = sphi 0, %s89
      %s92 = sphi 0, %s91
      %s106 = sphi 0, %s92
      %s112 = sphi 0, %s114
      %s115 = sphi 0, %s112
      %s116 = sphi 0, %s115
      %s132 = sphi 0, %s116
    $region4: #{tpu_custom_call.1} parent=1 // loop_header_branch
      %16 = sbr.rel (%p14) target = $region8
    $region5: #{tpu_custom_call.1} parent=1 // loop_body
      %s18 = ssub.s32 %s13, 1
      %s19 = ssub.s32 %s13, 2
      %s20 = sadd.s32 %s13, 1
      %s21 = ssub.s32 %s13, %s20
      %p22 = scmp.eq.s32.totalorder %s21, 0
      %s24 = sadd.s32 %s23, 1
      %s25 = scalar_select %p22, %s23, %s24
      %p28 = pneg %p22
      %p29 = scmp.eq.s32.totalorder %s13, 1
      %p30 = por %p28, %p29
      %p31 = scmp.ne.s32.totalorder %s23, %s26
      %p32 = scmp.eq.s32.totalorder %s13, 0
      %p33 = por %p31, %p32
      %p34 = scmp.ne.s32.totalorder %s23, %s26
      %p35 = scmp.eq.s32.totalorder %s18, 1
      %p36 = por %p34, %p35
      %p37 = scmp.ne.s32.totalorder %s26, %s27
      %p38 = scmp.eq.s32.totalorder %s18, 0
      %p39 = por %p37, %p38
      %p40 = scmp.ne.s32.totalorder %s26, %s27
      %p41 = scmp.eq.s32.totalorder %s19, 1
      %p42 = por %p40, %p41
      %p44 = scmp.ne.s32.totalorder %s27, %s43
      %p45 = scmp.eq.s32.totalorder %s19, 0
      %p46 = por %p44, %p45
      %s48 = sadd.s32 %s47, 1
      %p51 = scmp.eq.s32.totalorder %s13, 1
      %p52 = scmp.ne.s32.totalorder %s47, %s49
      %p53 = scmp.eq.s32.totalorder %s13, 0
      %p54 = por %p52, %p53
      %p55 = scmp.ne.s32.totalorder %s47, %s49
      %p56 = scmp.eq.s32.totalorder %s18, 1
      %p57 = por %p55, %p56
      %p58 = scmp.ne.s32.totalorder %s49, %s50
      %p59 = scmp.eq.s32.totalorder %s18, 0
      %p60 = por %p58, %p59
      %p61 = scmp.ne.s32.totalorder %s49, %s50
      %p62 = scmp.eq.s32.totalorder %s19, 1
      %p63 = por %p61, %p62
      %p65 = scmp.ne.s32.totalorder %s50, %s64
      %p66 = scmp.eq.s32.totalorder %s19, 0
      %p67 = por %p65, %p66
      %s69 = sadd.s32 %s68, 1
      %p72 = scmp.eq.s32.totalorder %s13, 1
      %p73 = scmp.ne.s32.totalorder %s68, %s70
      %p74 = scmp.eq.s32.totalorder %s13, 0
      %p75 = por %p73, %p74
      %p76 = scmp.ne.s32.totalorder %s68, %s70
      %p77 = scmp.eq.s32.totalorder %s18, 1
      %p78 = por %p76, %p77
      %p79 = scmp.ne.s32.totalorder %s70, %s71
      %p80 = scmp.eq.s32.totalorder %s18, 0
      %p81 = por %p79, %p80
      %p82 = scmp.ne.s32.totalorder %s70, %s71
      %p83 = scmp.eq.s32.totalorder %s19, 1
      %p84 = por %p82, %p83
      %p86 = scmp.ne.s32.totalorder %s71, %s85
      %p87 = scmp.eq.s32.totalorder %s19, 0
      %p88 = por %p86, %p87
      %s90 = sadd.s32 %s89, 1
      %p93 = scmp.eq.s32.totalorder %s13, 1
      %p94 = scmp.ne.s32.totalorder %s89, %s91
      %p95 = scmp.eq.s32.totalorder %s13, 0
      %p96 = por %p94, %p95
      %p97 = scmp.ne.s32.totalorder %s89, %s91
      %p98 = scmp.eq.s32.totalorder %s18, 1
      %p99 = por %p97, %p98
      %p100 = scmp.ne.s32.totalorder %s91, %s92
      %p101 = scmp.eq.s32.totalorder %s18, 0
      %p102 = por %p100, %p101
      %p103 = scmp.ne.s32.totalorder %s91, %s92
      %p104 = scmp.eq.s32.totalorder %s19, 1
      %p105 = por %p103, %p104
      %p107 = scmp.ne.s32.totalorder %s92, %s106
      %p108 = scmp.eq.s32.totalorder %s19, 0
      %p109 = por %p107, %p108
      %s110 = ssub.s32 %s13, %s20
      %p111 = scmp.eq.s32.totalorder %s110, 0
      %s113 = sadd.s32 %s112, 1
      %s114 = scalar_select %p111, %s112, %s113
      %p117 = pneg %p111
      %p118 = scmp.eq.s32.totalorder %s13, 1
      %p119 = por %p117, %p118
      %p120 = scmp.ne.s32.totalorder %s112, %s115
      %p121 = scmp.eq.s32.totalorder %s13, 0
      %p122 = por %p120, %p121
      %p123 = scmp.ne.s32.totalorder %s112, %s115
      %p124 = scmp.eq.s32.totalorder %s18, 1
      %p125 = por %p123, %p124
      %p126 = scmp.ne.s32.totalorder %s115, %s116
      %p127 = scmp.eq.s32.totalorder %s18, 0
      %p128 = por %p126, %p127
      %p129 = scmp.ne.s32.totalorder %s115, %s116
      %p130 = scmp.eq.s32.totalorder %s19, 1
      %p131 = por %p129, %p130
      %p133 = scmp.ne.s32.totalorder %s116, %s132
      %p134 = scmp.eq.s32.totalorder %s19, 0
      %p135 = por %p133, %p134
      %p136 = scmp.le.s32.totalorder 1, %s13
      %p137 = scmp.lt.s32.totalorder %s13, 3
      %p138 = pnand %p136, %p137
      %p139 = pneg %p138
      // Predicated region
      $region9: #{tpu_custom_call.1} parent=5 // pred_check
        _
      $region10: #{tpu_custom_call.1} parent=5 // pred_check_branch
        %141 = sbr.rel (%p138) target = $region12
      $region11: #{tpu_custom_call.1} parent=5 // pred_region
        %s142 = ssub.s32 %s13, 1
        // Predicated region
        $region13: #{tpu_custom_call.1} parent=11 // pred_check
          %p143 = pneg %p60
        $region14: #{tpu_custom_call.1} parent=11 // pred_check_branch
          %145 = sbr.rel (%p143) target = $region16
        $region15: #{tpu_custom_call.1} parent=11 // pred_region
          _
        $region16: #{tpu_custom_call.1} parent=11 // pred_fallthru
          _
        // Predicated region
        $region17: #{tpu_custom_call.1} parent=11 // pred_check
          %p146 = pneg %p81
        $region18: #{tpu_custom_call.1} parent=11 // pred_check_branch
          %148 = sbr.rel (%p146) target = $region20
        $region19: #{tpu_custom_call.1} parent=11 // pred_region
          _
        $region20: #{tpu_custom_call.1} parent=11 // pred_fallthru
          _
        // Predicated region
        $region21: #{tpu_custom_call.1} parent=11 // pred_check
          %p149 = pneg %p102
        $region22: #{tpu_custom_call.1} parent=11 // pred_check_branch
          %151 = sbr.rel (%p149) target = $region24
        $region23: #{tpu_custom_call.1} parent=11 // pred_region
          _
        $region24: #{tpu_custom_call.1} parent=11 // pred_fallthru
          _
      $region12: #{tpu_custom_call.1} parent=5 // pred_fallthru
        _
      %p152 = scmp.lt.s32.totalorder %s13, 2
      // Predicated region
      $region25: #{tpu_custom_call.1} parent=5 // pred_check
        %p153 = pneg %p152
      $region26: #{tpu_custom_call.1} parent=5 // pred_check_branch
        %155 = sbr.rel (%p153) target = $region28
      $region27: #{tpu_custom_call.1} parent=5 // pred_region
        // Predicated region
        $region29: #{tpu_custom_call.1} parent=27 // pred_check
          %p156 = pneg %p33
        $region30: #{tpu_custom_call.1} parent=27 // pred_check_branch
          %158 = sbr.rel (%p156) target = $region32
        $region31: #{tpu_custom_call.1} parent=27 // pred_region
          %p159 = scmp.lt.s32.totalorder %s13, 1
          %s160 = scalar_select %p159, %s13, 1
          %s161 = smul.addr %s160, 2
          %s162 = smul.addr %s161, 8
          %s163 = scalar_lea.vmem %s0, %s162
        $region32: #{tpu_custom_call.1} parent=27 // pred_fallthru
          _
      $region28: #{tpu_custom_call.1} parent=5 // pred_fallthru
        _
      %p164 = scmp.le.s32.totalorder 1, %s13
      %p165 = scmp.lt.s32.totalorder %s13, 3
      %p166 = pnand %p164, %p165
      %p167 = pneg %p166
      // Predicated region
      $region33: #{tpu_custom_call.1} parent=5 // pred_check
        _
      $region34: #{tpu_custom_call.1} parent=5 // pred_check_branch
        %169 = sbr.rel (%p166) target = $region36
      $region35: #{tpu_custom_call.1} parent=5 // pred_region
        %s170 = ssub.s32 %s13, 1
        %p171 = scmp.lt.s32.totalorder %s18, 1
        %s172 = scalar_select %p171, %s18, 1
        %s173 = smul.addr %s172, 2
        %s174 = smul.addr %s173, 8
        %s175 = scalar_lea.vmem %s0, %s174
        %p176 = pneg %p39
        %p177 = pneg %p36
        %p178 = pneg %p60
        %p179 = pneg %p57
        %p180 = pneg %p81
        %p181 = pneg %p78
        %p182 = pneg %p102
        %p183 = pneg %p99
        %p184 = pneg %p128
        %p185 = pneg %p125
        %s186 = sand.u32 %s115, 1
        %s187 = scalar_lea.sflag [#allocation4], %s186
        %s188 = sand.u32 %s115, 1
        %s189 = smul.addr %s188, 16
        %s190 = scalar_lea.vmem [#allocation3], %s189
        %p191 = scmp.lt.s32.totalorder %s18, 1
        %s192 = scalar_select %p191, %s18, 1
        %s193 = smul.addr %s192, 2
        %s194 = smul.addr %s193, 8
        %s195 = scalar_lea.vmem %s0, %s194
        %v196 = vld [vmem:[%s195] sm:$0xff]
        %v197 = vld [vmem:[%s195 + $0x8] sm:$0xff]
        %v198 = vld [vmem:[%s2] sm:$0xff]
        %v199 = vld [vmem:[%s2 + $0x8] sm:$0xf]
        %vm200 = vcmask 97280
        %v202 = vsel %vm200, %v196, 0
        %v205 = vsel %vm200, %v197, 0
        %vm207 = vcmask 1043456
        %v209 = vsel %vm207, %v199, 0
        %211 = vmatprep.subr.mxu0 0.0
        %212 = vmatpush1.msra.mxu0 0.0
        %213 = vmatprep.subr.mxu0 0.0
        %214 = vmatpush1.msra.mxu0 0.0
        %215 = vmatprep.subr.mxu0 0.0
        %216 = vmatpush1.msra.mxu0 0.0
        %217 = vmatprep.subr.mxu0 0.0
        %218 = vmatpush1.msra.mxu0 0.0
        %219 = vmatprep.subr.mxu0 0.0
        %220 = vmatpush1.msra.mxu0 0.0
        %221 = vmatprep.subr.mxu0 0.0
        %222 = vmatpush1.msra.mxu0 0.0
        %223 = vmatprep.subr.mxu0 0.0
        %224 = vmatpush1.msra.mxu0 0.0
        %225 = vmatprep.subr.mxu0 0.0
        %226 = vmatpush1.msra.mxu0 0.0
        %227 = vmatprep.subr.mxu0 0.0
        %228 = vmatpush1.msra.mxu0 0.0
        %229 = vmatprep.subr.mxu0 0.0
        %230 = vmatpush1.msra.mxu0 0.0
        %231 = vmatprep.subr.mxu0 0.0
        %232 = vmatpush1.msra.mxu0 0.0
        %233 = vmatprep.subr.mxu0 0.0
        %234 = vmatpush1.msra.mxu0 0.0
        %235 = vmatprep.subr.mxu0 0.0
        %236 = vmatpush1.msra.mxu0 0.0
        %237 = vmatprep.subr.mxu0 0.0
        %238 = vmatpush1.msra.mxu0 0.0
        %239 = vmatprep.subr.mxu0 0.0
        %240 = vmatpush1.msra.mxu0 %v209
        %241 = vmatprep.subr.mxu0 0.0
        %242 = vmatpush1.msra.mxu0 %v198
        %243 = vmatprep.subr.mxu0 0.0
        %244 = vmatpush2.msra.mxu0 0.0
        %245 = vmatprep.subr.mxu0 0.0
        %246 = vmatpush2.msra.mxu0 0.0
        %247 = vmatprep.subr.mxu0 0.0
        %248 = vmatpush2.msra.mxu0 0.0
        %249 = vmatprep.subr.mxu0 0.0
        %250 = vmatpush2.msra.mxu0 0.0
        %251 = vmatprep.subr.mxu0 0.0
        %252 = vmatpush2.msra.mxu0 0.0
        %253 = vmatprep.subr.mxu0 0.0
        %254 = vmatpush2.msra.mxu0 0.0
        %255 = vmatprep.subr.mxu0 0.0
        %256 = vmatpush2.msra.mxu0 0.0
        %257 = vmatprep.subr.mxu0 0.0
        %258 = vmatpush2.msra.mxu0 0.0
        %259 = vmatprep.subr.mxu0 0.0
        %260 = vmatpush2.msra.mxu0 0.0
        %261 = vmatprep.subr.mxu0 0.0
        %262 = vmatpush2.msra.mxu0 0.0
        %263 = vmatprep.subr.mxu0 0.0
        %264 = vmatpush2.msra.mxu0 0.0
        %265 = vmatprep.subr.mxu0 0.0
        %266 = vmatpush2.msra.mxu0 0.0
        %267 = vmatprep.subr.mxu0 0.0
        %268 = vmatpush2.msra.mxu0 0.0
        %269 = vmatprep.subr.mxu0 0.0
        %270 = vmatpush2.msra.mxu0 0.0
        %271 = vmatprep.subr.mxu0 0.0
        %272 = vmatpush2.msra.mxu0 0.0
        %273 = vmatprep.subr.mxu0 0.0
        %274 = vmatpush2.msra.mxu0 0.0
        %275 = vmatprep.mubr.f32.mxu0 0.0
        %276 = vmatmul.mubr.f32.gmra.mxu0 %v202
        %v277 = vpop.f32.mrf.mxu0
        %v278 = vadd.f32 0.0, %v277
        %v279 = vpop.f32.mrf.mxu0
        %280 = vmatprep.mubr.f32.mxu0 0.0
        %281 = vmatmul.mubr.f32.gmra.mxu0 %v205
        %v282 = vpop.f32.mrf.mxu0
        %v283 = vadd.f32 0.0, %v282
        %v284 = vpop.f32.mrf.mxu0
        %285 = vdwg.mxu0
        %vm286 = vcmask 64512
        %287 = vst.msk [vmem:[#allocation2] sm:$0xff] %vm286, %v278
        %288 = vst.msk [vmem:[#allocation2 + $0x8] sm:$0xff] %vm286, %v283
        %289 = vrot.lane.b32.xlu0 %v196, 124
        %v290 = vpop.permute.xlu0 %289
        %291 = vrot.lane.b32.xlu0 %v197, 124
        %v292 = vpop.permute.xlu0 %291
        %v293 = vsel %vm200, %v290, 0
        %v295 = vsel %vm200, %v292, 0
        %297 = vmatprep.subr.mxu0 0.0
        %298 = vmatpush1.msra.mxu0 0.0
        %299 = vmatprep.subr.mxu0 0.0
        %300 = vmatpush1.msra.mxu0 0.0
        %301 = vmatprep.subr.mxu0 0.0
        %302 = vmatpush1.msra.mxu0 0.0
        %303 = vmatprep.subr.mxu0 0.0
        %304 = vmatpush1.msra.mxu0 0.0
        %305 = vmatprep.subr.mxu0 0.0
        %306 = vmatpush1.msra.mxu0 0.0
        %307 = vmatprep.subr.mxu0 0.0
        %308 = vmatpush1.msra.mxu0 0.0
        %309 = vmatprep.subr.mxu0 0.0
        %310 = vmatpush1.msra.mxu0 0.0
        %311 = vmatprep.subr.mxu0 0.0
        %312 = vmatpush1.msra.mxu0 0.0
        %313 = vmatprep.subr.mxu0 0.0
        %314 = vmatpush1.msra.mxu0 0.0
        %315 = vmatprep.subr.mxu0 0.0
        %316 = vmatpush1.msra.mxu0 0.0
        %317 = vmatprep.subr.mxu0 0.0
        %318 = vmatpush1.msra.mxu0 0.0
        %319 = vmatprep.subr.mxu0 0.0
        %320 = vmatpush1.msra.mxu0 0.0
        %321 = vmatprep.subr.mxu0 0.0
        %322 = vmatpush1.msra.mxu0 0.0
        %323 = vmatprep.subr.mxu0 0.0
        %324 = vmatpush1.msra.mxu0 0.0
        %325 = vmatprep.subr.mxu0 0.0
        %326 = vmatpush1.msra.mxu0 %v209
        %327 = vmatprep.subr.mxu0 0.0
        %328 = vmatpush1.msra.mxu0 %v198
        %329 = vmatprep.subr.mxu0 0.0
        %330 = vmatpush2.msra.mxu0 0.0
        %331 = vmatprep.subr.mxu0 0.0
        %332 = vmatpush2.msra.mxu0 0.0
        %333 = vmatprep.subr.mxu0 0.0
        %334 = vmatpush2.msra.mxu0 0.0
        %335 = vmatprep.subr.mxu0 0.0
        %336 = vmatpush2.msra.mxu0 0.0
        %337 = vmatprep.subr.mxu0 0.0
        %338 = vmatpush2.msra.mxu0 0.0
        %339 = vmatprep.subr.mxu0 0.0
        %340 = vmatpush2.msra.mxu0 0.0
        %341 = vmatprep.subr.mxu0 0.0
        %342 = vmatpush2.msra.mxu0 0.0
        %343 = vmatprep.subr.mxu0 0.0
        %344 = vmatpush2.msra.mxu0 0.0
        %345 = vmatprep.subr.mxu0 0.0
        %346 = vmatpush2.msra.mxu0 0.0
        %347 = vmatprep.subr.mxu0 0.0
        %348 = vmatpush2.msra.mxu0 0.0
        %349 = vmatprep.subr.mxu0 0.0
        %350 = vmatpush2.msra.mxu0 0.0
        %351 = vmatprep.subr.mxu0 0.0
        %352 = vmatpush2.msra.mxu0 0.0
        %353 = vmatprep.subr.mxu0 0.0
        %354 = vmatpush2.msra.mxu0 0.0
        %355 = vmatprep.subr.mxu0 0.0
        %356 = vmatpush2.msra.mxu0 0.0
        %357 = vmatprep.subr.mxu0 0.0
        %358 = vmatpush2.msra.mxu0 0.0
        %359 = vmatprep.subr.mxu0 0.0
        %360 = vmatpush2.msra.mxu0 0.0
        %361 = vmatprep.mubr.f32.mxu0 0.0
        %362 = vmatmul.mubr.f32.gmra.mxu0 %v293
        %v363 = vpop.f32.mrf.mxu0
        %v364 = vadd.f32 0.0, %v363
        %v365 = vpop.f32.mrf.mxu0
        %366 = vmatprep.mubr.f32.mxu0 0.0
        %367 = vmatmul.mubr.f32.gmra.mxu0 %v295
        %v368 = vpop.f32.mrf.mxu0
        %v369 = vadd.f32 0.0, %v368
        %v370 = vpop.f32.mrf.mxu0
        %371 = vdwg.mxu0
        %374 = vrot.lane.b32.xlu0 %v364, 8
        %v375 = vpop.permute.xlu0 %374
        %376 = vrot.lane.b32.xlu0 %v369, 8
        %v377 = vpop.permute.xlu0 %376
        %vm380 = vcmask 130112
        %381 = vst.msk [vmem:[#allocation2] sm:$0xff] %vm380, %v375
        %382 = vst.msk [vmem:[#allocation2 + $0x8] sm:$0xff] %vm380, %v377
        %383 = vrot.lane.b32.xlu0 %v196, 120
        %v384 = vpop.permute.xlu0 %383
        %385 = vrot.lane.b32.xlu0 %v197, 120
        %v386 = vpop.permute.xlu0 %385
        %v387 = vsel %vm200, %v384, 0
        %v389 = vsel %vm200, %v386, 0
        %391 = vmatprep.subr.mxu0 0.0
        %392 = vmatpush1.msra.mxu0 0.0
        %393 = vmatprep.subr.mxu0 0.0
        %394 = vmatpush1.msra.mxu0 0.0
        %395 = vmatprep.subr.mxu0 0.0
        %396 = vmatpush1.msra.mxu0 0.0
        %397 = vmatprep.subr.mxu0 0.0
        %398 = vmatpush1.msra.mxu0 0.0
        %399 = vmatprep.subr.mxu0 0.0
        %400 = vmatpush1.msra.mxu0 0.0
        %401 = vmatprep.subr.mxu0 0.0
        %402 = vmatpush1.msra.mxu0 0.0
        %403 = vmatprep.subr.mxu0 0.0
        %404 = vmatpush1.msra.mxu0 0.0
        %405 = vmatprep.subr.mxu0 0.0
        %406 = vmatpush1.msra.mxu0 0.0
        %407 = vmatprep.subr.mxu0 0.0
        %408 = vmatpush1.msra.mxu0 0.0
        %409 = vmatprep.subr.mxu0 0.0
        %410 = vmatpush1.msra.mxu0 0.0
        %411 = vmatprep.subr.mxu0 0.0
        %412 = vmatpush1.msra.mxu0 0.0
        %413 = vmatprep.subr.mxu0 0.0
        %414 = vmatpush1.msra.mxu0 0.0
        %415 = vmatprep.subr.mxu0 0.0
        %416 = vmatpush1.msra.mxu0 0.0
        %417 = vmatprep.subr.mxu0 0.0
        %418 = vmatpush1.msra.mxu0 0.0
        %419 = vmatprep.subr.mxu0 0.0
        %420 = vmatpush1.msra.mxu0 %v209
        %421 = vmatprep.subr.mxu0 0.0
        %422 = vmatpush1.msra.mxu0 %v198
        %423 = vmatprep.subr.mxu0 0.0
        %424 = vmatpush2.msra.mxu0 0.0
        %425 = vmatprep.subr.mxu0 0.0
        %426 = vmatpush2.msra.mxu0 0.0
        %427 = vmatprep.subr.mxu0 0.0
        %428 = vmatpush2.msra.mxu0 0.0
        %429 = vmatprep.subr.mxu0 0.0
        %430 = vmatpush2.msra.mxu0 0.0
        %431 = vmatprep.subr.mxu0 0.0
        %432 = vmatpush2.msra.mxu0 0.0
        %433 = vmatprep.subr.mxu0 0.0
        %434 = vmatpush2.msra.mxu0 0.0
        %435 = vmatprep.subr.mxu0 0.0
        %436 = vmatpush2.msra.mxu0 0.0
        %437 = vmatprep.subr.mxu0 0.0
        %438 = vmatpush2.msra.mxu0 0.0
        %439 = vmatprep.subr.mxu0 0.0
        %440 = vmatpush2.msra.mxu0 0.0
        %441 = vmatprep.subr.mxu0 0.0
        %442 = vmatpush2.msra.mxu0 0.0
        %443 = vmatprep.subr.mxu0 0.0
        %444 = vmatpush2.msra.mxu0 0.0
        %445 = vmatprep.subr.mxu0 0.0
        %446 = vmatpush2.msra.mxu0 0.0
        %447 = vmatprep.subr.mxu0 0.0
        %448 = vmatpush2.msra.mxu0 0.0
        %449 = vmatprep.subr.mxu0 0.0
        %450 = vmatpush2.msra.mxu0 0.0
        %451 = vmatprep.subr.mxu0 0.0
        %452 = vmatpush2.msra.mxu0 0.0
        %453 = vmatprep.subr.mxu0 0.0
        %454 = vmatpush2.msra.mxu0 0.0
        %455 = vmatprep.mubr.f32.mxu0 0.0
        %456 = vmatmul.mubr.f32.gmra.mxu0 %v387
        %v457 = vpop.f32.mrf.mxu0
        %v458 = vadd.f32 0.0, %v457
        %v459 = vpop.f32.mrf.mxu0
        %460 = vmatprep.mubr.f32.mxu0 0.0
        %461 = vmatmul.mubr.f32.gmra.mxu0 %v389
        %v462 = vpop.f32.mrf.mxu0
        %v463 = vadd.f32 0.0, %v462
        %v464 = vpop.f32.mrf.mxu0
        %465 = vdwg.mxu0
        %468 = vrot.lane.b32.xlu0 %v458, 16
        %v469 = vpop.permute.xlu0 %468
        %470 = vrot.lane.b32.xlu0 %v463, 16
        %v471 = vpop.permute.xlu0 %470
        %vm474 = vcmask 195712
        %475 = vst.msk [vmem:[#allocation2] sm:$0xff] %vm474, %v469
        %476 = vst.msk [vmem:[#allocation2 + $0x8] sm:$0xff] %vm474, %v471
        %477 = vrot.lane.b32.xlu0 %v196, 116
        %v478 = vpop.permute.xlu0 %477
        %479 = vrot.lane.b32.xlu0 %v197, 116
        %v480 = vpop.permute.xlu0 %479
        %v481 = vsel %vm200, %v478, 0
        %v483 = vsel %vm200, %v480, 0
        %485 = vmatprep.subr.mxu0 0.0
        %486 = vmatpush1.msra.mxu0 0.0
        %487 = vmatprep.subr.mxu0 0.0
        %488 = vmatpush1.msra.mxu0 0.0
        %489 = vmatprep.subr.mxu0 0.0
        %490 = vmatpush1.msra.mxu0 0.0
        %491 = vmatprep.subr.mxu0 0.0
        %492 = vmatpush1.msra.mxu0 0.0
        %493 = vmatprep.subr.mxu0 0.0
        %494 = vmatpush1.msra.mxu0 0.0
        %495 = vmatprep.subr.mxu0 0.0
        %496 = vmatpush1.msra.mxu0 0.0
        %497 = vmatprep.subr.mxu0 0.0
        %498 = vmatpush1.msra.mxu0 0.0
        %499 = vmatprep.subr.mxu0 0.0
        %500 = vmatpush1.msra.mxu0 0.0
        %501 = vmatprep.subr.mxu0 0.0
        %502 = vmatpush1.msra.mxu0 0.0
        %503 = vmatprep.subr.mxu0 0.0
        %504 = vmatpush1.msra.mxu0 0.0
        %505 = vmatprep.subr.mxu0 0.0
        %506 = vmatpush1.msra.mxu0 0.0
        %507 = vmatprep.subr.mxu0 0.0
        %508 = vmatpush1.msra.mxu0 0.0
        %509 = vmatprep.subr.mxu0 0.0
        %510 = vmatpush1.msra.mxu0 0.0
        %511 = vmatprep.subr.mxu0 0.0
        %512 = vmatpush1.msra.mxu0 0.0
        %513 = vmatprep.subr.mxu0 0.0
        %514 = vmatpush1.msra.mxu0 %v209
        %515 = vmatprep.subr.mxu0 0.0
        %516 = vmatpush1.msra.mxu0 %v198
        %517 = vmatprep.subr.mxu0 0.0
        %518 = vmatpush2.msra.mxu0 0.0
        %519 = vmatprep.subr.mxu0 0.0
        %520 = vmatpush2.msra.mxu0 0.0
        %521 = vmatprep.subr.mxu0 0.0
        %522 = vmatpush2.msra.mxu0 0.0
        %523 = vmatprep.subr.mxu0 0.0
        %524 = vmatpush2.msra.mxu0 0.0
        %525 = vmatprep.subr.mxu0 0.0
        %526 = vmatpush2.msra.mxu0 0.0
        %527 = vmatprep.subr.mxu0 0.0
        %528 = vmatpush2.msra.mxu0 0.0
        %529 = vmatprep.subr.mxu0 0.0
        %530 = vmatpush2.msra.mxu0 0.0
        %531 = vmatprep.subr.mxu0 0.0
        %532 = vmatpush2.msra.mxu0 0.0
        %533 = vmatprep.subr.mxu0 0.0
        %534 = vmatpush2.msra.mxu0 0.0
        %535 = vmatprep.subr.mxu0 0.0
        %536 = vmatpush2.msra.mxu0 0.0
        %537 = vmatprep.subr.mxu0 0.0
        %538 = vmatpush2.msra.mxu0 0.0
        %539 = vmatprep.subr.mxu0 0.0
        %540 = vmatpush2.msra.mxu0 0.0
        %541 = vmatprep.subr.mxu0 0.0
        %542 = vmatpush2.msra.mxu0 0.0
        %543 = vmatprep.subr.mxu0 0.0
        %544 = vmatpush2.msra.mxu0 0.0
        %545 = vmatprep.subr.mxu0 0.0
        %546 = vmatpush2.msra.mxu0 0.0
        %547 = vmatprep.subr.mxu0 0.0
        %548 = vmatpush2.msra.mxu0 0.0
        %549 = vmatprep.mubr.f32.mxu0 0.0
        %550 = vmatmul.mubr.f32.gmra.mxu0 %v481
        %v551 = vpop.f32.mrf.mxu0
        %v552 = vadd.f32 0.0, %v551
        %v553 = vpop.f32.mrf.mxu0
        %554 = vmatprep.mubr.f32.mxu0 0.0
        %555 = vmatmul.mubr.f32.gmra.mxu0 %v483
        %v556 = vpop.f32.mrf.mxu0
        %v557 = vadd.f32 0.0, %v556
        %v558 = vpop.f32.mrf.mxu0
        %559 = vdwg.mxu0
        %562 = vrot.lane.b32.xlu0 %v552, 24
        %v563 = vpop.permute.xlu0 %562
        %564 = vrot.lane.b32.xlu0 %v557, 24
        %v565 = vpop.permute.xlu0 %564
        %vm568 = vcmask 261312
        %569 = vst.msk [vmem:[#allocation2] sm:$0xff] %vm568, %v563
        %570 = vst.msk [vmem:[#allocation2 + $0x8] sm:$0xff] %vm568, %v565
        %571 = vrot.lane.b32.xlu0 %v196, 112
        %v572 = vpop.permute.xlu0 %571
        %573 = vrot.lane.b32.xlu0 %v197, 112
        %v574 = vpop.permute.xlu0 %573
        %v575 = vsel %vm200, %v572, 0
        %v577 = vsel %vm200, %v574, 0
        %579 = vmatprep.subr.mxu0 0.0
        %580 = vmatpush1.msra.mxu0 0.0
        %581 = vmatprep.subr.mxu0 0.0
        %582 = vmatpush1.msra.mxu0 0.0
        %583 = vmatprep.subr.mxu0 0.0
        %584 = vmatpush1.msra.mxu0 0.0
        %585 = vmatprep.subr.mxu0 0.0
        %586 = vmatpush1.msra.mxu0 0.0
        %587 = vmatprep.subr.mxu0 0.0
        %588 = vmatpush1.msra.mxu0 0.0
        %589 = vmatprep.subr.mxu0 0.0
        %590 = vmatpush1.msra.mxu0 0.0
        %591 = vmatprep.subr.mxu0 0.0
        %592 = vmatpush1.msra.mxu0 0.0
        %593 = vmatprep.subr.mxu0 0.0
        %594 = vmatpush1.msra.mxu0 0.0
        %595 = vmatprep.subr.mxu0 0.0
        %596 = vmatpush1.msra.mxu0 0.0
        %597 = vmatprep.subr.mxu0 0.0
        %598 = vmatpush1.msra.mxu0 0.0
        %599 = vmatprep.subr.mxu0 0.0
        %600 = vmatpush1.msra.mxu0 0.0
        %601 = vmatprep.subr.mxu0 0.0
        %602 = vmatpush1.msra.mxu0 0.0
        %603 = vmatprep.subr.mxu0 0.0
        %604 = vmatpush1.msra.mxu0 0.0
        %605 = vmatprep.subr.mxu0 0.0
        %606 = vmatpush1.msra.mxu0 0.0
        %607 = vmatprep.subr.mxu0 0.0
        %608 = vmatpush1.msra.mxu0 %v209
        %609 = vmatprep.subr.mxu0 0.0
        %610 = vmatpush1.msra.mxu0 %v198
        %611 = vmatprep.subr.mxu0 0.0
        %612 = vmatpush2.msra.mxu0 0.0
        %613 = vmatprep.subr.mxu0 0.0
        %614 = vmatpush2.msra.mxu0 0.0
        %615 = vmatprep.subr.mxu0 0.0
        %616 = vmatpush2.msra.mxu0 0.0
        %617 = vmatprep.subr.mxu0 0.0
        %618 = vmatpush2.msra.mxu0 0.0
        %619 = vmatprep.subr.mxu0 0.0
        %620 = vmatpush2.msra.mxu0 0.0
        %621 = vmatprep.subr.mxu0 0.0
        %622 = vmatpush2.msra.mxu0 0.0
        %623 = vmatprep.subr.mxu0 0.0
        %624 = vmatpush2.msra.mxu0 0.0
        %625 = vmatprep.subr.mxu0 0.0
        %626 = vmatpush2.msra.mxu0 0.0
        %627 = vmatprep.subr.mxu0 0.0
        %628 = vmatpush2.msra.mxu0 0.0
        %629 = vmatprep.subr.mxu0 0.0
        %630 = vmatpush2.msra.mxu0 0.0
        %631 = vmatprep.subr.mxu0 0.0
        %632 = vmatpush2.msra.mxu0 0.0
        %633 = vmatprep.subr.mxu0 0.0
        %634 = vmatpush2.msra.mxu0 0.0
        %635 = vmatprep.subr.mxu0 0.0
        %636 = vmatpush2.msra.mxu0 0.0
        %637 = vmatprep.subr.mxu0 0.0
        %638 = vmatpush2.msra.mxu0 0.0
        %639 = vmatprep.subr.mxu0 0.0
        %640 = vmatpush2.msra.mxu0 0.0
        %641 = vmatprep.subr.mxu0 0.0
        %642 = vmatpush2.msra.mxu0 0.0
        %643 = vmatprep.mubr.f32.mxu0 0.0
        %644 = vmatmul.mubr.f32.gmra.mxu0 %v575
        %v645 = vpop.f32.mrf.mxu0
        %v646 = vadd.f32 0.0, %v645
        %v647 = vpop.f32.mrf.mxu0
        %648 = vmatprep.mubr.f32.mxu0 0.0
        %649 = vmatmul.mubr.f32.gmra.mxu0 %v577
        %v650 = vpop.f32.mrf.mxu0
        %v651 = vadd.f32 0.0, %v650
        %v652 = vpop.f32.mrf.mxu0
        %653 = vdwg.mxu0
        %656 = vrot.lane.b32.xlu0 %v646, 32
        %v657 = vpop.permute.xlu0 %656
        %658 = vrot.lane.b32.xlu0 %v651, 32
        %v659 = vpop.permute.xlu0 %658
        %vm662 = vcmask 326912
        %663 = vst.msk [vmem:[#allocation2] sm:$0xff] %vm662, %v657
        %664 = vst.msk [vmem:[#allocation2 + $0x8] sm:$0xff] %vm662, %v659
        %665 = vrot.lane.b32.xlu0 %v196, 108
        %v666 = vpop.permute.xlu0 %665
        %667 = vrot.lane.b32.xlu0 %v197, 108
        %v668 = vpop.permute.xlu0 %667
        %v669 = vsel %vm200, %v666, 0
        %v671 = vsel %vm200, %v668, 0
        %673 = vmatprep.subr.mxu0 0.0
        %674 = vmatpush1.msra.mxu0 0.0
        %675 = vmatprep.subr.mxu0 0.0
        %676 = vmatpush1.msra.mxu0 0.0
        %677 = vmatprep.subr.mxu0 0.0
        %678 = vmatpush1.msra.mxu0 0.0
        %679 = vmatprep.subr.mxu0 0.0
        %680 = vmatpush1.msra.mxu0 0.0
        %681 = vmatprep.subr.mxu0 0.0
        %682 = vmatpush1.msra.mxu0 0.0
        %683 = vmatprep.subr.mxu0 0.0
        %684 = vmatpush1.msra.mxu0 0.0
        %685 = vmatprep.subr.mxu0 0.0
        %686 = vmatpush1.msra.mxu0 0.0
        %687 = vmatprep.subr.mxu0 0.0
        %688 = vmatpush1.msra.mxu0 0.0
        %689 = vmatprep.subr.mxu0 0.0
        %690 = vmatpush1.msra.mxu0 0.0
        %691 = vmatprep.subr.mxu0 0.0
        %692 = vmatpush1.msra.mxu0 0.0
        %693 = vmatprep.subr.mxu0 0.0
        %694 = vmatpush1.msra.mxu0 0.0
        %695 = vmatprep.subr.mxu0 0.0
        %696 = vmatpush1.msra.mxu0 0.0
        %697 = vmatprep.subr.mxu0 0.0
        %698 = vmatpush1.msra.mxu0 0.0
        %699 = vmatprep.subr.mxu0 0.0
        %700 = vmatpush1.msra.mxu0 0.0
        %701 = vmatprep.subr.mxu0 0.0
        %702 = vmatpush1.msra.mxu0 %v209
        %703 = vmatprep.subr.mxu0 0.0
        %704 = vmatpush1.msra.mxu0 %v198
        %705 = vmatprep.subr.mxu0 0.0
        %706 = vmatpush2.msra.mxu0 0.0
        %707 = vmatprep.subr.mxu0 0.0
        %708 = vmatpush2.msra.mxu0 0.0
        %709 = vmatprep.subr.mxu0 0.0
        %710 = vmatpush2.msra.mxu0 0.0
        %711 = vmatprep.subr.mxu0 0.0
        %712 = vmatpush2.msra.mxu0 0.0
        %713 = vmatprep.subr.mxu0 0.0
        %714 = vmatpush2.msra.mxu0 0.0
        %715 = vmatprep.subr.mxu0 0.0
        %716 = vmatpush2.msra.mxu0 0.0
        %717 = vmatprep.subr.mxu0 0.0
        %718 = vmatpush2.msra.mxu0 0.0
        %719 = vmatprep.subr.mxu0 0.0
        %720 = vmatpush2.msra.mxu0 0.0
        %721 = vmatprep.subr.mxu0 0.0
        %722 = vmatpush2.msra.mxu0 0.0
        %723 = vmatprep.subr.mxu0 0.0
        %724 = vmatpush2.msra.mxu0 0.0
        %725 = vmatprep.subr.mxu0 0.0
        %726 = vmatpush2.msra.mxu0 0.0
        %727 = vmatprep.subr.mxu0 0.0
        %728 = vmatpush2.msra.mxu0 0.0
        %729 = vmatprep.subr.mxu0 0.0
        %730 = vmatpush2.msra.mxu0 0.0
        %731 = vmatprep.subr.mxu0 0.0
        %732 = vmatpush2.msra.mxu0 0.0
        %733 = vmatprep.subr.mxu0 0.0
        %734 = vmatpush2.msra.mxu0 0.0
        %735 = vmatprep.subr.mxu0 0.0
        %736 = vmatpush2.msra.mxu0 0.0
        %737 = vmatprep.mubr.f32.mxu0 0.0
        %738 = vmatmul.mubr.f32.gmra.mxu0 %v669
        %v739 = vpop.f32.mrf.mxu0
        %v740 = vadd.f32 0.0, %v739
        %v741 = vpop.f32.mrf.mxu0
        %742 = vmatprep.mubr.f32.mxu0 0.0
        %743 = vmatmul.mubr.f32.gmra.mxu0 %v671
        %v744 = vpop.f32.mrf.mxu0
        %v745 = vadd.f32 0.0, %v744
        %v746 = vpop.f32.mrf.mxu0
        %747 = vdwg.mxu0
        %750 = vrot.lane.b32.xlu0 %v740, 40
        %v751 = vpop.permute.xlu0 %750
        %752 = vrot.lane.b32.xlu0 %v745, 40
        %v753 = vpop.permute.xlu0 %752
        %vm756 = vcmask 392512
        %757 = vst.msk [vmem:[#allocation2] sm:$0xff] %vm756, %v751
        %758 = vst.msk [vmem:[#allocation2 + $0x8] sm:$0xff] %vm756, %v753
        %v759 = vld [vmem:[%s1] sm:$0xff]
        %v760 = vld [vmem:[%s1 + $0x8] sm:$0xff]
        %vm761 = vcmask 130048
        %v763 = vsel %vm761, %v759, 0
        %v766 = vsel %vm761, %v760, 0
        %768 = vmatprep.subr.mxu0 0.0
        %769 = vmatpush1.msra.mxu0 0.0
        %770 = vmatprep.subr.mxu0 0.0
        %771 = vmatpush1.msra.mxu0 0.0
        %772 = vmatprep.subr.mxu0 0.0
        %773 = vmatpush1.msra.mxu0 0.0
        %774 = vmatprep.subr.mxu0 0.0
        %775 = vmatpush1.msra.mxu0 0.0
        %776 = vmatprep.subr.mxu0 0.0
        %777 = vmatpush1.msra.mxu0 0.0
        %778 = vmatprep.subr.mxu0 0.0
        %779 = vmatpush1.msra.mxu0 0.0
        %780 = vmatprep.subr.mxu0 0.0
        %781 = vmatpush1.msra.mxu0 0.0
        %782 = vmatprep.subr.mxu0 0.0
        %783 = vmatpush1.msra.mxu0 0.0
        %784 = vmatprep.subr.mxu0 0.0
        %785 = vmatpush1.msra.mxu0 0.0
        %786 = vmatprep.subr.mxu0 0.0
        %787 = vmatpush1.msra.mxu0 0.0
        %788 = vmatprep.subr.mxu0 0.0
        %789 = vmatpush1.msra.mxu0 0.0
        %790 = vmatprep.subr.mxu0 0.0
        %791 = vmatpush1.msra.mxu0 0.0
        %792 = vmatprep.subr.mxu0 0.0
        %793 = vmatpush1.msra.mxu0 0.0
        %794 = vmatprep.subr.mxu0 0.0
        %795 = vmatpush1.msra.mxu0 0.0
        %796 = vmatprep.subr.mxu0 0.0
        %797 = vmatpush1.msra.mxu0 %v197
        %798 = vmatprep.subr.mxu0 0.0
        %799 = vmatpush1.msra.mxu0 %v196
        %800 = vmatprep.subr.mxu0 0.0
        %801 = vmatpush2.msra.mxu0 0.0
        %802 = vmatprep.subr.mxu0 0.0
        %803 = vmatpush2.msra.mxu0 0.0
        %804 = vmatprep.subr.mxu0 0.0
        %805 = vmatpush2.msra.mxu0 0.0
        %806 = vmatprep.subr.mxu0 0.0
        %807 = vmatpush2.msra.mxu0 0.0
        %808 = vmatprep.subr.mxu0 0.0
        %809 = vmatpush2.msra.mxu0 0.0
        %810 = vmatprep.subr.mxu0 0.0
        %811 = vmatpush2.msra.mxu0 0.0
        %812 = vmatprep.subr.mxu0 0.0
        %813 = vmatpush2.msra.mxu0 0.0
        %814 = vmatprep.subr.mxu0 0.0
        %815 = vmatpush2.msra.mxu0 0.0
        %816 = vmatprep.subr.mxu0 0.0
        %817 = vmatpush2.msra.mxu0 0.0
        %818 = vmatprep.subr.mxu0 0.0
        %819 = vmatpush2.msra.mxu0 0.0
        %820 = vmatprep.subr.mxu0 0.0
        %821 = vmatpush2.msra.mxu0 0.0
        %822 = vmatprep.subr.mxu0 0.0
        %823 = vmatpush2.msra.mxu0 0.0
        %824 = vmatprep.subr.mxu0 0.0
        %825 = vmatpush2.msra.mxu0 0.0
        %826 = vmatprep.subr.mxu0 0.0
        %827 = vmatpush2.msra.mxu0 0.0
        %828 = vmatprep.subr.mxu0 0.0
        %829 = vmatpush2.msra.mxu0 0.0
        %830 = vmatprep.subr.mxu0 0.0
        %831 = vmatpush2.msra.mxu0 0.0
        %832 = vmatprep.mubr.f32.mxu0 0.0
        %833 = vmatmul.mubr.f32.gmra.mxu0 %v763
        %v834 = vpop.f32.mrf.mxu0
        %v835 = vadd.f32 0.0, %v834
        %v836 = vpop.f32.mrf.mxu0
        %837 = vmatprep.mubr.f32.mxu0 0.0
        %838 = vmatmul.mubr.f32.gmra.mxu0 %v766
        %v839 = vpop.f32.mrf.mxu0
        %v840 = vadd.f32 0.0, %v839
        %v841 = vpop.f32.mrf.mxu0
        %842 = vdwg.mxu0
        %s843 = scalar_lea.vmem %s2, 16
        %v844 = vld [vmem:[%s843] sm:$0xff]
        %v845 = vld [vmem:[%s843 + $0x8] sm:$0xf]
        %v847 = vsel %vm200, %v835, 0
        %v850 = vsel %vm200, %v840, 0
        %v853 = vsel %vm207, %v845, 0
        %855 = vmatprep.subr.mxu0 0.0
        %856 = vmatpush1.msra.mxu0 0.0
        %857 = vmatprep.subr.mxu0 0.0
        %858 = vmatpush1.msra.mxu0 0.0
        %859 = vmatprep.subr.mxu0 0.0
        %860 = vmatpush1.msra.mxu0 0.0
        %861 = vmatprep.subr.mxu0 0.0
        %862 = vmatpush1.msra.mxu0 0.0
        %863 = vmatprep.subr.mxu0 0.0
        %864 = vmatpush1.msra.mxu0 0.0
        %865 = vmatprep.subr.mxu0 0.0
        %866 = vmatpush1.msra.mxu0 0.0
        %867 = vmatprep.subr.mxu0 0.0
        %868 = vmatpush1.msra.mxu0 0.0
        %869 = vmatprep.subr.mxu0 0.0
        %870 = vmatpush1.msra.mxu0 0.0
        %871 = vmatprep.subr.mxu0 0.0
        %872 = vmatpush1.msra.mxu0 0.0
        %873 = vmatprep.subr.mxu0 0.0
        %874 = vmatpush1.msra.mxu0 0.0
        %875 = vmatprep.subr.mxu0 0.0
        %876 = vmatpush1.msra.mxu0 0.0
        %877 = vmatprep.subr.mxu0 0.0
        %878 = vmatpush1.msra.mxu0 0.0
        %879 = vmatprep.subr.mxu0 0.0
        %880 = vmatpush1.msra.mxu0 0.0
        %881 = vmatprep.subr.mxu0 0.0
        %882 = vmatpush1.msra.mxu0 0.0
        %883 = vmatprep.subr.mxu0 0.0
        %884 = vmatpush1.msra.mxu0 %v853
        %885 = vmatprep.subr.mxu0 0.0
        %886 = vmatpush1.msra.mxu0 %v844
        %887 = vmatprep.subr.mxu0 0.0
        %888 = vmatpush2.msra.mxu0 0.0
        %889 = vmatprep.subr.mxu0 0.0
        %890 = vmatpush2.msra.mxu0 0.0
        %891 = vmatprep.subr.mxu0 0.0
        %892 = vmatpush2.msra.mxu0 0.0
        %893 = vmatprep.subr.mxu0 0.0
        %894 = vmatpush2.msra.mxu0 0.0
        %895 = vmatprep.subr.mxu0 0.0
        %896 = vmatpush2.msra.mxu0 0.0
        %897 = vmatprep.subr.mxu0 0.0
        %898 = vmatpush2.msra.mxu0 0.0
        %899 = vmatprep.subr.mxu0 0.0
        %900 = vmatpush2.msra.mxu0 0.0
        %901 = vmatprep.subr.mxu0 0.0
        %902 = vmatpush2.msra.mxu0 0.0
        %903 = vmatprep.subr.mxu0 0.0
        %904 = vmatpush2.msra.mxu0 0.0
        %905 = vmatprep.subr.mxu0 0.0
        %906 = vmatpush2.msra.mxu0 0.0
        %907 = vmatprep.subr.mxu0 0.0
        %908 = vmatpush2.msra.mxu0 0.0
        %909 = vmatprep.subr.mxu0 0.0
        %910 = vmatpush2.msra.mxu0 0.0
        %911 = vmatprep.subr.mxu0 0.0
        %912 = vmatpush2.msra.mxu0 0.0
        %913 = vmatprep.subr.mxu0 0.0
        %914 = vmatpush2.msra.mxu0 0.0
        %915 = vmatprep.subr.mxu0 0.0
        %916 = vmatpush2.msra.mxu0 0.0
        %917 = vmatprep.subr.mxu0 0.0
        %918 = vmatpush2.msra.mxu0 0.0
        %919 = vmatprep.mubr.f32.mxu0 0.0
        %920 = vmatmul.mubr.f32.gmra.mxu0 %v847
        %v921 = vpop.f32.mrf.mxu0
        %v922 = vadd.f32 0.0, %v921
        %v923 = vpop.f32.mrf.mxu0
        %924 = vmatprep.mubr.f32.mxu0 0.0
        %925 = vmatmul.mubr.f32.gmra.mxu0 %v850
        %v926 = vpop.f32.mrf.mxu0
        %v927 = vadd.f32 0.0, %v926
        %v928 = vpop.f32.mrf.mxu0
        %929 = vdwg.mxu0
        %v930 = vld [vmem:[#allocation2] sm:$0xff]
        %v931 = vld [vmem:[#allocation2 + $0x8] sm:$0xff]
        %v932 = vadd.f32 %v930, %v922
        %v933 = vadd.f32 %v931, %v927
        %934 = vst.msk [vmem:[#allocation2] sm:$0xff] %vm286, %v932
        %935 = vst.msk [vmem:[#allocation2 + $0x8] sm:$0xff] %vm286, %v933
        %936 = vrot.lane.b32.xlu0 %v835, 124
        %v937 = vpop.permute.xlu0 %936
        %938 = vrot.lane.b32.xlu0 %v840, 124
        %v939 = vpop.permute.xlu0 %938
        %v940 = vsel %vm200, %v937, 0
        %v942 = vsel %vm200, %v939, 0
        %944 = vmatprep.subr.mxu0 0.0
        %945 = vmatpush1.msra.mxu0 0.0
        %946 = vmatprep.subr.mxu0 0.0
        %947 = vmatpush1.msra.mxu0 0.0
        %948 = vmatprep.subr.mxu0 0.0
        %949 = vmatpush1.msra.mxu0 0.0
        %950 = vmatprep.subr.mxu0 0.0
        %951 = vmatpush1.msra.mxu0 0.0
        %952 = vmatprep.subr.mxu0 0.0
        %953 = vmatpush1.msra.mxu0 0.0
        %954 = vmatprep.subr.mxu0 0.0
        %955 = vmatpush1.msra.mxu0 0.0
        %956 = vmatprep.subr.mxu0 0.0
        %957 = vmatpush1.msra.mxu0 0.0
        %958 = vmatprep.subr.mxu0 0.0
        %959 = vmatpush1.msra.mxu0 0.0
        %960 = vmatprep.subr.mxu0 0.0
        %961 = vmatpush1.msra.mxu0 0.0
        %962 = vmatprep.subr.mxu0 0.0
        %963 = vmatpush1.msra.mxu0 0.0
        %964 = vmatprep.subr.mxu0 0.0
        %965 = vmatpush1.msra.mxu0 0.0
        %966 = vmatprep.subr.mxu0 0.0
        %967 = vmatpush1.msra.mxu0 0.0
        %968 = vmatprep.subr.mxu0 0.0
        %969 = vmatpush1.msra.mxu0 0.0
        %970 = vmatprep.subr.mxu0 0.0
        %971 = vmatpush1.msra.mxu0 0.0
        %972 = vmatprep.subr.mxu0 0.0
        %973 = vmatpush1.msra.mxu0 %v853
        %974 = vmatprep.subr.mxu0 0.0
        %975 = vmatpush1.msra.mxu0 %v844
        %976 = vmatprep.subr.mxu0 0.0
        %977 = vmatpush2.msra.mxu0 0.0
        %978 = vmatprep.subr.mxu0 0.0
        %979 = vmatpush2.msra.mxu0 0.0
        %980 = vmatprep.subr.mxu0 0.0
        %981 = vmatpush2.msra.mxu0 0.0
        %982 = vmatprep.subr.mxu0 0.0
        %983 = vmatpush2.msra.mxu0 0.0
        %984 = vmatprep.subr.mxu0 0.0
        %985 = vmatpush2.msra.mxu0 0.0
        %986 = vmatprep.subr.mxu0 0.0
        %987 = vmatpush2.msra.mxu0 0.0
        %988 = vmatprep.subr.mxu0 0.0
        %989 = vmatpush2.msra.mxu0 0.0
        %990 = vmatprep.subr.mxu0 0.0
        %991 = vmatpush2.msra.mxu0 0.0
        %992 = vmatprep.subr.mxu0 0.0
        %993 = vmatpush2.msra.mxu0 0.0
        %994 = vmatprep.subr.mxu0 0.0
        %995 = vmatpush2.msra.mxu0 0.0
        %996 = vmatprep.subr.mxu0 0.0
        %997 = vmatpush2.msra.mxu0 0.0
        %998 = vmatprep.subr.mxu0 0.0
        %999 = vmatpush2.msra.mxu0 0.0
        %1000 = vmatprep.subr.mxu0 0.0
        %1001 = vmatpush2.msra.mxu0 0.0
        %1002 = vmatprep.subr.mxu0 0.0
        %1003 = vmatpush2.msra.mxu0 0.0
        %1004 = vmatprep.subr.mxu0 0.0
        %1005 = vmatpush2.msra.mxu0 0.0
        %1006 = vmatprep.subr.mxu0 0.0
        %1007 = vmatpush2.msra.mxu0 0.0
        %1008 = vmatprep.mubr.f32.mxu0 0.0
        %1009 = vmatmul.mubr.f32.gmra.mxu0 %v940
        %v1010 = vpop.f32.mrf.mxu0
        %v1011 = vadd.f32 0.0, %v1010
        %v1012 = vpop.f32.mrf.mxu0
        %1013 = vmatprep.mubr.f32.mxu0 0.0
        %1014 = vmatmul.mubr.f32.gmra.mxu0 %v942
        %v1015 = vpop.f32.mrf.mxu0
        %v1016 = vadd.f32 0.0, %v1015
        %v1017 = vpop.f32.mrf.mxu0
        %1018 = vdwg.mxu0
        %v1019 = vld [vmem:[#allocation2] sm:$0xff]
        %v1020 = vld [vmem:[#allocation2 + $0x8] sm:$0xff]
        %1023 = vrot.lane.b32.xlu0 %v1011, 8
        %v1024 = vpop.permute.xlu0 %1023
        %1025 = vrot.lane.b32.xlu0 %v1016, 8
        %v1026 = vpop.permute.xlu0 %1025
        %v1029 = vadd.f32 %v1019, %v1024
        %v1030 = vadd.f32 %v1020, %v1026
        %1031 = vst.msk [vmem:[#allocation2] sm:$0xff] %vm380, %v1029
        %1032 = vst.msk [vmem:[#allocation2 + $0x8] sm:$0xff] %vm380, %v1030
        %1033 = vrot.lane.b32.xlu0 %v835, 120
        %v1034 = vpop.permute.xlu0 %1033
        %1035 = vrot.lane.b32.xlu0 %v840, 120
        %v1036 = vpop.permute.xlu0 %1035
        %v1037 = vsel %vm200, %v1034, 0
        %v1039 = vsel %vm200, %v1036, 0
        %1041 = vmatprep.subr.mxu0 0.0
        %1042 = vmatpush1.msra.mxu0 0.0
        %1043 = vmatprep.subr.mxu0 0.0
        %1044 = vmatpush1.msra.mxu0 0.0
        %1045 = vmatprep.subr.mxu0 0.0
        %1046 = vmatpush1.msra.mxu0 0.0
        %1047 = vmatprep.subr.mxu0 0.0
        %1048 = vmatpush1.msra.mxu0 0.0
        %1049 = vmatprep.subr.mxu0 0.0
        %1050 = vmatpush1.msra.mxu0 0.0
        %1051 = vmatprep.subr.mxu0 0.0
        %1052 = vmatpush1.msra.mxu0 0.0
        %1053 = vmatprep.subr.mxu0 0.0
        %1054 = vmatpush1.msra.mxu0 0.0
        %1055 = vmatprep.subr.mxu0 0.0
        %1056 = vmatpush1.msra.mxu0 0.0
        %1057 = vmatprep.subr.mxu0 0.0
        %1058 = vmatpush1.msra.mxu0 0.0
        %1059 = vmatprep.subr.mxu0 0.0
        %1060 = vmatpush1.msra.mxu0 0.0
        %1061 = vmatprep.subr.mxu0 0.0
        %1062 = vmatpush1.msra.mxu0 0.0
        %1063 = vmatprep.subr.mxu0 0.0
        %1064 = vmatpush1.msra.mxu0 0.0
        %1065 = vmatprep.subr.mxu0 0.0
        %1066 = vmatpush1.msra.mxu0 0.0
        %1067 = vmatprep.subr.mxu0 0.0
        %1068 = vmatpush1.msra.mxu0 0.0
        %1069 = vmatprep.subr.mxu0 0.0
        %1070 = vmatpush1.msra.mxu0 %v853
        %1071 = vmatprep.subr.mxu0 0.0
        %1072 = vmatpush1.msra.mxu0 %v844
        %1073 = vmatprep.subr.mxu0 0.0
        %1074 = vmatpush2.msra.mxu0 0.0
        %1075 = vmatprep.subr.mxu0 0.0
        %1076 = vmatpush2.msra.mxu0 0.0
        %1077 = vmatprep.subr.mxu0 0.0
        %1078 = vmatpush2.msra.mxu0 0.0
        %1079 = vmatprep.subr.mxu0 0.0
        %1080 = vmatpush2.msra.mxu0 0.0
        %1081 = vmatprep.subr.mxu0 0.0
        %1082 = vmatpush2.msra.mxu0 0.0
        %1083 = vmatprep.subr.mxu0 0.0
        %1084 = vmatpush2.msra.mxu0 0.0
        %1085 = vmatprep.subr.mxu0 0.0
        %1086 = vmatpush2.msra.mxu0 0.0
        %1087 = vmatprep.subr.mxu0 0.0
        %1088 = vmatpush2.msra.mxu0 0.0
        %1089 = vmatprep.subr.mxu0 0.0
        %1090 = vmatpush2.msra.mxu0 0.0
        %1091 = vmatprep.subr.mxu0 0.0
        %1092 = vmatpush2.msra.mxu0 0.0
        %1093 = vmatprep.subr.mxu0 0.0
        %1094 = vmatpush2.msra.mxu0 0.0
        %1095 = vmatprep.subr.mxu0 0.0
        %1096 = vmatpush2.msra.mxu0 0.0
        %1097 = vmatprep.subr.mxu0 0.0
        %1098 = vmatpush2.msra.mxu0 0.0
        %1099 = vmatprep.subr.mxu0 0.0
        %1100 = vmatpush2.msra.mxu0 0.0
        %1101 = vmatprep.subr.mxu0 0.0
        %1102 = vmatpush2.msra.mxu0 0.0
        %1103 = vmatprep.subr.mxu0 0.0
        %1104 = vmatpush2.msra.mxu0 0.0
        %1105 = vmatprep.mubr.f32.mxu0 0.0
        %1106 = vmatmul.mubr.f32.gmra.mxu0 %v1037
        %v1107 = vpop.f32.mrf.mxu0
        %v1108 = vadd.f32 0.0, %v1107
        %v1109 = vpop.f32.mrf.mxu0
        %1110 = vmatprep.mubr.f32.mxu0 0.0
        %1111 = vmatmul.mubr.f32.gmra.mxu0 %v1039
        %v1112 = vpop.f32.mrf.mxu0
        %v1113 = vadd.f32 0.0, %v1112
        %v1114 = vpop.f32.mrf.mxu0
        %1115 = vdwg.mxu0
        %v1116 = vld [vmem:[#allocation2] sm:$0xff]
        %v1117 = vld [vmem:[#allocation2 + $0x8] sm:$0xff]
        %1120 = vrot.lane.b32.xlu0 %v1108, 16
        %v1121 = vpop.permute.xlu0 %1120
        %1122 = vrot.lane.b32.xlu0 %v1113, 16
        %v1123 = vpop.permute.xlu0 %1122
        %v1126 = vadd.f32 %v1116, %v1121
        %v1127 = vadd.f32 %v1117, %v1123
        %1128 = vst.msk [vmem:[#allocation2] sm:$0xff] %vm474, %v1126
        %1129 = vst.msk [vmem:[#allocation2 + $0x8] sm:$0xff] %vm474, %v1127
        %1130 = vrot.lane.b32.xlu0 %v835, 116
        %v1131 = vpop.permute.xlu0 %1130
        %1132 = vrot.lane.b32.xlu0 %v840, 116
        %v1133 = vpop.permute.xlu0 %1132
        %v1134 = vsel %vm200, %v1131, 0
        %v1136 = vsel %vm200, %v1133, 0
        %1138 = vmatprep.subr.mxu0 0.0
        %1139 = vmatpush1.msra.mxu0 0.0
        %1140 = vmatprep.subr.mxu0 0.0
        %1141 = vmatpush1.msra.mxu0 0.0
        %1142 = vmatprep.subr.mxu0 0.0
        %1143 = vmatpush1.msra.mxu0 0.0
        %1144 = vmatprep.subr.mxu0 0.0
        %1145 = vmatpush1.msra.mxu0 0.0
        %1146 = vmatprep.subr.mxu0 0.0
        %1147 = vmatpush1.msra.mxu0 0.0
        %1148 = vmatprep.subr.mxu0 0.0
        %1149 = vmatpush1.msra.mxu0 0.0
        %1150 = vmatprep.subr.mxu0 0.0
        %1151 = vmatpush1.msra.mxu0 0.0
        %1152 = vmatprep.subr.mxu0 0.0
        %1153 = vmatpush1.msra.mxu0 0.0
        %1154 = vmatprep.subr.mxu0 0.0
        %1155 = vmatpush1.msra.mxu0 0.0
        %1156 = vmatprep.subr.mxu0 0.0
        %1157 = vmatpush1.msra.mxu0 0.0
        %1158 = vmatprep.subr.mxu0 0.0
        %1159 = vmatpush1.msra.mxu0 0.0
        %1160 = vmatprep.subr.mxu0 0.0
        %1161 = vmatpush1.msra.mxu0 0.0
        %1162 = vmatprep.subr.mxu0 0.0
        %1163 = vmatpush1.msra.mxu0 0.0
        %1164 = vmatprep.subr.mxu0 0.0
        %1165 = vmatpush1.msra.mxu0 0.0
        %1166 = vmatprep.subr.mxu0 0.0
        %1167 = vmatpush1.msra.mxu0 %v853
        %1168 = vmatprep.subr.mxu0 0.0
        %1169 = vmatpush1.msra.mxu0 %v844
        %1170 = vmatprep.subr.mxu0 0.0
        %1171 = vmatpush2.msra.mxu0 0.0
        %1172 = vmatprep.subr.mxu0 0.0
        %1173 = vmatpush2.msra.mxu0 0.0
        %1174 = vmatprep.subr.mxu0 0.0
        %1175 = vmatpush2.msra.mxu0 0.0
        %1176 = vmatprep.subr.mxu0 0.0
        %1177 = vmatpush2.msra.mxu0 0.0
        %1178 = vmatprep.subr.mxu0 0.0
        %1179 = vmatpush2.msra.mxu0 0.0
        %1180 = vmatprep.subr.mxu0 0.0
        %1181 = vmatpush2.msra.mxu0 0.0
        %1182 = vmatprep.subr.mxu0 0.0
        %1183 = vmatpush2.msra.mxu0 0.0
        %1184 = vmatprep.subr.mxu0 0.0
        %1185 = vmatpush2.msra.mxu0 0.0
        %1186 = vmatprep.subr.mxu0 0.0
        %1187 = vmatpush2.msra.mxu0 0.0
        %1188 = vmatprep.subr.mxu0 0.0
        %1189 = vmatpush2.msra.mxu0 0.0
        %1190 = vmatprep.subr.mxu0 0.0
        %1191 = vmatpush2.msra.mxu0 0.0
        %1192 = vmatprep.subr.mxu0 0.0
        %1193 = vmatpush2.msra.mxu0 0.0
        %1194 = vmatprep.subr.mxu0 0.0
        %1195 = vmatpush2.msra.mxu0 0.0
        %1196 = vmatprep.subr.mxu0 0.0
        %1197 = vmatpush2.msra.mxu0 0.0
        %1198 = vmatprep.subr.mxu0 0.0
        %1199 = vmatpush2.msra.mxu0 0.0
        %1200 = vmatprep.subr.mxu0 0.0
        %1201 = vmatpush2.msra.mxu0 0.0
        %1202 = vmatprep.mubr.f32.mxu0 0.0
        %1203 = vmatmul.mubr.f32.gmra.mxu0 %v1134
        %v1204 = vpop.f32.mrf.mxu0
        %v1205 = vadd.f32 0.0, %v1204
        %v1206 = vpop.f32.mrf.mxu0
        %1207 = vmatprep.mubr.f32.mxu0 0.0
        %1208 = vmatmul.mubr.f32.gmra.mxu0 %v1136
        %v1209 = vpop.f32.mrf.mxu0
        %v1210 = vadd.f32 0.0, %v1209
        %v1211 = vpop.f32.mrf.mxu0
        %1212 = vdwg.mxu0
        %v1213 = vld [vmem:[#allocation2] sm:$0xff]
        %v1214 = vld [vmem:[#allocation2 + $0x8] sm:$0xff]
        %1217 = vrot.lane.b32.xlu0 %v1205, 24
        %v1218 = vpop.permute.xlu0 %1217
        %1219 = vrot.lane.b32.xlu0 %v1210, 24
        %v1220 = vpop.permute.xlu0 %1219
        %v1223 = vadd.f32 %v1213, %v1218
        %v1224 = vadd.f32 %v1214, %v1220
        %1225 = vst.msk [vmem:[#allocation2] sm:$0xff] %vm568, %v1223
        %1226 = vst.msk [vmem:[#allocation2 + $0x8] sm:$0xff] %vm568, %v1224
        %1227 = vrot.lane.b32.xlu0 %v835, 112
        %v1228 = vpop.permute.xlu0 %1227
        %1229 = vrot.lane.b32.xlu0 %v840, 112
        %v1230 = vpop.permute.xlu0 %1229
        %v1231 = vsel %vm200, %v1228, 0
        %v1233 = vsel %vm200, %v1230, 0
        %1235 = vmatprep.subr.mxu0 0.0
        %1236 = vmatpush1.msra.mxu0 0.0
        %1237 = vmatprep.subr.mxu0 0.0
        %1238 = vmatpush1.msra.mxu0 0.0
        %1239 = vmatprep.subr.mxu0 0.0
        %1240 = vmatpush1.msra.mxu0 0.0
        %1241 = vmatprep.subr.mxu0 0.0
        %1242 = vmatpush1.msra.mxu0 0.0
        %1243 = vmatprep.subr.mxu0 0.0
        %1244 = vmatpush1.msra.mxu0 0.0
        %1245 = vmatprep.subr.mxu0 0.0
        %1246 = vmatpush1.msra.mxu0 0.0
        %1247 = vmatprep.subr.mxu0 0.0
        %1248 = vmatpush1.msra.mxu0 0.0
        %1249 = vmatprep.subr.mxu0 0.0
        %1250 = vmatpush1.msra.mxu0 0.0
        %1251 = vmatprep.subr.mxu0 0.0
        %1252 = vmatpush1.msra.mxu0 0.0
        %1253 = vmatprep.subr.mxu0 0.0
        %1254 = vmatpush1.msra.mxu0 0.0
        %1255 = vmatprep.subr.mxu0 0.0
        %1256 = vmatpush1.msra.mxu0 0.0
        %1257 = vmatprep.subr.mxu0 0.0
        %1258 = vmatpush1.msra.mxu0 0.0
        %1259 = vmatprep.subr.mxu0 0.0
        %1260 = vmatpush1.msra.mxu0 0.0
        %1261 = vmatprep.subr.mxu0 0.0
        %1262 = vmatpush1.msra.mxu0 0.0
        %1263 = vmatprep.subr.mxu0 0.0
        %1264 = vmatpush1.msra.mxu0 %v853
        %1265 = vmatprep.subr.mxu0 0.0
        %1266 = vmatpush1.msra.mxu0 %v844
        %1267 = vmatprep.subr.mxu0 0.0
        %1268 = vmatpush2.msra.mxu0 0.0
        %1269 = vmatprep.subr.mxu0 0.0
        %1270 = vmatpush2.msra.mxu0 0.0
        %1271 = vmatprep.subr.mxu0 0.0
        %1272 = vmatpush2.msra.mxu0 0.0
        %1273 = vmatprep.subr.mxu0 0.0
        %1274 = vmatpush2.msra.mxu0 0.0
        %1275 = vmatprep.subr.mxu0 0.0
        %1276 = vmatpush2.msra.mxu0 0.0
        %1277 = vmatprep.subr.mxu0 0.0
        %1278 = vmatpush2.msra.mxu0 0.0
        %1279 = vmatprep.subr.mxu0 0.0
        %1280 = vmatpush2.msra.mxu0 0.0
        %1281 = vmatprep.subr.mxu0 0.0
        %1282 = vmatpush2.msra.mxu0 0.0
        %1283 = vmatprep.subr.mxu0 0.0
        %1284 = vmatpush2.msra.mxu0 0.0
        %1285 = vmatprep.subr.mxu0 0.0
        %1286 = vmatpush2.msra.mxu0 0.0
        %1287 = vmatprep.subr.mxu0 0.0
        %1288 = vmatpush2.msra.mxu0 0.0
        %1289 = vmatprep.subr.mxu0 0.0
        %1290 = vmatpush2.msra.mxu0 0.0
        %1291 = vmatprep.subr.mxu0 0.0
        %1292 = vmatpush2.msra.mxu0 0.0
        %1293 = vmatprep.subr.mxu0 0.0
        %1294 = vmatpush2.msra.mxu0 0.0
        %1295 = vmatprep.subr.mxu0 0.0
        %1296 = vmatpush2.msra.mxu0 0.0
        %1297 = vmatprep.subr.mxu0 0.0
        %1298 = vmatpush2.msra.mxu0 0.0
        %1299 = vmatprep.mubr.f32.mxu0 0.0
        %1300 = vmatmul.mubr.f32.gmra.mxu0 %v1231
        %v1301 = vpop.f32.mrf.mxu0
        %v1302 = vadd.f32 0.0, %v1301
        %v1303 = vpop.f32.mrf.mxu0
        %1304 = vmatprep.mubr.f32.mxu0 0.0
        %1305 = vmatmul.mubr.f32.gmra.mxu0 %v1233
        %v1306 = vpop.f32.mrf.mxu0
        %v1307 = vadd.f32 0.0, %v1306
        %v1308 = vpop.f32.mrf.mxu0
        %1309 = vdwg.mxu0
        %v1310 = vld [vmem:[#allocation2] sm:$0xff]
        %v1311 = vld [vmem:[#allocation2 + $0x8] sm:$0xff]
        %1314 = vrot.lane.b32.xlu0 %v1302, 32
        %v1315 = vpop.permute.xlu0 %1314
        %1316 = vrot.lane.b32.xlu0 %v1307, 32
        %v1317 = vpop.permute.xlu0 %1316
        %v1320 = vadd.f32 %v1310, %v1315
        %v1321 = vadd.f32 %v1311, %v1317
        %1322 = vst.msk [vmem:[#allocation2] sm:$0xff] %vm662, %v1320
        %1323 = vst.msk [vmem:[#allocation2 + $0x8] sm:$0xff] %vm662, %v1321
        %1324 = vrot.lane.b32.xlu0 %v835, 108
        %v1325 = vpop.permute.xlu0 %1324
        %1326 = vrot.lane.b32.xlu0 %v840, 108
        %v1327 = vpop.permute.xlu0 %1326
        %v1328 = vsel %vm200, %v1325, 0
        %v1330 = vsel %vm200, %v1327, 0
        %1332 = vmatprep.subr.mxu0 0.0
        %1333 = vmatpush1.msra.mxu0 0.0
        %1334 = vmatprep.subr.mxu0 0.0
        %1335 = vmatpush1.msra.mxu0 0.0
        %1336 = vmatprep.subr.mxu0 0.0
        %1337 = vmatpush1.msra.mxu0 0.0
        %1338 = vmatprep.subr.mxu0 0.0
        %1339 = vmatpush1.msra.mxu0 0.0
        %1340 = vmatprep.subr.mxu0 0.0
        %1341 = vmatpush1.msra.mxu0 0.0
        %1342 = vmatprep.subr.mxu0 0.0
        %1343 = vmatpush1.msra.mxu0 0.0
        %1344 = vmatprep.subr.mxu0 0.0
        %1345 = vmatpush1.msra.mxu0 0.0
        %1346 = vmatprep.subr.mxu0 0.0
        %1347 = vmatpush1.msra.mxu0 0.0
        %1348 = vmatprep.subr.mxu0 0.0
        %1349 = vmatpush1.msra.mxu0 0.0
        %1350 = vmatprep.subr.mxu0 0.0
        %1351 = vmatpush1.msra.mxu0 0.0
        %1352 = vmatprep.subr.mxu0 0.0
        %1353 = vmatpush1.msra.mxu0 0.0
        %1354 = vmatprep.subr.mxu0 0.0
        %1355 = vmatpush1.msra.mxu0 0.0
        %1356 = vmatprep.subr.mxu0 0.0
        %1357 = vmatpush1.msra.mxu0 0.0
        %1358 = vmatprep.subr.mxu0 0.0
        %1359 = vmatpush1.msra.mxu0 0.0
        %1360 = vmatprep.subr.mxu0 0.0
        %1361 = vmatpush1.msra.mxu0 %v853
        %1362 = vmatprep.subr.mxu0 0.0
        %1363 = vmatpush1.msra.mxu0 %v844
        %1364 = vmatprep.subr.mxu0 0.0
        %1365 = vmatpush2.msra.mxu0 0.0
        %1366 = vmatprep.subr.mxu0 0.0
        %1367 = vmatpush2.msra.mxu0 0.0
        %1368 = vmatprep.subr.mxu0 0.0
        %1369 = vmatpush2.msra.mxu0 0.0
        %1370 = vmatprep.subr.mxu0 0.0
        %1371 = vmatpush2.msra.mxu0 0.0
        %1372 = vmatprep.subr.mxu0 0.0
        %1373 = vmatpush2.msra.mxu0 0.0
        %1374 = vmatprep.subr.mxu0 0.0
        %1375 = vmatpush2.msra.mxu0 0.0
        %1376 = vmatprep.subr.mxu0 0.0
        %1377 = vmatpush2.msra.mxu0 0.0
        %1378 = vmatprep.subr.mxu0 0.0
        %1379 = vmatpush2.msra.mxu0 0.0
        %1380 = vmatprep.subr.mxu0 0.0
        %1381 = vmatpush2.msra.mxu0 0.0
        %1382 = vmatprep.subr.mxu0 0.0
        %1383 = vmatpush2.msra.mxu0 0.0
        %1384 = vmatprep.subr.mxu0 0.0
        %1385 = vmatpush2.msra.mxu0 0.0
        %1386 = vmatprep.subr.mxu0 0.0
        %1387 = vmatpush2.msra.mxu0 0.0
        %1388 = vmatprep.subr.mxu0 0.0
        %1389 = vmatpush2.msra.mxu0 0.0
        %1390 = vmatprep.subr.mxu0 0.0
        %1391 = vmatpush2.msra.mxu0 0.0
        %1392 = vmatprep.subr.mxu0 0.0
        %1393 = vmatpush2.msra.mxu0 0.0
        %1394 = vmatprep.subr.mxu0 0.0
        %1395 = vmatpush2.msra.mxu0 0.0
        %1396 = vmatprep.mubr.f32.mxu0 0.0
        %1397 = vmatmul.mubr.f32.gmra.mxu0 %v1328
        %v1398 = vpop.f32.mrf.mxu0
        %v1399 = vadd.f32 0.0, %v1398
        %v1400 = vpop.f32.mrf.mxu0
        %1401 = vmatprep.mubr.f32.mxu0 0.0
        %1402 = vmatmul.mubr.f32.gmra.mxu0 %v1330
        %v1403 = vpop.f32.mrf.mxu0
        %v1404 = vadd.f32 0.0, %v1403
        %v1405 = vpop.f32.mrf.mxu0
        %1406 = vdwg.mxu0
        %v1407 = vld [vmem:[#allocation2] sm:$0xff]
        %v1408 = vld [vmem:[#allocation2 + $0x8] sm:$0xff]
        %1411 = vrot.lane.b32.xlu0 %v1399, 40
        %v1412 = vpop.permute.xlu0 %1411
        %1413 = vrot.lane.b32.xlu0 %v1404, 40
        %v1414 = vpop.permute.xlu0 %1413
        %v1417 = vadd.f32 %v1407, %v1412
        %v1418 = vadd.f32 %v1408, %v1414
        %1419 = vst.msk [vmem:[#allocation2] sm:$0xff] %vm756, %v1417
        %1420 = vst.msk [vmem:[#allocation2 + $0x8] sm:$0xff] %vm756, %v1418
        %1421 = vmatprep.subr.mxu0 0.0
        %1422 = vmatpush1.msra.mxu0 0.0
        %1423 = vmatprep.subr.mxu0 0.0
        %1424 = vmatpush1.msra.mxu0 0.0
        %1425 = vmatprep.subr.mxu0 0.0
        %1426 = vmatpush1.msra.mxu0 0.0
        %1427 = vmatprep.subr.mxu0 0.0
        %1428 = vmatpush1.msra.mxu0 0.0
        %1429 = vmatprep.subr.mxu0 0.0
        %1430 = vmatpush1.msra.mxu0 0.0
        %1431 = vmatprep.subr.mxu0 0.0
        %1432 = vmatpush1.msra.mxu0 0.0
        %1433 = vmatprep.subr.mxu0 0.0
        %1434 = vmatpush1.msra.mxu0 0.0
        %1435 = vmatprep.subr.mxu0 0.0
        %1436 = vmatpush1.msra.mxu0 0.0
        %1437 = vmatprep.subr.mxu0 0.0
        %1438 = vmatpush1.msra.mxu0 0.0
        %1439 = vmatprep.subr.mxu0 0.0
        %1440 = vmatpush1.msra.mxu0 0.0
        %1441 = vmatprep.subr.mxu0 0.0
        %1442 = vmatpush1.msra.mxu0 0.0
        %1443 = vmatprep.subr.mxu0 0.0
        %1444 = vmatpush1.msra.mxu0 0.0
        %1445 = vmatprep.subr.mxu0 0.0
        %1446 = vmatpush1.msra.mxu0 0.0
        %1447 = vmatprep.subr.mxu0 0.0
        %1448 = vmatpush1.msra.mxu0 0.0
        %1449 = vmatprep.subr.mxu0 0.0
        %1450 = vmatpush1.msra.mxu0 %v840
        %1451 = vmatprep.subr.mxu0 0.0
        %1452 = vmatpush1.msra.mxu0 %v835
        %1453 = vmatprep.subr.mxu0 0.0
        %1454 = vmatpush2.msra.mxu0 0.0
        %1455 = vmatprep.subr.mxu0 0.0
        %1456 = vmatpush2.msra.mxu0 0.0
        %1457 = vmatprep.subr.mxu0 0.0
        %1458 = vmatpush2.msra.mxu0 0.0
        %1459 = vmatprep.subr.mxu0 0.0
        %1460 = vmatpush2.msra.mxu0 0.0
        %1461 = vmatprep.subr.mxu0 0.0
        %1462 = vmatpush2.msra.mxu0 0.0
        %1463 = vmatprep.subr.mxu0 0.0
        %1464 = vmatpush2.msra.mxu0 0.0
        %1465 = vmatprep.subr.mxu0 0.0
        %1466 = vmatpush2.msra.mxu0 0.0
        %1467 = vmatprep.subr.mxu0 0.0
        %1468 = vmatpush2.msra.mxu0 0.0
        %1469 = vmatprep.subr.mxu0 0.0
        %1470 = vmatpush2.msra.mxu0 0.0
        %1471 = vmatprep.subr.mxu0 0.0
        %1472 = vmatpush2.msra.mxu0 0.0
        %1473 = vmatprep.subr.mxu0 0.0
        %1474 = vmatpush2.msra.mxu0 0.0
        %1475 = vmatprep.subr.mxu0 0.0
        %1476 = vmatpush2.msra.mxu0 0.0
        %1477 = vmatprep.subr.mxu0 0.0
        %1478 = vmatpush2.msra.mxu0 0.0
        %1479 = vmatprep.subr.mxu0 0.0
        %1480 = vmatpush2.msra.mxu0 0.0
        %1481 = vmatprep.subr.mxu0 0.0
        %1482 = vmatpush2.msra.mxu0 0.0
        %1483 = vmatprep.subr.mxu0 0.0
        %1484 = vmatpush2.msra.mxu0 0.0
        %1485 = vmatprep.mubr.f32.mxu0 0.0
        %1486 = vmatmul.mubr.f32.gmra.mxu0 %v763
        %v1487 = vpop.f32.mrf.mxu0
        %v1488 = vadd.f32 0.0, %v1487
        %v1489 = vpop.f32.mrf.mxu0
        %1490 = vmatprep.mubr.f32.mxu0 0.0
        %1491 = vmatmul.mubr.f32.gmra.mxu0 %v766
        %v1492 = vpop.f32.mrf.mxu0
        %v1493 = vadd.f32 0.0, %v1492
        %v1494 = vpop.f32.mrf.mxu0
        %1495 = vdwg.mxu0
        %s1496 = scalar_lea.vmem %s2, 32
        %v1497 = vld [vmem:[%s1496] sm:$0xff]
        %v1498 = vld [vmem:[%s1496 + $0x8] sm:$0xf]
        %v1500 = vsel %vm200, %v1488, 0
        %v1503 = vsel %vm200, %v1493, 0
        %v1506 = vsel %vm207, %v1498, 0
        %1508 = vmatprep.subr.mxu0 0.0
        %1509 = vmatpush1.msra.mxu0 0.0
        %1510 = vmatprep.subr.mxu0 0.0
        %1511 = vmatpush1.msra.mxu0 0.0
        %1512 = vmatprep.subr.mxu0 0.0
        %1513 = vmatpush1.msra.mxu0 0.0
        %1514 = vmatprep.subr.mxu0 0.0
        %1515 = vmatpush1.msra.mxu0 0.0
        %1516 = vmatprep.subr.mxu0 0.0
        %1517 = vmatpush1.msra.mxu0 0.0
        %1518 = vmatprep.subr.mxu0 0.0
        %1519 = vmatpush1.msra.mxu0 0.0
        %1520 = vmatprep.subr.mxu0 0.0
        %1521 = vmatpush1.msra.mxu0 0.0
        %1522 = vmatprep.subr.mxu0 0.0
        %1523 = vmatpush1.msra.mxu0 0.0
        %1524 = vmatprep.subr.mxu0 0.0
        %1525 = vmatpush1.msra.mxu0 0.0
        %1526 = vmatprep.subr.mxu0 0.0
        %1527 = vmatpush1.msra.mxu0 0.0
        %1528 = vmatprep.subr.mxu0 0.0
        %1529 = vmatpush1.msra.mxu0 0.0
        %1530 = vmatprep.subr.mxu0 0.0
        %1531 = vmatpush1.msra.mxu0 0.0
        %1532 = vmatprep.subr.mxu0 0.0
        %1533 = vmatpush1.msra.mxu0 0.0
        %1534 = vmatprep.subr.mxu0 0.0
        %1535 = vmatpush1.msra.mxu0 0.0
        %1536 = vmatprep.subr.mxu0 0.0
        %1537 = vmatpush1.msra.mxu0 %v1506
        %1538 = vmatprep.subr.mxu0 0.0
        %1539 = vmatpush1.msra.mxu0 %v1497
        %1540 = vmatprep.subr.mxu0 0.0
        %1541 = vmatpush2.msra.mxu0 0.0
        %1542 = vmatprep.subr.mxu0 0.0
        %1543 = vmatpush2.msra.mxu0 0.0
        %1544 = vmatprep.subr.mxu0 0.0
        %1545 = vmatpush2.msra.mxu0 0.0
        %1546 = vmatprep.subr.mxu0 0.0
        %1547 = vmatpush2.msra.mxu0 0.0
        %1548 = vmatprep.subr.mxu0 0.0
        %1549 = vmatpush2.msra.mxu0 0.0
        %1550 = vmatprep.subr.mxu0 0.0
        %1551 = vmatpush2.msra.mxu0 0.0
        %1552 = vmatprep.subr.mxu0 0.0
        %1553 = vmatpush2.msra.mxu0 0.0
        %1554 = vmatprep.subr.mxu0 0.0
        %1555 = vmatpush2.msra.mxu0 0.0
        %1556 = vmatprep.subr.mxu0 0.0
        %1557 = vmatpush2.msra.mxu0 0.0
        %1558 = vmatprep.subr.mxu0 0.0
        %1559 = vmatpush2.msra.mxu0 0.0
        %1560 = vmatprep.subr.mxu0 0.0
        %1561 = vmatpush2.msra.mxu0 0.0
        %1562 = vmatprep.subr.mxu0 0.0
        %1563 = vmatpush2.msra.mxu0 0.0
        %1564 = vmatprep.subr.mxu0 0.0
        %1565 = vmatpush2.msra.mxu0 0.0
        %1566 = vmatprep.subr.mxu0 0.0
        %1567 = vmatpush2.msra.mxu0 0.0
        %1568 = vmatprep.subr.mxu0 0.0
        %1569 = vmatpush2.msra.mxu0 0.0
        %1570 = vmatprep.subr.mxu0 0.0
        %1571 = vmatpush2.msra.mxu0 0.0
        %1572 = vmatprep.mubr.f32.mxu0 0.0
        %1573 = vmatmul.mubr.f32.gmra.mxu0 %v1500
        %v1574 = vpop.f32.mrf.mxu0
        %v1575 = vadd.f32 0.0, %v1574
        %v1576 = vpop.f32.mrf.mxu0
        %1577 = vmatprep.mubr.f32.mxu0 0.0
        %1578 = vmatmul.mubr.f32.gmra.mxu0 %v1503
        %v1579 = vpop.f32.mrf.mxu0
        %v1580 = vadd.f32 0.0, %v1579
        %v1581 = vpop.f32.mrf.mxu0
        %1582 = vdwg.mxu0
        %v1583 = vld [vmem:[#allocation2] sm:$0xff]
        %v1584 = vld [vmem:[#allocation2 + $0x8] sm:$0xff]
        %v1585 = vadd.f32 %v1583, %v1575
        %v1586 = vadd.f32 %v1584, %v1580
        %1587 = vst.msk [vmem:[#allocation2] sm:$0xff] %vm286, %v1585
        %1588 = vst.msk [vmem:[#allocation2 + $0x8] sm:$0xff] %vm286, %v1586
        %1589 = vrot.lane.b32.xlu0 %v1488, 124
        %v1590 = vpop.permute.xlu0 %1589
        %1591 = vrot.lane.b32.xlu0 %v1493, 124
        %v1592 = vpop.permute.xlu0 %1591
        %v1593 = vsel %vm200, %v1590, 0
        %v1595 = vsel %vm200, %v1592, 0
        %1597 = vmatprep.subr.mxu0 0.0
        %1598 = vmatpush1.msra.mxu0 0.0
        %1599 = vmatprep.subr.mxu0 0.0
        %1600 = vmatpush1.msra.mxu0 0.0
        %1601 = vmatprep.subr.mxu0 0.0
        %1602 = vmatpush1.msra.mxu0 0.0
        %1603 = vmatprep.subr.mxu0 0.0
        %1604 = vmatpush1.msra.mxu0 0.0
        %1605 = vmatprep.subr.mxu0 0.0
        %1606 = vmatpush1.msra.mxu0 0.0
        %1607 = vmatprep.subr.mxu0 0.0
        %1608 = vmatpush1.msra.mxu0 0.0
        %1609 = vmatprep.subr.mxu0 0.0
        %1610 = vmatpush1.msra.mxu0 0.0
        %1611 = vmatprep.subr.mxu0 0.0
        %1612 = vmatpush1.msra.mxu0 0.0
        %1613 = vmatprep.subr.mxu0 0.0
        %1614 = vmatpush1.msra.mxu0 0.0
        %1615 = vmatprep.subr.mxu0 0.0
        %1616 = vmatpush1.msra.mxu0 0.0
        %1617 = vmatprep.subr.mxu0 0.0
        %1618 = vmatpush1.msra.mxu0 0.0
        %1619 = vmatprep.subr.mxu0 0.0
        %1620 = vmatpush1.msra.mxu0 0.0
        %1621 = vmatprep.subr.mxu0 0.0
        %1622 = vmatpush1.msra.mxu0 0.0
        %1623 = vmatprep.subr.mxu0 0.0
        %1624 = vmatpush1.msra.mxu0 0.0
        %1625 = vmatprep.subr.mxu0 0.0
        %1626 = vmatpush1.msra.mxu0 %v1506
        %1627 = vmatprep.subr.mxu0 0.0
        %1628 = vmatpush1.msra.mxu0 %v1497
        %1629 = vmatprep.subr.mxu0 0.0
        %1630 = vmatpush2.msra.mxu0 0.0
        %1631 = vmatprep.subr.mxu0 0.0
        %1632 = vmatpush2.msra.mxu0 0.0
        %1633 = vmatprep.subr.mxu0 0.0
        %1634 = vmatpush2.msra.mxu0 0.0
        %1635 = vmatprep.subr.mxu0 0.0
        %1636 = vmatpush2.msra.mxu0 0.0
        %1637 = vmatprep.subr.mxu0 0.0
        %1638 = vmatpush2.msra.mxu0 0.0
        %1639 = vmatprep.subr.mxu0 0.0
        %1640 = vmatpush2.msra.mxu0 0.0
        %1641 = vmatprep.subr.mxu0 0.0
        %1642 = vmatpush2.msra.mxu0 0.0
        %1643 = vmatprep.subr.mxu0 0.0
        %1644 = vmatpush2.msra.mxu0 0.0
        %1645 = vmatprep.subr.mxu0 0.0
        %1646 = vmatpush2.msra.mxu0 0.0
        %1647 = vmatprep.subr.mxu0 0.0
        %1648 = vmatpush2.msra.mxu0 0.0
        %1649 = vmatprep.subr.mxu0 0.0
        %1650 = vmatpush2.msra.mxu0 0.0
        %1651 = vmatprep.subr.mxu0 0.0
        %1652 = vmatpush2.msra.mxu0 0.0
        %1653 = vmatprep.subr.mxu0 0.0
        %1654 = vmatpush2.msra.mxu0 0.0
        %1655 = vmatprep.subr.mxu0 0.0
        %1656 = vmatpush2.msra.mxu0 0.0
        %1657 = vmatprep.subr.mxu0 0.0
        %1658 = vmatpush2.msra.mxu0 0.0
        %1659 = vmatprep.subr.mxu0 0.0
        %1660 = vmatpush2.msra.mxu0 0.0
        %1661 = vmatprep.mubr.f32.mxu0 0.0
        %1662 = vmatmul.mubr.f32.gmra.mxu0 %v1593
        %v1663 = vpop.f32.mrf.mxu0
        %v1664 = vadd.f32 0.0, %v1663
        %v1665 = vpop.f32.mrf.mxu0
        %1666 = vmatprep.mubr.f32.mxu0 0.0
        %1667 = vmatmul.mubr.f32.gmra.mxu0 %v1595
        %v1668 = vpop.f32.mrf.mxu0
        %v1669 = vadd.f32 0.0, %v1668
        %v1670 = vpop.f32.mrf.mxu0
        %1671 = vdwg.mxu0
        %v1672 = vld [vmem:[#allocation2] sm:$0xff]
        %v1673 = vld [vmem:[#allocation2 + $0x8] sm:$0xff]
        %1676 = vrot.lane.b32.xlu0 %v1664, 8
        %v1677 = vpop.permute.xlu0 %1676
        %1678 = vrot.lane.b32.xlu0 %v1669, 8
        %v1679 = vpop.permute.xlu0 %1678
        %v1682 = vadd.f32 %v1672, %v1677
        %v1683 = vadd.f32 %v1673, %v1679
        %1684 = vst.msk [vmem:[#allocation2] sm:$0xff] %vm380, %v1682
        %1685 = vst.msk [vmem:[#allocation2 + $0x8] sm:$0xff] %vm380, %v1683
        %1686 = vrot.lane.b32.xlu0 %v1488, 120
        %v1687 = vpop.permute.xlu0 %1686
        %1688 = vrot.lane.b32.xlu0 %v1493, 120
        %v1689 = vpop.permute.xlu0 %1688
        %v1690 = vsel %vm200, %v1687, 0
        %v1692 = vsel %vm200, %v1689, 0
        %1694 = vmatprep.subr.mxu0 0.0
        %1695 = vmatpush1.msra.mxu0 0.0
        %1696 = vmatprep.subr.mxu0 0.0
        %1697 = vmatpush1.msra.mxu0 0.0
        %1698 = vmatprep.subr.mxu0 0.0
        %1699 = vmatpush1.msra.mxu0 0.0
        %1700 = vmatprep.subr.mxu0 0.0
        %1701 = vmatpush1.msra.mxu0 0.0
        %1702 = vmatprep.subr.mxu0 0.0
        %1703 = vmatpush1.msra.mxu0 0.0
        %1704 = vmatprep.subr.mxu0 0.0
        %1705 = vmatpush1.msra.mxu0 0.0
        %1706 = vmatprep.subr.mxu0 0.0
        %1707 = vmatpush1.msra.mxu0 0.0
        %1708 = vmatprep.subr.mxu0 0.0
        %1709 = vmatpush1.msra.mxu0 0.0
        %1710 = vmatprep.subr.mxu0 0.0
        %1711 = vmatpush1.msra.mxu0 0.0
        %1712 = vmatprep.subr.mxu0 0.0
        %1713 = vmatpush1.msra.mxu0 0.0
        %1714 = vmatprep.subr.mxu0 0.0
        %1715 = vmatpush1.msra.mxu0 0.0
        %1716 = vmatprep.subr.mxu0 0.0
        %1717 = vmatpush1.msra.mxu0 0.0
        %1718 = vmatprep.subr.mxu0 0.0
        %1719 = vmatpush1.msra.mxu0 0.0
        %1720 = vmatprep.subr.mxu0 0.0
        %1721 = vmatpush1.msra.mxu0 0.0
        %1722 = vmatprep.subr.mxu0 0.0
        %1723 = vmatpush1.msra.mxu0 %v1506
        %1724 = vmatprep.subr.mxu0 0.0
        %1725 = vmatpush1.msra.mxu0 %v1497
        %1726 = vmatprep.subr.mxu0 0.0
        %1727 = vmatpush2.msra.mxu0 0.0
        %1728 = vmatprep.subr.mxu0 0.0
        %1729 = vmatpush2.msra.mxu0 0.0
        %1730 = vmatprep.subr.mxu0 0.0
        %1731 = vmatpush2.msra.mxu0 0.0
        %1732 = vmatprep.subr.mxu0 0.0
        %1733 = vmatpush2.msra.mxu0 0.0
        %1734 = vmatprep.subr.mxu0 0.0
        %1735 = vmatpush2.msra.mxu0 0.0
        %1736 = vmatprep.subr.mxu0 0.0
        %1737 = vmatpush2.msra.mxu0 0.0
        %1738 = vmatprep.subr.mxu0 0.0
        %1739 = vmatpush2.msra.mxu0 0.0
        %1740 = vmatprep.subr.mxu0 0.0
        %1741 = vmatpush2.msra.mxu0 0.0
        %1742 = vmatprep.subr.mxu0 0.0
        %1743 = vmatpush2.msra.mxu0 0.0
        %1744 = vmatprep.subr.mxu0 0.0
        %1745 = vmatpush2.msra.mxu0 0.0
        %1746 = vmatprep.subr.mxu0 0.0
        %1747 = vmatpush2.msra.mxu0 0.0
        %1748 = vmatprep.subr.mxu0 0.0
        %1749 = vmatpush2.msra.mxu0 0.0
        %1750 = vmatprep.subr.mxu0 0.0
        %1751 = vmatpush2.msra.mxu0 0.0
        %1752 = vmatprep.subr.mxu0 0.0
        %1753 = vmatpush2.msra.mxu0 0.0
        %1754 = vmatprep.subr.mxu0 0.0
        %1755 = vmatpush2.msra.mxu0 0.0
        %1756 = vmatprep.subr.mxu0 0.0
        %1757 = vmatpush2.msra.mxu0 0.0
        %1758 = vmatprep.mubr.f32.mxu0 0.0
        %1759 = vmatmul.mubr.f32.gmra.mxu0 %v1690
        %v1760 = vpop.f32.mrf.mxu0
        %v1761 = vadd.f32 0.0, %v1760
        %v1762 = vpop.f32.mrf.mxu0
        %1763 = vmatprep.mubr.f32.mxu0 0.0
        %1764 = vmatmul.mubr.f32.gmra.mxu0 %v1692
        %v1765 = vpop.f32.mrf.mxu0
        %v1766 = vadd.f32 0.0, %v1765
        %v1767 = vpop.f32.mrf.mxu0
        %1768 = vdwg.mxu0
        %v1769 = vld [vmem:[#allocation2] sm:$0xff]
        %v1770 = vld [vmem:[#allocation2 + $0x8] sm:$0xff]
        %1773 = vrot.lane.b32.xlu0 %v1761, 16
        %v1774 = vpop.permute.xlu0 %1773
        %1775 = vrot.lane.b32.xlu0 %v1766, 16
        %v1776 = vpop.permute.xlu0 %1775
        %v1779 = vadd.f32 %v1769, %v1774
        %v1780 = vadd.f32 %v1770, %v1776
        %1781 = vst.msk [vmem:[#allocation2] sm:$0xff] %vm474, %v1779
        %1782 = vst.msk [vmem:[#allocation2 + $0x8] sm:$0xff] %vm474, %v1780
        %1783 = vrot.lane.b32.xlu0 %v1488, 116
        %v1784 = vpop.permute.xlu0 %1783
        %1785 = vrot.lane.b32.xlu0 %v1493, 116
        %v1786 = vpop.permute.xlu0 %1785
        %v1787 = vsel %vm200, %v1784, 0
        %v1789 = vsel %vm200, %v1786, 0
        %1791 = vmatprep.subr.mxu0 0.0
        %1792 = vmatpush1.msra.mxu0 0.0
        %1793 = vmatprep.subr.mxu0 0.0
        %1794 = vmatpush1.msra.mxu0 0.0
        %1795 = vmatprep.subr.mxu0 0.0
        %1796 = vmatpush1.msra.mxu0 0.0
        %1797 = vmatprep.subr.mxu0 0.0
        %1798 = vmatpush1.msra.mxu0 0.0
        %1799 = vmatprep.subr.mxu0 0.0
        %1800 = vmatpush1.msra.mxu0 0.0
        %1801 = vmatprep.subr.mxu0 0.0
        %1802 = vmatpush1.msra.mxu0 0.0
        %1803 = vmatprep.subr.mxu0 0.0
        %1804 = vmatpush1.msra.mxu0 0.0
        %1805 = vmatprep.subr.mxu0 0.0
        %1806 = vmatpush1.msra.mxu0 0.0
        %1807 = vmatprep.subr.mxu0 0.0
        %1808 = vmatpush1.msra.mxu0 0.0
        %1809 = vmatprep.subr.mxu0 0.0
        %1810 = vmatpush1.msra.mxu0 0.0
        %1811 = vmatprep.subr.mxu0 0.0
        %1812 = vmatpush1.msra.mxu0 0.0
        %1813 = vmatprep.subr.mxu0 0.0
        %1814 = vmatpush1.msra.mxu0 0.0
        %1815 = vmatprep.subr.mxu0 0.0
        %1816 = vmatpush1.msra.mxu0 0.0
        %1817 = vmatprep.subr.mxu0 0.0
        %1818 = vmatpush1.msra.mxu0 0.0
        %1819 = vmatprep.subr.mxu0 0.0
        %1820 = vmatpush1.msra.mxu0 %v1506
        %1821 = vmatprep.subr.mxu0 0.0
        %1822 = vmatpush1.msra.mxu0 %v1497
        %1823 = vmatprep.subr.mxu0 0.0
        %1824 = vmatpush2.msra.mxu0 0.0
        %1825 = vmatprep.subr.mxu0 0.0
        %1826 = vmatpush2.msra.mxu0 0.0
        %1827 = vmatprep.subr.mxu0 0.0
        %1828 = vmatpush2.msra.mxu0 0.0
        %1829 = vmatprep.subr.mxu0 0.0
        %1830 = vmatpush2.msra.mxu0 0.0
        %1831 = vmatprep.subr.mxu0 0.0
        %1832 = vmatpush2.msra.mxu0 0.0
        %1833 = vmatprep.subr.mxu0 0.0
        %1834 = vmatpush2.msra.mxu0 0.0
        %1835 = vmatprep.subr.mxu0 0.0
        %1836 = vmatpush2.msra.mxu0 0.0
        %1837 = vmatprep.subr.mxu0 0.0
        %1838 = vmatpush2.msra.mxu0 0.0
        %1839 = vmatprep.subr.mxu0 0.0
        %1840 = vmatpush2.msra.mxu0 0.0
        %1841 = vmatprep.subr.mxu0 0.0
        %1842 = vmatpush2.msra.mxu0 0.0
        %1843 = vmatprep.subr.mxu0 0.0
        %1844 = vmatpush2.msra.mxu0 0.0
        %1845 = vmatprep.subr.mxu0 0.0
        %1846 = vmatpush2.msra.mxu0 0.0
        %1847 = vmatprep.subr.mxu0 0.0
        %1848 = vmatpush2.msra.mxu0 0.0
        %1849 = vmatprep.subr.mxu0 0.0
        %1850 = vmatpush2.msra.mxu0 0.0
        %1851 = vmatprep.subr.mxu0 0.0
        %1852 = vmatpush2.msra.mxu0 0.0
        %1853 = vmatprep.subr.mxu0 0.0
        %1854 = vmatpush2.msra.mxu0 0.0
        %1855 = vmatprep.mubr.f32.mxu0 0.0
        %1856 = vmatmul.mubr.f32.gmra.mxu0 %v1787
        %v1857 = vpop.f32.mrf.mxu0
        %v1858 = vadd.f32 0.0, %v1857
        %v1859 = vpop.f32.mrf.mxu0
        %1860 = vmatprep.mubr.f32.mxu0 0.0
        %1861 = vmatmul.mubr.f32.gmra.mxu0 %v1789
        %v1862 = vpop.f32.mrf.mxu0
        %v1863 = vadd.f32 0.0, %v1862
        %v1864 = vpop.f32.mrf.mxu0
        %1865 = vdwg.mxu0
        %v1866 = vld [vmem:[#allocation2] sm:$0xff]
        %v1867 = vld [vmem:[#allocation2 + $0x8] sm:$0xff]
        %1870 = vrot.lane.b32.xlu0 %v1858, 24
        %v1871 = vpop.permute.xlu0 %1870
        %1872 = vrot.lane.b32.xlu0 %v1863, 24
        %v1873 = vpop.permute.xlu0 %1872
        %v1876 = vadd.f32 %v1866, %v1871
        %v1877 = vadd.f32 %v1867, %v1873
        %1878 = vst.msk [vmem:[#allocation2] sm:$0xff] %vm568, %v1876
        %1879 = vst.msk [vmem:[#allocation2 + $0x8] sm:$0xff] %vm568, %v1877
        %1880 = vrot.lane.b32.xlu0 %v1488, 112
        %v1881 = vpop.permute.xlu0 %1880
        %1882 = vrot.lane.b32.xlu0 %v1493, 112
        %v1883 = vpop.permute.xlu0 %1882
        %v1884 = vsel %vm200, %v1881, 0
        %v1886 = vsel %vm200, %v1883, 0
        %1888 = vmatprep.subr.mxu0 0.0
        %1889 = vmatpush1.msra.mxu0 0.0
        %1890 = vmatprep.subr.mxu0 0.0
        %1891 = vmatpush1.msra.mxu0 0.0
        %1892 = vmatprep.subr.mxu0 0.0
        %1893 = vmatpush1.msra.mxu0 0.0
        %1894 = vmatprep.subr.mxu0 0.0
        %1895 = vmatpush1.msra.mxu0 0.0
        %1896 = vmatprep.subr.mxu0 0.0
        %1897 = vmatpush1.msra.mxu0 0.0
        %1898 = vmatprep.subr.mxu0 0.0
        %1899 = vmatpush1.msra.mxu0 0.0
        %1900 = vmatprep.subr.mxu0 0.0
        %1901 = vmatpush1.msra.mxu0 0.0
        %1902 = vmatprep.subr.mxu0 0.0
        %1903 = vmatpush1.msra.mxu0 0.0
        %1904 = vmatprep.subr.mxu0 0.0
        %1905 = vmatpush1.msra.mxu0 0.0
        %1906 = vmatprep.subr.mxu0 0.0
        %1907 = vmatpush1.msra.mxu0 0.0
        %1908 = vmatprep.subr.mxu0 0.0
        %1909 = vmatpush1.msra.mxu0 0.0
        %1910 = vmatprep.subr.mxu0 0.0
        %1911 = vmatpush1.msra.mxu0 0.0
        %1912 = vmatprep.subr.mxu0 0.0
        %1913 = vmatpush1.msra.mxu0 0.0
        %1914 = vmatprep.subr.mxu0 0.0
        %1915 = vmatpush1.msra.mxu0 0.0
        %1916 = vmatprep.subr.mxu0 0.0
        %1917 = vmatpush1.msra.mxu0 %v1506
        %1918 = vmatprep.subr.mxu0 0.0
        %1919 = vmatpush1.msra.mxu0 %v1497
        %1920 = vmatprep.subr.mxu0 0.0
        %1921 = vmatpush2.msra.mxu0 0.0
        %1922 = vmatprep.subr.mxu0 0.0
        %1923 = vmatpush2.msra.mxu0 0.0
        %1924 = vmatprep.subr.mxu0 0.0
        %1925 = vmatpush2.msra.mxu0 0.0
        %1926 = vmatprep.subr.mxu0 0.0
        %1927 = vmatpush2.msra.mxu0 0.0
        %1928 = vmatprep.subr.mxu0 0.0
        %1929 = vmatpush2.msra.mxu0 0.0
        %1930 = vmatprep.subr.mxu0 0.0
        %1931 = vmatpush2.msra.mxu0 0.0
        %1932 = vmatprep.subr.mxu0 0.0
        %1933 = vmatpush2.msra.mxu0 0.0
        %1934 = vmatprep.subr.mxu0 0.0
        %1935 = vmatpush2.msra.mxu0 0.0
        %1936 = vmatprep.subr.mxu0 0.0
        %1937 = vmatpush2.msra.mxu0 0.0
        %1938 = vmatprep.subr.mxu0 0.0
        %1939 = vmatpush2.msra.mxu0 0.0
        %1940 = vmatprep.subr.mxu0 0.0
        %1941 = vmatpush2.msra.mxu0 0.0
        %1942 = vmatprep.subr.mxu0 0.0
        %1943 = vmatpush2.msra.mxu0 0.0
        %1944 = vmatprep.subr.mxu0 0.0
        %1945 = vmatpush2.msra.mxu0 0.0
        %1946 = vmatprep.subr.mxu0 0.0
        %1947 = vmatpush2.msra.mxu0 0.0
        %1948 = vmatprep.subr.mxu0 0.0
        %1949 = vmatpush2.msra.mxu0 0.0
        %1950 = vmatprep.subr.mxu0 0.0
        %1951 = vmatpush2.msra.mxu0 0.0
        %1952 = vmatprep.mubr.f32.mxu0 0.0
        %1953 = vmatmul.mubr.f32.gmra.mxu0 %v1884
        %v1954 = vpop.f32.mrf.mxu0
        %v1955 = vadd.f32 0.0, %v1954
        %v1956 = vpop.f32.mrf.mxu0
        %1957 = vmatprep.mubr.f32.mxu0 0.0
        %1958 = vmatmul.mubr.f32.gmra.mxu0 %v1886
        %v1959 = vpop.f32.mrf.mxu0
        %v1960 = vadd.f32 0.0, %v1959
        %v1961 = vpop.f32.mrf.mxu0
        %1962 = vdwg.mxu0
        %v1963 = vld [vmem:[#allocation2] sm:$0xff]
        %v1964 = vld [vmem:[#allocation2 + $0x8] sm:$0xff]
        %1967 = vrot.lane.b32.xlu0 %v1955, 32
        %v1968 = vpop.permute.xlu0 %1967
        %1969 = vrot.lane.b32.xlu0 %v1960, 32
        %v1970 = vpop.permute.xlu0 %1969
        %v1973 = vadd.f32 %v1963, %v1968
        %v1974 = vadd.f32 %v1964, %v1970
        %1975 = vst.msk [vmem:[#allocation2] sm:$0xff] %vm662, %v1973
        %1976 = vst.msk [vmem:[#allocation2 + $0x8] sm:$0xff] %vm662, %v1974
        %1977 = vrot.lane.b32.xlu0 %v1488, 108
        %v1978 = vpop.permute.xlu0 %1977
        %1979 = vrot.lane.b32.xlu0 %v1493, 108
        %v1980 = vpop.permute.xlu0 %1979
        %v1981 = vsel %vm200, %v1978, 0
        %v1983 = vsel %vm200, %v1980, 0
        %1985 = vmatprep.subr.mxu0 0.0
        %1986 = vmatpush1.msra.mxu0 0.0
        %1987 = vmatprep.subr.mxu0 0.0
        %1988 = vmatpush1.msra.mxu0 0.0
        %1989 = vmatprep.subr.mxu0 0.0
        %1990 = vmatpush1.msra.mxu0 0.0
        %1991 = vmatprep.subr.mxu0 0.0
        %1992 = vmatpush1.msra.mxu0 0.0
        %1993 = vmatprep.subr.mxu0 0.0
        %1994 = vmatpush1.msra.mxu0 0.0
        %1995 = vmatprep.subr.mxu0 0.0
        %1996 = vmatpush1.msra.mxu0 0.0
        %1997 = vmatprep.subr.mxu0 0.0
        %1998 = vmatpush1.msra.mxu0 0.0
        %1999 = vmatprep.subr.mxu0 0.0
        %2000 = vmatpush1.msra.mxu0 0.0
        %2001 = vmatprep.subr.mxu0 0.0
        %2002 = vmatpush1.msra.mxu0 0.0
        %2003 = vmatprep.subr.mxu0 0.0
        %2004 = vmatpush1.msra.mxu0 0.0
        %2005 = vmatprep.subr.mxu0 0.0
        %2006 = vmatpush1.msra.mxu0 0.0
        %2007 = vmatprep.subr.mxu0 0.0
        %2008 = vmatpush1.msra.mxu0 0.0
        %2009 = vmatprep.subr.mxu0 0.0
        %2010 = vmatpush1.msra.mxu0 0.0
        %2011 = vmatprep.subr.mxu0 0.0
        %2012 = vmatpush1.msra.mxu0 0.0
        %2013 = vmatprep.subr.mxu0 0.0
        %2014 = vmatpush1.msra.mxu0 %v1506
        %2015 = vmatprep.subr.mxu0 0.0
        %2016 = vmatpush1.msra.mxu0 %v1497
        %2017 = vmatprep.subr.mxu0 0.0
        %2018 = vmatpush2.msra.mxu0 0.0
        %2019 = vmatprep.subr.mxu0 0.0
        %2020 = vmatpush2.msra.mxu0 0.0
        %2021 = vmatprep.subr.mxu0 0.0
        %2022 = vmatpush2.msra.mxu0 0.0
        %2023 = vmatprep.subr.mxu0 0.0
        %2024 = vmatpush2.msra.mxu0 0.0
        %2025 = vmatprep.subr.mxu0 0.0
        %2026 = vmatpush2.msra.mxu0 0.0
        %2027 = vmatprep.subr.mxu0 0.0
        %2028 = vmatpush2.msra.mxu0 0.0
        %2029 = vmatprep.subr.mxu0 0.0
        %2030 = vmatpush2.msra.mxu0 0.0
        %2031 = vmatprep.subr.mxu0 0.0
        %2032 = vmatpush2.msra.mxu0 0.0
        %2033 = vmatprep.subr.mxu0 0.0
        %2034 = vmatpush2.msra.mxu0 0.0
        %2035 = vmatprep.subr.mxu0 0.0
        %2036 = vmatpush2.msra.mxu0 0.0
        %2037 = vmatprep.subr.mxu0 0.0
        %2038 = vmatpush2.msra.mxu0 0.0
        %2039 = vmatprep.subr.mxu0 0.0
        %2040 = vmatpush2.msra.mxu0 0.0
        %2041 = vmatprep.subr.mxu0 0.0
        %2042 = vmatpush2.msra.mxu0 0.0
        %2043 = vmatprep.subr.mxu0 0.0
        %2044 = vmatpush2.msra.mxu0 0.0
        %2045 = vmatprep.subr.mxu0 0.0
        %2046 = vmatpush2.msra.mxu0 0.0
        %2047 = vmatprep.subr.mxu0 0.0
        %2048 = vmatpush2.msra.mxu0 0.0
        %2049 = vmatprep.mubr.f32.mxu0 0.0
        %2050 = vmatmul.mubr.f32.gmra.mxu0 %v1981
        %v2051 = vpop.f32.mrf.mxu0
        %v2052 = vadd.f32 0.0, %v2051
        %v2053 = vpop.f32.mrf.mxu0
        %2054 = vmatprep.mubr.f32.mxu0 0.0
        %2055 = vmatmul.mubr.f32.gmra.mxu0 %v1983
        %v2056 = vpop.f32.mrf.mxu0
        %v2057 = vadd.f32 0.0, %v2056
        %v2058 = vpop.f32.mrf.mxu0
        %2059 = vdwg.mxu0
        %v2060 = vld [vmem:[#allocation2] sm:$0xff]
        %v2061 = vld [vmem:[#allocation2 + $0x8] sm:$0xff]
        %2064 = vrot.lane.b32.xlu0 %v2052, 40
        %v2065 = vpop.permute.xlu0 %2064
        %2066 = vrot.lane.b32.xlu0 %v2057, 40
        %v2067 = vpop.permute.xlu0 %2066
        %v2070 = vadd.f32 %v2060, %v2065
        %v2071 = vadd.f32 %v2061, %v2067
        %2072 = vst.msk [vmem:[#allocation2] sm:$0xff] %vm756, %v2070
        %2073 = vst.msk [vmem:[#allocation2 + $0x8] sm:$0xff] %vm756, %v2071
        %s2074 = scalar_lea.vmem %s1, 16
        %v2075 = vld [vmem:[%s2074] sm:$0xff]
        %v2076 = vld [vmem:[%s2074 + $0x8] sm:$0xff]
        %v2078 = vsel %vm761, %v2075, 0
        %v2081 = vsel %vm761, %v2076, 0
        %2083 = vmatprep.subr.mxu0 0.0
        %2084 = vmatpush1.msra.mxu0 0.0
        %2085 = vmatprep.subr.mxu0 0.0
        %2086 = vmatpush1.msra.mxu0 0.0
        %2087 = vmatprep.subr.mxu0 0.0
        %2088 = vmatpush1.msra.mxu0 0.0
        %2089 = vmatprep.subr.mxu0 0.0
        %2090 = vmatpush1.msra.mxu0 0.0
        %2091 = vmatprep.subr.mxu0 0.0
        %2092 = vmatpush1.msra.mxu0 0.0
        %2093 = vmatprep.subr.mxu0 0.0
        %2094 = vmatpush1.msra.mxu0 0.0
        %2095 = vmatprep.subr.mxu0 0.0
        %2096 = vmatpush1.msra.mxu0 0.0
        %2097 = vmatprep.subr.mxu0 0.0
        %2098 = vmatpush1.msra.mxu0 0.0
        %2099 = vmatprep.subr.mxu0 0.0
        %2100 = vmatpush1.msra.mxu0 0.0
        %2101 = vmatprep.subr.mxu0 0.0
        %2102 = vmatpush1.msra.mxu0 0.0
        %2103 = vmatprep.subr.mxu0 0.0
        %2104 = vmatpush1.msra.mxu0 0.0
        %2105 = vmatprep.subr.mxu0 0.0
        %2106 = vmatpush1.msra.mxu0 0.0
        %2107 = vmatprep.subr.mxu0 0.0
        %2108 = vmatpush1.msra.mxu0 0.0
        %2109 = vmatprep.subr.mxu0 0.0
        %2110 = vmatpush1.msra.mxu0 0.0
        %2111 = vmatprep.subr.mxu0 0.0
        %2112 = vmatpush1.msra.mxu0 %v197
        %2113 = vmatprep.subr.mxu0 0.0
        %2114 = vmatpush1.msra.mxu0 %v196
        %2115 = vmatprep.subr.mxu0 0.0
        %2116 = vmatpush2.msra.mxu0 0.0
        %2117 = vmatprep.subr.mxu0 0.0
        %2118 = vmatpush2.msra.mxu0 0.0
        %2119 = vmatprep.subr.mxu0 0.0
        %2120 = vmatpush2.msra.mxu0 0.0
        %2121 = vmatprep.subr.mxu0 0.0
        %2122 = vmatpush2.msra.mxu0 0.0
        %2123 = vmatprep.subr.mxu0 0.0
        %2124 = vmatpush2.msra.mxu0 0.0
        %2125 = vmatprep.subr.mxu0 0.0
        %2126 = vmatpush2.msra.mxu0 0.0
        %2127 = vmatprep.subr.mxu0 0.0
        %2128 = vmatpush2.msra.mxu0 0.0
        %2129 = vmatprep.subr.mxu0 0.0
        %2130 = vmatpush2.msra.mxu0 0.0
        %2131 = vmatprep.subr.mxu0 0.0
        %2132 = vmatpush2.msra.mxu0 0.0
        %2133 = vmatprep.subr.mxu0 0.0
        %2134 = vmatpush2.msra.mxu0 0.0
        %2135 = vmatprep.subr.mxu0 0.0
        %2136 = vmatpush2.msra.mxu0 0.0
        %2137 = vmatprep.subr.mxu0 0.0
        %2138 = vmatpush2.msra.mxu0 0.0
        %2139 = vmatprep.subr.mxu0 0.0
        %2140 = vmatpush2.msra.mxu0 0.0
        %2141 = vmatprep.subr.mxu0 0.0
        %2142 = vmatpush2.msra.mxu0 0.0
        %2143 = vmatprep.subr.mxu0 0.0
        %2144 = vmatpush2.msra.mxu0 0.0
        %2145 = vmatprep.subr.mxu0 0.0
        %2146 = vmatpush2.msra.mxu0 0.0
        %2147 = vmatprep.mubr.f32.mxu0 0.0
        %2148 = vmatmul.mubr.f32.gmra.mxu0 %v2078
        %v2149 = vpop.f32.mrf.mxu0
        %v2150 = vadd.f32 0.0, %v2149
        %v2151 = vpop.f32.mrf.mxu0
        %2152 = vmatprep.mubr.f32.mxu0 0.0
        %2153 = vmatmul.mubr.f32.gmra.mxu0 %v2081
        %v2154 = vpop.f32.mrf.mxu0
        %v2155 = vadd.f32 0.0, %v2154
        %v2156 = vpop.f32.mrf.mxu0
        %2157 = vdwg.mxu0
        %s2158 = scalar_lea.vmem %s2, 48
        %v2159 = vld [vmem:[%s2158] sm:$0xff]
        %v2160 = vld [vmem:[%s2158 + $0x8] sm:$0xf]
        %v2162 = vsel %vm200, %v2150, 0
        %v2165 = vsel %vm200, %v2155, 0
        %v2168 = vsel %vm207, %v2160, 0
        %2170 = vmatprep.subr.mxu0 0.0
        %2171 = vmatpush1.msra.mxu0 0.0
        %2172 = vmatprep.subr.mxu0 0.0
        %2173 = vmatpush1.msra.mxu0 0.0
        %2174 = vmatprep.subr.mxu0 0.0
        %2175 = vmatpush1.msra.mxu0 0.0
        %2176 = vmatprep.subr.mxu0 0.0
        %2177 = vmatpush1.msra.mxu0 0.0
        %2178 = vmatprep.subr.mxu0 0.0
        %2179 = vmatpush1.msra.mxu0 0.0
        %2180 = vmatprep.subr.mxu0 0.0
        %2181 = vmatpush1.msra.mxu0 0.0
        %2182 = vmatprep.subr.mxu0 0.0
        %2183 = vmatpush1.msra.mxu0 0.0
        %2184 = vmatprep.subr.mxu0 0.0
        %2185 = vmatpush1.msra.mxu0 0.0
        %2186 = vmatprep.subr.mxu0 0.0
        %2187 = vmatpush1.msra.mxu0 0.0
        %2188 = vmatprep.subr.mxu0 0.0
        %2189 = vmatpush1.msra.mxu0 0.0
        %2190 = vmatprep.subr.mxu0 0.0
        %2191 = vmatpush1.msra.mxu0 0.0
        %2192 = vmatprep.subr.mxu0 0.0
        %2193 = vmatpush1.msra.mxu0 0.0
        %2194 = vmatprep.subr.mxu0 0.0
        %2195 = vmatpush1.msra.mxu0 0.0
        %2196 = vmatprep.subr.mxu0 0.0
        %2197 = vmatpush1.msra.mxu0 0.0
        %2198 = vmatprep.subr.mxu0 0.0
        %2199 = vmatpush1.msra.mxu0 %v2168
        %2200 = vmatprep.subr.mxu0 0.0
        %2201 = vmatpush1.msra.mxu0 %v2159
        %2202 = vmatprep.subr.mxu0 0.0
        %2203 = vmatpush2.msra.mxu0 0.0
        %2204 = vmatprep.subr.mxu0 0.0
        %2205 = vmatpush2.msra.mxu0 0.0
        %2206 = vmatprep.subr.mxu0 0.0
        %2207 = vmatpush2.msra.mxu0 0.0
        %2208 = vmatprep.subr.mxu0 0.0
        %2209 = vmatpush2.msra.mxu0 0.0
        %2210 = vmatprep.subr.mxu0 0.0
        %2211 = vmatpush2.msra.mxu0 0.0
        %2212 = vmatprep.subr.mxu0 0.0
        %2213 = vmatpush2.msra.mxu0 0.0
        %2214 = vmatprep.subr.mxu0 0.0
        %2215 = vmatpush2.msra.mxu0 0.0
        %2216 = vmatprep.subr.mxu0 0.0
        %2217 = vmatpush2.msra.mxu0 0.0
        %2218 = vmatprep.subr.mxu0 0.0
        %2219 = vmatpush2.msra.mxu0 0.0
        %2220 = vmatprep.subr.mxu0 0.0
        %2221 = vmatpush2.msra.mxu0 0.0
        %2222 = vmatprep.subr.mxu0 0.0
        %2223 = vmatpush2.msra.mxu0 0.0
        %2224 = vmatprep.subr.mxu0 0.0
        %2225 = vmatpush2.msra.mxu0 0.0
        %2226 = vmatprep.subr.mxu0 0.0
        %2227 = vmatpush2.msra.mxu0 0.0
        %2228 = vmatprep.subr.mxu0 0.0
        %2229 = vmatpush2.msra.mxu0 0.0
        %2230 = vmatprep.subr.mxu0 0.0
        %2231 = vmatpush2.msra.mxu0 0.0
        %2232 = vmatprep.subr.mxu0 0.0
        %2233 = vmatpush2.msra.mxu0 0.0
        %2234 = vmatprep.mubr.f32.mxu0 0.0
        %2235 = vmatmul.mubr.f32.gmra.mxu0 %v2162
        %v2236 = vpop.f32.mrf.mxu0
        %v2237 = vadd.f32 0.0, %v2236
        %v2238 = vpop.f32.mrf.mxu0
        %2239 = vmatprep.mubr.f32.mxu0 0.0
        %2240 = vmatmul.mubr.f32.gmra.mxu0 %v2165
        %v2241 = vpop.f32.mrf.mxu0
        %v2242 = vadd.f32 0.0, %v2241
        %v2243 = vpop.f32.mrf.mxu0
        %2244 = vdwg.mxu0
        %v2245 = vld [vmem:[#allocation2] sm:$0xff]
        %v2246 = vld [vmem:[#allocation2 + $0x8] sm:$0xff]
        %v2247 = vadd.f32 %v2245, %v2237
        %v2248 = vadd.f32 %v2246, %v2242
        %2249 = vst.msk [vmem:[#allocation2] sm:$0xff] %vm286, %v2247
        %2250 = vst.msk [vmem:[#allocation2 + $0x8] sm:$0xff] %vm286, %v2248
        %2251 = vrot.lane.b32.xlu0 %v2150, 124
        %v2252 = vpop.permute.xlu0 %2251
        %2253 = vrot.lane.b32.xlu0 %v2155, 124
        %v2254 = vpop.permute.xlu0 %2253
        %v2255 = vsel %vm200, %v2252, 0
        %v2257 = vsel %vm200, %v2254, 0
        %2259 = vmatprep.subr.mxu0 0.0
        %2260 = vmatpush1.msra.mxu0 0.0
        %2261 = vmatprep.subr.mxu0 0.0
        %2262 = vmatpush1.msra.mxu0 0.0
        %2263 = vmatprep.subr.mxu0 0.0
        %2264 = vmatpush1.msra.mxu0 0.0
        %2265 = vmatprep.subr.mxu0 0.0
        %2266 = vmatpush1.msra.mxu0 0.0
        %2267 = vmatprep.subr.mxu0 0.0
        %2268 = vmatpush1.msra.mxu0 0.0
        %2269 = vmatprep.subr.mxu0 0.0
        %2270 = vmatpush1.msra.mxu0 0.0
        %2271 = vmatprep.subr.mxu0 0.0
        %2272 = vmatpush1.msra.mxu0 0.0
        %2273 = vmatprep.subr.mxu0 0.0
        %2274 = vmatpush1.msra.mxu0 0.0
        %2275 = vmatprep.subr.mxu0 0.0
        %2276 = vmatpush1.msra.mxu0 0.0
        %2277 = vmatprep.subr.mxu0 0.0
        %2278 = vmatpush1.msra.mxu0 0.0
        %2279 = vmatprep.subr.mxu0 0.0
        %2280 = vmatpush1.msra.mxu0 0.0
        %2281 = vmatprep.subr.mxu0 0.0
        %2282 = vmatpush1.msra.mxu0 0.0
        %2283 = vmatprep.subr.mxu0 0.0
        %2284 = vmatpush1.msra.mxu0 0.0
        %2285 = vmatprep.subr.mxu0 0.0
        %2286 = vmatpush1.msra.mxu0 0.0
        %2287 = vmatprep.subr.mxu0 0.0
        %2288 = vmatpush1.msra.mxu0 %v2168
        %2289 = vmatprep.subr.mxu0 0.0
        %2290 = vmatpush1.msra.mxu0 %v2159
        %2291 = vmatprep.subr.mxu0 0.0
        %2292 = vmatpush2.msra.mxu0 0.0
        %2293 = vmatprep.subr.mxu0 0.0
        %2294 = vmatpush2.msra.mxu0 0.0
        %2295 = vmatprep.subr.mxu0 0.0
        %2296 = vmatpush2.msra.mxu0 0.0
        %2297 = vmatprep.subr.mxu0 0.0
        %2298 = vmatpush2.msra.mxu0 0.0
        %2299 = vmatprep.subr.mxu0 0.0
        %2300 = vmatpush2.msra.mxu0 0.0
        %2301 = vmatprep.subr.mxu0 0.0
        %2302 = vmatpush2.msra.mxu0 0.0
        %2303 = vmatprep.subr.mxu0 0.0
        %2304 = vmatpush2.msra.mxu0 0.0
        %2305 = vmatprep.subr.mxu0 0.0
        %2306 = vmatpush2.msra.mxu0 0.0
        %2307 = vmatprep.subr.mxu0 0.0
        %2308 = vmatpush2.msra.mxu0 0.0
        %2309 = vmatprep.subr.mxu0 0.0
        %2310 = vmatpush2.msra.mxu0 0.0
        %2311 = vmatprep.subr.mxu0 0.0
        %2312 = vmatpush2.msra.mxu0 0.0
        %2313 = vmatprep.subr.mxu0 0.0
        %2314 = vmatpush2.msra.mxu0 0.0
        %2315 = vmatprep.subr.mxu0 0.0
        %2316 = vmatpush2.msra.mxu0 0.0
        %2317 = vmatprep.subr.mxu0 0.0
        %2318 = vmatpush2.msra.mxu0 0.0
        %2319 = vmatprep.subr.mxu0 0.0
        %2320 = vmatpush2.msra.mxu0 0.0
        %2321 = vmatprep.subr.mxu0 0.0
        %2322 = vmatpush2.msra.mxu0 0.0
        %2323 = vmatprep.mubr.f32.mxu0 0.0
        %2324 = vmatmul.mubr.f32.gmra.mxu0 %v2255
        %v2325 = vpop.f32.mrf.mxu0
        %v2326 = vadd.f32 0.0, %v2325
        %v2327 = vpop.f32.mrf.mxu0
        %2328 = vmatprep.mubr.f32.mxu0 0.0
        %2329 = vmatmul.mubr.f32.gmra.mxu0 %v2257
        %v2330 = vpop.f32.mrf.mxu0
        %v2331 = vadd.f32 0.0, %v2330
        %v2332 = vpop.f32.mrf.mxu0
        %2333 = vdwg.mxu0
        %v2334 = vld [vmem:[#allocation2] sm:$0xff]
        %v2335 = vld [vmem:[#allocation2 + $0x8] sm:$0xff]
        %2338 = vrot.lane.b32.xlu0 %v2326, 8
        %v2339 = vpop.permute.xlu0 %2338
        %2340 = vrot.lane.b32.xlu0 %v2331, 8
        %v2341 = vpop.permute.xlu0 %2340
        %v2344 = vadd.f32 %v2334, %v2339
        %v2345 = vadd.f32 %v2335, %v2341
        %2346 = vst.msk [vmem:[#allocation2] sm:$0xff] %vm380, %v2344
        %2347 = vst.msk [vmem:[#allocation2 + $0x8] sm:$0xff] %vm380, %v2345
        %2348 = vrot.lane.b32.xlu0 %v2150, 120
        %v2349 = vpop.permute.xlu0 %2348
        %2350 = vrot.lane.b32.xlu0 %v2155, 120
        %v2351 = vpop.permute.xlu0 %2350
        %v2352 = vsel %vm200, %v2349, 0
        %v2354 = vsel %vm200, %v2351, 0
        %2356 = vmatprep.subr.mxu0 0.0
        %2357 = vmatpush1.msra.mxu0 0.0
        %2358 = vmatprep.subr.mxu0 0.0
        %2359 = vmatpush1.msra.mxu0 0.0
        %2360 = vmatprep.subr.mxu0 0.0
        %2361 = vmatpush1.msra.mxu0 0.0
        %2362 = vmatprep.subr.mxu0 0.0
        %2363 = vmatpush1.msra.mxu0 0.0
        %2364 = vmatprep.subr.mxu0 0.0
        %2365 = vmatpush1.msra.mxu0 0.0
        %2366 = vmatprep.subr.mxu0 0.0
        %2367 = vmatpush1.msra.mxu0 0.0
        %2368 = vmatprep.subr.mxu0 0.0
        %2369 = vmatpush1.msra.mxu0 0.0
        %2370 = vmatprep.subr.mxu0 0.0
        %2371 = vmatpush1.msra.mxu0 0.0
        %2372 = vmatprep.subr.mxu0 0.0
        %2373 = vmatpush1.msra.mxu0 0.0
        %2374 = vmatprep.subr.mxu0 0.0
        %2375 = vmatpush1.msra.mxu0 0.0
        %2376 = vmatprep.subr.mxu0 0.0
        %2377 = vmatpush1.msra.mxu0 0.0
        %2378 = vmatprep.subr.mxu0 0.0
        %2379 = vmatpush1.msra.mxu0 0.0
        %2380 = vmatprep.subr.mxu0 0.0
        %2381 = vmatpush1.msra.mxu0 0.0
        %2382 = vmatprep.subr.mxu0 0.0
        %2383 = vmatpush1.msra.mxu0 0.0
        %2384 = vmatprep.subr.mxu0 0.0
        %2385 = vmatpush1.msra.mxu0 %v2168
        %2386 = vmatprep.subr.mxu0 0.0
        %2387 = vmatpush1.msra.mxu0 %v2159
        %2388 = vmatprep.subr.mxu0 0.0
        %2389 = vmatpush2.msra.mxu0 0.0
        %2390 = vmatprep.subr.mxu0 0.0
        %2391 = vmatpush2.msra.mxu0 0.0
        %2392 = vmatprep.subr.mxu0 0.0
        %2393 = vmatpush2.msra.mxu0 0.0
        %2394 = vmatprep.subr.mxu0 0.0
        %2395 = vmatpush2.msra.mxu0 0.0
        %2396 = vmatprep.subr.mxu0 0.0
        %2397 = vmatpush2.msra.mxu0 0.0
        %2398 = vmatprep.subr.mxu0 0.0
        %2399 = vmatpush2.msra.mxu0 0.0
        %2400 = vmatprep.subr.mxu0 0.0
        %2401 = vmatpush2.msra.mxu0 0.0
        %2402 = vmatprep.subr.mxu0 0.0
        %2403 = vmatpush2.msra.mxu0 0.0
        %2404 = vmatprep.subr.mxu0 0.0
        %2405 = vmatpush2.msra.mxu0 0.0
        %2406 = vmatprep.subr.mxu0 0.0
        %2407 = vmatpush2.msra.mxu0 0.0
        %2408 = vmatprep.subr.mxu0 0.0
        %2409 = vmatpush2.msra.mxu0 0.0
        %2410 = vmatprep.subr.mxu0 0.0
        %2411 = vmatpush2.msra.mxu0 0.0
        %2412 = vmatprep.subr.mxu0 0.0
        %2413 = vmatpush2.msra.mxu0 0.0
        %2414 = vmatprep.subr.mxu0 0.0
        %2415 = vmatpush2.msra.mxu0 0.0
        %2416 = vmatprep.subr.mxu0 0.0
        %2417 = vmatpush2.msra.mxu0 0.0
        %2418 = vmatprep.subr.mxu0 0.0
        %2419 = vmatpush2.msra.mxu0 0.0
        %2420 = vmatprep.mubr.f32.mxu0 0.0
        %2421 = vmatmul.mubr.f32.gmra.mxu0 %v2352
        %v2422 = vpop.f32.mrf.mxu0
        %v2423 = vadd.f32 0.0, %v2422
        %v2424 = vpop.f32.mrf.mxu0
        %2425 = vmatprep.mubr.f32.mxu0 0.0
        %2426 = vmatmul.mubr.f32.gmra.mxu0 %v2354
        %v2427 = vpop.f32.mrf.mxu0
        %v2428 = vadd.f32 0.0, %v2427
        %v2429 = vpop.f32.mrf.mxu0
        %2430 = vdwg.mxu0
        %v2431 = vld [vmem:[#allocation2] sm:$0xff]
        %v2432 = vld [vmem:[#allocation2 + $0x8] sm:$0xff]
        %2435 = vrot.lane.b32.xlu0 %v2423, 16
        %v2436 = vpop.permute.xlu0 %2435
        %2437 = vrot.lane.b32.xlu0 %v2428, 16
        %v2438 = vpop.permute.xlu0 %2437
        %v2441 = vadd.f32 %v2431, %v2436
        %v2442 = vadd.f32 %v2432, %v2438
        %2443 = vst.msk [vmem:[#allocation2] sm:$0xff] %vm474, %v2441
        %2444 = vst.msk [vmem:[#allocation2 + $0x8] sm:$0xff] %vm474, %v2442
        %2445 = vrot.lane.b32.xlu0 %v2150, 116
        %v2446 = vpop.permute.xlu0 %2445
        %2447 = vrot.lane.b32.xlu0 %v2155, 116
        %v2448 = vpop.permute.xlu0 %2447
        %v2449 = vsel %vm200, %v2446, 0
        %v2451 = vsel %vm200, %v2448, 0
        %2453 = vmatprep.subr.mxu0 0.0
        %2454 = vmatpush1.msra.mxu0 0.0
        %2455 = vmatprep.subr.mxu0 0.0
        %2456 = vmatpush1.msra.mxu0 0.0
        %2457 = vmatprep.subr.mxu0 0.0
        %2458 = vmatpush1.msra.mxu0 0.0
        %2459 = vmatprep.subr.mxu0 0.0
        %2460 = vmatpush1.msra.mxu0 0.0
        %2461 = vmatprep.subr.mxu0 0.0
        %2462 = vmatpush1.msra.mxu0 0.0
        %2463 = vmatprep.subr.mxu0 0.0
        %2464 = vmatpush1.msra.mxu0 0.0
        %2465 = vmatprep.subr.mxu0 0.0
        %2466 = vmatpush1.msra.mxu0 0.0
        %2467 = vmatprep.subr.mxu0 0.0
        %2468 = vmatpush1.msra.mxu0 0.0
        %2469 = vmatprep.subr.mxu0 0.0
        %2470 = vmatpush1.msra.mxu0 0.0
        %2471 = vmatprep.subr.mxu0 0.0
        %2472 = vmatpush1.msra.mxu0 0.0
        %2473 = vmatprep.subr.mxu0 0.0
        %2474 = vmatpush1.msra.mxu0 0.0
        %2475 = vmatprep.subr.mxu0 0.0
        %2476 = vmatpush1.msra.mxu0 0.0
        %2477 = vmatprep.subr.mxu0 0.0
        %2478 = vmatpush1.msra.mxu0 0.0
        %2479 = vmatprep.subr.mxu0 0.0
        %2480 = vmatpush1.msra.mxu0 0.0
        %2481 = vmatprep.subr.mxu0 0.0
        %2482 = vmatpush1.msra.mxu0 %v2168
        %2483 = vmatprep.subr.mxu0 0.0
        %2484 = vmatpush1.msra.mxu0 %v2159
        %2485 = vmatprep.subr.mxu0 0.0
        %2486 = vmatpush2.msra.mxu0 0.0
        %2487 = vmatprep.subr.mxu0 0.0
        %2488 = vmatpush2.msra.mxu0 0.0
        %2489 = vmatprep.subr.mxu0 0.0
        %2490 = vmatpush2.msra.mxu0 0.0
        %2491 = vmatprep.subr.mxu0 0.0
        %2492 = vmatpush2.msra.mxu0 0.0
        %2493 = vmatprep.subr.mxu0 0.0
        %2494 = vmatpush2.msra.mxu0 0.0
        %2495 = vmatprep.subr.mxu0 0.0
        %2496 = vmatpush2.msra.mxu0 0.0
        %2497 = vmatprep.subr.mxu0 0.0
        %2498 = vmatpush2.msra.mxu0 0.0
        %2499 = vmatprep.subr.mxu0 0.0
        %2500 = vmatpush2.msra.mxu0 0.0
        %2501 = vmatprep.subr.mxu0 0.0
        %2502 = vmatpush2.msra.mxu0 0.0
        %2503 = vmatprep.subr.mxu0 0.0
        %2504 = vmatpush2.msra.mxu0 0.0
        %2505 = vmatprep.subr.mxu0 0.0
        %2506 = vmatpush2.msra.mxu0 0.0
        %2507 = vmatprep.subr.mxu0 0.0
        %2508 = vmatpush2.msra.mxu0 0.0
        %2509 = vmatprep.subr.mxu0 0.0
        %2510 = vmatpush2.msra.mxu0 0.0
        %2511 = vmatprep.subr.mxu0 0.0
        %2512 = vmatpush2.msra.mxu0 0.0
        %2513 = vmatprep.subr.mxu0 0.0
        %2514 = vmatpush2.msra.mxu0 0.0
        %2515 = vmatprep.subr.mxu0 0.0
        %2516 = vmatpush2.msra.mxu0 0.0
        %2517 = vmatprep.mubr.f32.mxu0 0.0
        %2518 = vmatmul.mubr.f32.gmra.mxu0 %v2449
        %v2519 = vpop.f32.mrf.mxu0
        %v2520 = vadd.f32 0.0, %v2519
        %v2521 = vpop.f32.mrf.mxu0
        %2522 = vmatprep.mubr.f32.mxu0 0.0
        %2523 = vmatmul.mubr.f32.gmra.mxu0 %v2451
        %v2524 = vpop.f32.mrf.mxu0
        %v2525 = vadd.f32 0.0, %v2524
        %v2526 = vpop.f32.mrf.mxu0
        %2527 = vdwg.mxu0
        %v2528 = vld [vmem:[#allocation2] sm:$0xff]
        %v2529 = vld [vmem:[#allocation2 + $0x8] sm:$0xff]
        %2532 = vrot.lane.b32.xlu0 %v2520, 24
        %v2533 = vpop.permute.xlu0 %2532
        %2534 = vrot.lane.b32.xlu0 %v2525, 24
        %v2535 = vpop.permute.xlu0 %2534
        %v2538 = vadd.f32 %v2528, %v2533
        %v2539 = vadd.f32 %v2529, %v2535
        %2540 = vst.msk [vmem:[#allocation2] sm:$0xff] %vm568, %v2538
        %2541 = vst.msk [vmem:[#allocation2 + $0x8] sm:$0xff] %vm568, %v2539
        %2542 = vrot.lane.b32.xlu0 %v2150, 112
        %v2543 = vpop.permute.xlu0 %2542
        %2544 = vrot.lane.b32.xlu0 %v2155, 112
        %v2545 = vpop.permute.xlu0 %2544
        %v2546 = vsel %vm200, %v2543, 0
        %v2548 = vsel %vm200, %v2545, 0
        %2550 = vmatprep.subr.mxu0 0.0
        %2551 = vmatpush1.msra.mxu0 0.0
        %2552 = vmatprep.subr.mxu0 0.0
        %2553 = vmatpush1.msra.mxu0 0.0
        %2554 = vmatprep.subr.mxu0 0.0
        %2555 = vmatpush1.msra.mxu0 0.0
        %2556 = vmatprep.subr.mxu0 0.0
        %2557 = vmatpush1.msra.mxu0 0.0
        %2558 = vmatprep.subr.mxu0 0.0
        %2559 = vmatpush1.msra.mxu0 0.0
        %2560 = vmatprep.subr.mxu0 0.0
        %2561 = vmatpush1.msra.mxu0 0.0
        %2562 = vmatprep.subr.mxu0 0.0
        %2563 = vmatpush1.msra.mxu0 0.0
        %2564 = vmatprep.subr.mxu0 0.0
        %2565 = vmatpush1.msra.mxu0 0.0
        %2566 = vmatprep.subr.mxu0 0.0
        %2567 = vmatpush1.msra.mxu0 0.0
        %2568 = vmatprep.subr.mxu0 0.0
        %2569 = vmatpush1.msra.mxu0 0.0
        %2570 = vmatprep.subr.mxu0 0.0
        %2571 = vmatpush1.msra.mxu0 0.0
        %2572 = vmatprep.subr.mxu0 0.0
        %2573 = vmatpush1.msra.mxu0 0.0
        %2574 = vmatprep.subr.mxu0 0.0
        %2575 = vmatpush1.msra.mxu0 0.0
        %2576 = vmatprep.subr.mxu0 0.0
        %2577 = vmatpush1.msra.mxu0 0.0
        %2578 = vmatprep.subr.mxu0 0.0
        %2579 = vmatpush1.msra.mxu0 %v2168
        %2580 = vmatprep.subr.mxu0 0.0
        %2581 = vmatpush1.msra.mxu0 %v2159
        %2582 = vmatprep.subr.mxu0 0.0
        %2583 = vmatpush2.msra.mxu0 0.0
        %2584 = vmatprep.subr.mxu0 0.0
        %2585 = vmatpush2.msra.mxu0 0.0
        %2586 = vmatprep.subr.mxu0 0.0
        %2587 = vmatpush2.msra.mxu0 0.0
        %2588 = vmatprep.subr.mxu0 0.0
        %2589 = vmatpush2.msra.mxu0 0.0
        %2590 = vmatprep.subr.mxu0 0.0
        %2591 = vmatpush2.msra.mxu0 0.0
        %2592 = vmatprep.subr.mxu0 0.0
        %2593 = vmatpush2.msra.mxu0 0.0
        %2594 = vmatprep.subr.mxu0 0.0
        %2595 = vmatpush2.msra.mxu0 0.0
        %2596 = vmatprep.subr.mxu0 0.0
        %2597 = vmatpush2.msra.mxu0 0.0
        %2598 = vmatprep.subr.mxu0 0.0
        %2599 = vmatpush2.msra.mxu0 0.0
        %2600 = vmatprep.subr.mxu0 0.0
        %2601 = vmatpush2.msra.mxu0 0.0
        %2602 = vmatprep.subr.mxu0 0.0
        %2603 = vmatpush2.msra.mxu0 0.0
        %2604 = vmatprep.subr.mxu0 0.0
        %2605 = vmatpush2.msra.mxu0 0.0
        %2606 = vmatprep.subr.mxu0 0.0
        %2607 = vmatpush2.msra.mxu0 0.0
        %2608 = vmatprep.subr.mxu0 0.0
        %2609 = vmatpush2.msra.mxu0 0.0
        %2610 = vmatprep.subr.mxu0 0.0
        %2611 = vmatpush2.msra.mxu0 0.0
        %2612 = vmatprep.subr.mxu0 0.0
        %2613 = vmatpush2.msra.mxu0 0.0
        %2614 = vmatprep.mubr.f32.mxu0 0.0
        %2615 = vmatmul.mubr.f32.gmra.mxu0 %v2546
        %v2616 = vpop.f32.mrf.mxu0
        %v2617 = vadd.f32 0.0, %v2616
        %v2618 = vpop.f32.mrf.mxu0
        %2619 = vmatprep.mubr.f32.mxu0 0.0
        %2620 = vmatmul.mubr.f32.gmra.mxu0 %v2548
        %v2621 = vpop.f32.mrf.mxu0
        %v2622 = vadd.f32 0.0, %v2621
        %v2623 = vpop.f32.mrf.mxu0
        %2624 = vdwg.mxu0
        %v2625 = vld [vmem:[#allocation2] sm:$0xff]
        %v2626 = vld [vmem:[#allocation2 + $0x8] sm:$0xff]
        %2629 = vrot.lane.b32.xlu0 %v2617, 32
        %v2630 = vpop.permute.xlu0 %2629
        %2631 = vrot.lane.b32.xlu0 %v2622, 32
        %v2632 = vpop.permute.xlu0 %2631
        %v2635 = vadd.f32 %v2625, %v2630
        %v2636 = vadd.f32 %v2626, %v2632
        %2637 = vst.msk [vmem:[#allocation2] sm:$0xff] %vm662, %v2635
        %2638 = vst.msk [vmem:[#allocation2 + $0x8] sm:$0xff] %vm662, %v2636
        %2639 = vrot.lane.b32.xlu0 %v2150, 108
        %v2640 = vpop.permute.xlu0 %2639
        %2641 = vrot.lane.b32.xlu0 %v2155, 108
        %v2642 = vpop.permute.xlu0 %2641
        %v2643 = vsel %vm200, %v2640, 0
        %v2645 = vsel %vm200, %v2642, 0
        %2647 = vmatprep.subr.mxu0 0.0
        %2648 = vmatpush1.msra.mxu0 0.0
        %2649 = vmatprep.subr.mxu0 0.0
        %2650 = vmatpush1.msra.mxu0 0.0
        %2651 = vmatprep.subr.mxu0 0.0
        %2652 = vmatpush1.msra.mxu0 0.0
        %2653 = vmatprep.subr.mxu0 0.0
        %2654 = vmatpush1.msra.mxu0 0.0
        %2655 = vmatprep.subr.mxu0 0.0
        %2656 = vmatpush1.msra.mxu0 0.0
        %2657 = vmatprep.subr.mxu0 0.0
        %2658 = vmatpush1.msra.mxu0 0.0
        %2659 = vmatprep.subr.mxu0 0.0
        %2660 = vmatpush1.msra.mxu0 0.0
        %2661 = vmatprep.subr.mxu0 0.0
        %2662 = vmatpush1.msra.mxu0 0.0
        %2663 = vmatprep.subr.mxu0 0.0
        %2664 = vmatpush1.msra.mxu0 0.0
        %2665 = vmatprep.subr.mxu0 0.0
        %2666 = vmatpush1.msra.mxu0 0.0
        %2667 = vmatprep.subr.mxu0 0.0
        %2668 = vmatpush1.msra.mxu0 0.0
        %2669 = vmatprep.subr.mxu0 0.0
        %2670 = vmatpush1.msra.mxu0 0.0
        %2671 = vmatprep.subr.mxu0 0.0
        %2672 = vmatpush1.msra.mxu0 0.0
        %2673 = vmatprep.subr.mxu0 0.0
        %2674 = vmatpush1.msra.mxu0 0.0
        %2675 = vmatprep.subr.mxu0 0.0
        %2676 = vmatpush1.msra.mxu0 %v2168
        %2677 = vmatprep.subr.mxu0 0.0
        %2678 = vmatpush1.msra.mxu0 %v2159
        %2679 = vmatprep.subr.mxu0 0.0
        %2680 = vmatpush2.msra.mxu0 0.0
        %2681 = vmatprep.subr.mxu0 0.0
        %2682 = vmatpush2.msra.mxu0 0.0
        %2683 = vmatprep.subr.mxu0 0.0
        %2684 = vmatpush2.msra.mxu0 0.0
        %2685 = vmatprep.subr.mxu0 0.0
        %2686 = vmatpush2.msra.mxu0 0.0
        %2687 = vmatprep.subr.mxu0 0.0
        %2688 = vmatpush2.msra.mxu0 0.0
        %2689 = vmatprep.subr.mxu0 0.0
        %2690 = vmatpush2.msra.mxu0 0.0
        %2691 = vmatprep.subr.mxu0 0.0
        %2692 = vmatpush2.msra.mxu0 0.0
        %2693 = vmatprep.subr.mxu0 0.0
        %2694 = vmatpush2.msra.mxu0 0.0
        %2695 = vmatprep.subr.mxu0 0.0
        %2696 = vmatpush2.msra.mxu0 0.0
        %2697 = vmatprep.subr.mxu0 0.0
        %2698 = vmatpush2.msra.mxu0 0.0
        %2699 = vmatprep.subr.mxu0 0.0
        %2700 = vmatpush2.msra.mxu0 0.0
        %2701 = vmatprep.subr.mxu0 0.0
        %2702 = vmatpush2.msra.mxu0 0.0
        %2703 = vmatprep.subr.mxu0 0.0
        %2704 = vmatpush2.msra.mxu0 0.0
        %2705 = vmatprep.subr.mxu0 0.0
        %2706 = vmatpush2.msra.mxu0 0.0
        %2707 = vmatprep.subr.mxu0 0.0
        %2708 = vmatpush2.msra.mxu0 0.0
        %2709 = vmatprep.subr.mxu0 0.0
        %2710 = vmatpush2.msra.mxu0 0.0
        %2711 = vmatprep.mubr.f32.mxu0 0.0
        %2712 = vmatmul.mubr.f32.gmra.mxu0 %v2643
        %v2713 = vpop.f32.mrf.mxu0
        %v2714 = vadd.f32 0.0, %v2713
        %v2715 = vpop.f32.mrf.mxu0
        %2716 = vmatprep.mubr.f32.mxu0 0.0
        %2717 = vmatmul.mubr.f32.gmra.mxu0 %v2645
        %v2718 = vpop.f32.mrf.mxu0
        %v2719 = vadd.f32 0.0, %v2718
        %v2720 = vpop.f32.mrf.mxu0
        %2721 = vdwg.mxu0
        %v2722 = vld [vmem:[#allocation2] sm:$0xff]
        %v2723 = vld [vmem:[#allocation2 + $0x8] sm:$0xff]
        %2726 = vrot.lane.b32.xlu0 %v2714, 40
        %v2727 = vpop.permute.xlu0 %2726
        %2728 = vrot.lane.b32.xlu0 %v2719, 40
        %v2729 = vpop.permute.xlu0 %2728
        %v2732 = vadd.f32 %v2722, %v2727
        %v2733 = vadd.f32 %v2723, %v2729
        %2734 = vst.msk [vmem:[#allocation2] sm:$0xff] %vm756, %v2732
        %2735 = vst.msk [vmem:[#allocation2 + $0x8] sm:$0xff] %vm756, %v2733
        %2736 = vmatprep.subr.mxu0 0.0
        %2737 = vmatpush1.msra.mxu0 0.0
        %2738 = vmatprep.subr.mxu0 0.0
        %2739 = vmatpush1.msra.mxu0 0.0
        %2740 = vmatprep.subr.mxu0 0.0
        %2741 = vmatpush1.msra.mxu0 0.0
        %2742 = vmatprep.subr.mxu0 0.0
        %2743 = vmatpush1.msra.mxu0 0.0
        %2744 = vmatprep.subr.mxu0 0.0
        %2745 = vmatpush1.msra.mxu0 0.0
        %2746 = vmatprep.subr.mxu0 0.0
        %2747 = vmatpush1.msra.mxu0 0.0
        %2748 = vmatprep.subr.mxu0 0.0
        %2749 = vmatpush1.msra.mxu0 0.0
        %2750 = vmatprep.subr.mxu0 0.0
        %2751 = vmatpush1.msra.mxu0 0.0
        %2752 = vmatprep.subr.mxu0 0.0
        %2753 = vmatpush1.msra.mxu0 0.0
        %2754 = vmatprep.subr.mxu0 0.0
        %2755 = vmatpush1.msra.mxu0 0.0
        %2756 = vmatprep.subr.mxu0 0.0
        %2757 = vmatpush1.msra.mxu0 0.0
        %2758 = vmatprep.subr.mxu0 0.0
        %2759 = vmatpush1.msra.mxu0 0.0
        %2760 = vmatprep.subr.mxu0 0.0
        %2761 = vmatpush1.msra.mxu0 0.0
        %2762 = vmatprep.subr.mxu0 0.0
        %2763 = vmatpush1.msra.mxu0 0.0
        %2764 = vmatprep.subr.mxu0 0.0
        %2765 = vmatpush1.msra.mxu0 %v2155
        %2766 = vmatprep.subr.mxu0 0.0
        %2767 = vmatpush1.msra.mxu0 %v2150
        %2768 = vmatprep.subr.mxu0 0.0
        %2769 = vmatpush2.msra.mxu0 0.0
        %2770 = vmatprep.subr.mxu0 0.0
        %2771 = vmatpush2.msra.mxu0 0.0
        %2772 = vmatprep.subr.mxu0 0.0
        %2773 = vmatpush2.msra.mxu0 0.0
        %2774 = vmatprep.subr.mxu0 0.0
        %2775 = vmatpush2.msra.mxu0 0.0
        %2776 = vmatprep.subr.mxu0 0.0
        %2777 = vmatpush2.msra.mxu0 0.0
        %2778 = vmatprep.subr.mxu0 0.0
        %2779 = vmatpush2.msra.mxu0 0.0
        %2780 = vmatprep.subr.mxu0 0.0
        %2781 = vmatpush2.msra.mxu0 0.0
        %2782 = vmatprep.subr.mxu0 0.0
        %2783 = vmatpush2.msra.mxu0 0.0
        %2784 = vmatprep.subr.mxu0 0.0
        %2785 = vmatpush2.msra.mxu0 0.0
        %2786 = vmatprep.subr.mxu0 0.0
        %2787 = vmatpush2.msra.mxu0 0.0
        %2788 = vmatprep.subr.mxu0 0.0
        %2789 = vmatpush2.msra.mxu0 0.0
        %2790 = vmatprep.subr.mxu0 0.0
        %2791 = vmatpush2.msra.mxu0 0.0
        %2792 = vmatprep.subr.mxu0 0.0
        %2793 = vmatpush2.msra.mxu0 0.0
        %2794 = vmatprep.subr.mxu0 0.0
        %2795 = vmatpush2.msra.mxu0 0.0
        %2796 = vmatprep.subr.mxu0 0.0
        %2797 = vmatpush2.msra.mxu0 0.0
        %2798 = vmatprep.subr.mxu0 0.0
        %2799 = vmatpush2.msra.mxu0 0.0
        %2800 = vmatprep.mubr.f32.mxu0 0.0
        %2801 = vmatmul.mubr.f32.gmra.mxu0 %v2078
        %v2802 = vpop.f32.mrf.mxu0
        %v2803 = vadd.f32 0.0, %v2802
        %v2804 = vpop.f32.mrf.mxu0
        %2805 = vmatprep.mubr.f32.mxu0 0.0
        %2806 = vmatmul.mubr.f32.gmra.mxu0 %v2081
        %v2807 = vpop.f32.mrf.mxu0
        %v2808 = vadd.f32 0.0, %v2807
        %v2809 = vpop.f32.mrf.mxu0
        %2810 = vdwg.mxu0
        %s2811 = scalar_lea.vmem %s2, 64
        %v2812 = vld [vmem:[%s2811] sm:$0xff]
        %v2813 = vld [vmem:[%s2811 + $0x8] sm:$0xf]
        %v2815 = vsel %vm200, %v2803, 0
        %v2818 = vsel %vm200, %v2808, 0
        %v2821 = vsel %vm207, %v2813, 0
        %2823 = vmatprep.subr.mxu0 0.0
        %2824 = vmatpush1.msra.mxu0 0.0
        %2825 = vmatprep.subr.mxu0 0.0
        %2826 = vmatpush1.msra.mxu0 0.0
        %2827 = vmatprep.subr.mxu0 0.0
        %2828 = vmatpush1.msra.mxu0 0.0
        %2829 = vmatprep.subr.mxu0 0.0
        %2830 = vmatpush1.msra.mxu0 0.0
        %2831 = vmatprep.subr.mxu0 0.0
        %2832 = vmatpush1.msra.mxu0 0.0
        %2833 = vmatprep.subr.mxu0 0.0
        %2834 = vmatpush1.msra.mxu0 0.0
        %2835 = vmatprep.subr.mxu0 0.0
        %2836 = vmatpush1.msra.mxu0 0.0
        %2837 = vmatprep.subr.mxu0 0.0
        %2838 = vmatpush1.msra.mxu0 0.0
        %2839 = vmatprep.subr.mxu0 0.0
        %2840 = vmatpush1.msra.mxu0 0.0
        %2841 = vmatprep.subr.mxu0 0.0
        %2842 = vmatpush1.msra.mxu0 0.0
        %2843 = vmatprep.subr.mxu0 0.0
        %2844 = vmatpush1.msra.mxu0 0.0
        %2845 = vmatprep.subr.mxu0 0.0
        %2846 = vmatpush1.msra.mxu0 0.0
        %2847 = vmatprep.subr.mxu0 0.0
        %2848 = vmatpush1.msra.mxu0 0.0
        %2849 = vmatprep.subr.mxu0 0.0
        %2850 = vmatpush1.msra.mxu0 0.0
        %2851 = vmatprep.subr.mxu0 0.0
        %2852 = vmatpush1.msra.mxu0 %v2821
        %2853 = vmatprep.subr.mxu0 0.0
        %2854 = vmatpush1.msra.mxu0 %v2812
        %2855 = vmatprep.subr.mxu0 0.0
        %2856 = vmatpush2.msra.mxu0 0.0
        %2857 = vmatprep.subr.mxu0 0.0
        %2858 = vmatpush2.msra.mxu0 0.0
        %2859 = vmatprep.subr.mxu0 0.0
        %2860 = vmatpush2.msra.mxu0 0.0
        %2861 = vmatprep.subr.mxu0 0.0
        %2862 = vmatpush2.msra.mxu0 0.0
        %2863 = vmatprep.subr.mxu0 0.0
        %2864 = vmatpush2.msra.mxu0 0.0
        %2865 = vmatprep.subr.mxu0 0.0
        %2866 = vmatpush2.msra.mxu0 0.0
        %2867 = vmatprep.subr.mxu0 0.0
        %2868 = vmatpush2.msra.mxu0 0.0
        %2869 = vmatprep.subr.mxu0 0.0
        %2870 = vmatpush2.msra.mxu0 0.0
        %2871 = vmatprep.subr.mxu0 0.0
        %2872 = vmatpush2.msra.mxu0 0.0
        %2873 = vmatprep.subr.mxu0 0.0
        %2874 = vmatpush2.msra.mxu0 0.0
        %2875 = vmatprep.subr.mxu0 0.0
        %2876 = vmatpush2.msra.mxu0 0.0
        %2877 = vmatprep.subr.mxu0 0.0
        %2878 = vmatpush2.msra.mxu0 0.0
        %2879 = vmatprep.subr.mxu0 0.0
        %2880 = vmatpush2.msra.mxu0 0.0
        %2881 = vmatprep.subr.mxu0 0.0
        %2882 = vmatpush2.msra.mxu0 0.0
        %2883 = vmatprep.subr.mxu0 0.0
        %2884 = vmatpush2.msra.mxu0 0.0
        %2885 = vmatprep.subr.mxu0 0.0
        %2886 = vmatpush2.msra.mxu0 0.0
        %2887 = vmatprep.mubr.f32.mxu0 0.0
        %2888 = vmatmul.mubr.f32.gmra.mxu0 %v2815
        %v2889 = vpop.f32.mrf.mxu0
        %v2890 = vadd.f32 0.0, %v2889
        %v2891 = vpop.f32.mrf.mxu0
        %2892 = vmatprep.mubr.f32.mxu0 0.0
        %2893 = vmatmul.mubr.f32.gmra.mxu0 %v2818
        %v2894 = vpop.f32.mrf.mxu0
        %v2895 = vadd.f32 0.0, %v2894
        %v2896 = vpop.f32.mrf.mxu0
        %2897 = vdwg.mxu0
        %v2898 = vld [vmem:[#allocation2] sm:$0xff]
        %v2899 = vld [vmem:[#allocation2 + $0x8] sm:$0xff]
        %v2900 = vadd.f32 %v2898, %v2890
        %v2901 = vadd.f32 %v2899, %v2895
        %2902 = vst.msk [vmem:[#allocation2] sm:$0xff] %vm286, %v2900
        %2903 = vst.msk [vmem:[#allocation2 + $0x8] sm:$0xff] %vm286, %v2901
        %2904 = vrot.lane.b32.xlu0 %v2803, 124
        %v2905 = vpop.permute.xlu0 %2904
        %2906 = vrot.lane.b32.xlu0 %v2808, 124
        %v2907 = vpop.permute.xlu0 %2906
        %v2908 = vsel %vm200, %v2905, 0
        %v2910 = vsel %vm200, %v2907, 0
        %2912 = vmatprep.subr.mxu0 0.0
        %2913 = vmatpush1.msra.mxu0 0.0
        %2914 = vmatprep.subr.mxu0 0.0
        %2915 = vmatpush1.msra.mxu0 0.0
        %2916 = vmatprep.subr.mxu0 0.0
        %2917 = vmatpush1.msra.mxu0 0.0
        %2918 = vmatprep.subr.mxu0 0.0
        %2919 = vmatpush1.msra.mxu0 0.0
        %2920 = vmatprep.subr.mxu0 0.0
        %2921 = vmatpush1.msra.mxu0 0.0
        %2922 = vmatprep.subr.mxu0 0.0
        %2923 = vmatpush1.msra.mxu0 0.0
        %2924 = vmatprep.subr.mxu0 0.0
        %2925 = vmatpush1.msra.mxu0 0.0
        %2926 = vmatprep.subr.mxu0 0.0
        %2927 = vmatpush1.msra.mxu0 0.0
        %2928 = vmatprep.subr.mxu0 0.0
        %2929 = vmatpush1.msra.mxu0 0.0
        %2930 = vmatprep.subr.mxu0 0.0
        %2931 = vmatpush1.msra.mxu0 0.0
        %2932 = vmatprep.subr.mxu0 0.0
        %2933 = vmatpush1.msra.mxu0 0.0
        %2934 = vmatprep.subr.mxu0 0.0
        %2935 = vmatpush1.msra.mxu0 0.0
        %2936 = vmatprep.subr.mxu0 0.0
        %2937 = vmatpush1.msra.mxu0 0.0
        %2938 = vmatprep.subr.mxu0 0.0
        %2939 = vmatpush1.msra.mxu0 0.0
        %2940 = vmatprep.subr.mxu0 0.0
        %2941 = vmatpush1.msra.mxu0 %v2821
        %2942 = vmatprep.subr.mxu0 0.0
        %2943 = vmatpush1.msra.mxu0 %v2812
        %2944 = vmatprep.subr.mxu0 0.0
        %2945 = vmatpush2.msra.mxu0 0.0
        %2946 = vmatprep.subr.mxu0 0.0
        %2947 = vmatpush2.msra.mxu0 0.0
        %2948 = vmatprep.subr.mxu0 0.0
        %2949 = vmatpush2.msra.mxu0 0.0
        %2950 = vmatprep.subr.mxu0 0.0
        %2951 = vmatpush2.msra.mxu0 0.0
        %2952 = vmatprep.subr.mxu0 0.0
        %2953 = vmatpush2.msra.mxu0 0.0
        %2954 = vmatprep.subr.mxu0 0.0
        %2955 = vmatpush2.msra.mxu0 0.0
        %2956 = vmatprep.subr.mxu0 0.0
        %2957 = vmatpush2.msra.mxu0 0.0
        %2958 = vmatprep.subr.mxu0 0.0
        %2959 = vmatpush2.msra.mxu0 0.0
        %2960 = vmatprep.subr.mxu0 0.0
        %2961 = vmatpush2.msra.mxu0 0.0
        %2962 = vmatprep.subr.mxu0 0.0
        %2963 = vmatpush2.msra.mxu0 0.0
        %2964 = vmatprep.subr.mxu0 0.0
        %2965 = vmatpush2.msra.mxu0 0.0
        %2966 = vmatprep.subr.mxu0 0.0
        %2967 = vmatpush2.msra.mxu0 0.0
        %2968 = vmatprep.subr.mxu0 0.0
        %2969 = vmatpush2.msra.mxu0 0.0
        %2970 = vmatprep.subr.mxu0 0.0
        %2971 = vmatpush2.msra.mxu0 0.0
        %2972 = vmatprep.subr.mxu0 0.0
        %2973 = vmatpush2.msra.mxu0 0.0
        %2974 = vmatprep.subr.mxu0 0.0
        %2975 = vmatpush2.msra.mxu0 0.0
        %2976 = vmatprep.mubr.f32.mxu0 0.0
        %2977 = vmatmul.mubr.f32.gmra.mxu0 %v2908
        %v2978 = vpop.f32.mrf.mxu0
        %v2979 = vadd.f32 0.0, %v2978
        %v2980 = vpop.f32.mrf.mxu0
        %2981 = vmatprep.mubr.f32.mxu0 0.0
        %2982 = vmatmul.mubr.f32.gmra.mxu0 %v2910
        %v2983 = vpop.f32.mrf.mxu0
        %v2984 = vadd.f32 0.0, %v2983
        %v2985 = vpop.f32.mrf.mxu0
        %2986 = vdwg.mxu0
        %v2987 = vld [vmem:[#allocation2] sm:$0xff]
        %v2988 = vld [vmem:[#allocation2 + $0x8] sm:$0xff]
        %2991 = vrot.lane.b32.xlu0 %v2979, 8
        %v2992 = vpop.permute.xlu0 %2991
        %2993 = vrot.lane.b32.xlu0 %v2984, 8
        %v2994 = vpop.permute.xlu0 %2993
        %v2997 = vadd.f32 %v2987, %v2992
        %v2998 = vadd.f32 %v2988, %v2994
        %2999 = vst.msk [vmem:[#allocation2] sm:$0xff] %vm380, %v2997
        %3000 = vst.msk [vmem:[#allocation2 + $0x8] sm:$0xff] %vm380, %v2998
        %3001 = vrot.lane.b32.xlu0 %v2803, 120
        %v3002 = vpop.permute.xlu0 %3001
        %3003 = vrot.lane.b32.xlu0 %v2808, 120
        %v3004 = vpop.permute.xlu0 %3003
        %v3005 = vsel %vm200, %v3002, 0
        %v3007 = vsel %vm200, %v3004, 0
        %3009 = vmatprep.subr.mxu0 0.0
        %3010 = vmatpush1.msra.mxu0 0.0
        %3011 = vmatprep.subr.mxu0 0.0
        %3012 = vmatpush1.msra.mxu0 0.0
        %3013 = vmatprep.subr.mxu0 0.0
        %3014 = vmatpush1.msra.mxu0 0.0
        %3015 = vmatprep.subr.mxu0 0.0
        %3016 = vmatpush1.msra.mxu0 0.0
        %3017 = vmatprep.subr.mxu0 0.0
        %3018 = vmatpush1.msra.mxu0 0.0
        %3019 = vmatprep.subr.mxu0 0.0
        %3020 = vmatpush1.msra.mxu0 0.0
        %3021 = vmatprep.subr.mxu0 0.0
        %3022 = vmatpush1.msra.mxu0 0.0
        %3023 = vmatprep.subr.mxu0 0.0
        %3024 = vmatpush1.msra.mxu0 0.0
        %3025 = vmatprep.subr.mxu0 0.0
        %3026 = vmatpush1.msra.mxu0 0.0
        %3027 = vmatprep.subr.mxu0 0.0
        %3028 = vmatpush1.msra.mxu0 0.0
        %3029 = vmatprep.subr.mxu0 0.0
        %3030 = vmatpush1.msra.mxu0 0.0
        %3031 = vmatprep.subr.mxu0 0.0
        %3032 = vmatpush1.msra.mxu0 0.0
        %3033 = vmatprep.subr.mxu0 0.0
        %3034 = vmatpush1.msra.mxu0 0.0
        %3035 = vmatprep.subr.mxu0 0.0
        %3036 = vmatpush1.msra.mxu0 0.0
        %3037 = vmatprep.subr.mxu0 0.0
        %3038 = vmatpush1.msra.mxu0 %v2821
        %3039 = vmatprep.subr.mxu0 0.0
        %3040 = vmatpush1.msra.mxu0 %v2812
        %3041 = vmatprep.subr.mxu0 0.0
        %3042 = vmatpush2.msra.mxu0 0.0
        %3043 = vmatprep.subr.mxu0 0.0
        %3044 = vmatpush2.msra.mxu0 0.0
        %3045 = vmatprep.subr.mxu0 0.0
        %3046 = vmatpush2.msra.mxu0 0.0
        %3047 = vmatprep.subr.mxu0 0.0
        %3048 = vmatpush2.msra.mxu0 0.0
        %3049 = vmatprep.subr.mxu0 0.0
        %3050 = vmatpush2.msra.mxu0 0.0
        %3051 = vmatprep.subr.mxu0 0.0
        %3052 = vmatpush2.msra.mxu0 0.0
        %3053 = vmatprep.subr.mxu0 0.0
        %3054 = vmatpush2.msra.mxu0 0.0
        %3055 = vmatprep.subr.mxu0 0.0
        %3056 = vmatpush2.msra.mxu0 0.0
        %3057 = vmatprep.subr.mxu0 0.0
        %3058 = vmatpush2.msra.mxu0 0.0
        %3059 = vmatprep.subr.mxu0 0.0
        %3060 = vmatpush2.msra.mxu0 0.0
        %3061 = vmatprep.subr.mxu0 0.0
        %3062 = vmatpush2.msra.mxu0 0.0
        %3063 = vmatprep.subr.mxu0 0.0
        %3064 = vmatpush2.msra.mxu0 0.0
        %3065 = vmatprep.subr.mxu0 0.0
        %3066 = vmatpush2.msra.mxu0 0.0
        %3067 = vmatprep.subr.mxu0 0.0
        %3068 = vmatpush2.msra.mxu0 0.0
        %3069 = vmatprep.subr.mxu0 0.0
        %3070 = vmatpush2.msra.mxu0 0.0
        %3071 = vmatprep.subr.mxu0 0.0
        %3072 = vmatpush2.msra.mxu0 0.0
        %3073 = vmatprep.mubr.f32.mxu0 0.0
        %3074 = vmatmul.mubr.f32.gmra.mxu0 %v3005
        %v3075 = vpop.f32.mrf.mxu0
        %v3076 = vadd.f32 0.0, %v3075
        %v3077 = vpop.f32.mrf.mxu0
        %3078 = vmatprep.mubr.f32.mxu0 0.0
        %3079 = vmatmul.mubr.f32.gmra.mxu0 %v3007
        %v3080 = vpop.f32.mrf.mxu0
        %v3081 = vadd.f32 0.0, %v3080
        %v3082 = vpop.f32.mrf.mxu0
        %3083 = vdwg.mxu0
        %v3084 = vld [vmem:[#allocation2] sm:$0xff]
        %v3085 = vld [vmem:[#allocation2 + $0x8] sm:$0xff]
        %3088 = vrot.lane.b32.xlu0 %v3076, 16
        %v3089 = vpop.permute.xlu0 %3088
        %3090 = vrot.lane.b32.xlu0 %v3081, 16
        %v3091 = vpop.permute.xlu0 %3090
        %v3094 = vadd.f32 %v3084, %v3089
        %v3095 = vadd.f32 %v3085, %v3091
        %3096 = vst.msk [vmem:[#allocation2] sm:$0xff] %vm474, %v3094
        %3097 = vst.msk [vmem:[#allocation2 + $0x8] sm:$0xff] %vm474, %v3095
        %3098 = vrot.lane.b32.xlu0 %v2803, 116
        %v3099 = vpop.permute.xlu0 %3098
        %3100 = vrot.lane.b32.xlu0 %v2808, 116
        %v3101 = vpop.permute.xlu0 %3100
        %v3102 = vsel %vm200, %v3099, 0
        %v3104 = vsel %vm200, %v3101, 0
        %3106 = vmatprep.subr.mxu0 0.0
        %3107 = vmatpush1.msra.mxu0 0.0
        %3108 = vmatprep.subr.mxu0 0.0
        %3109 = vmatpush1.msra.mxu0 0.0
        %3110 = vmatprep.subr.mxu0 0.0
        %3111 = vmatpush1.msra.mxu0 0.0
        %3112 = vmatprep.subr.mxu0 0.0
        %3113 = vmatpush1.msra.mxu0 0.0
        %3114 = vmatprep.subr.mxu0 0.0
        %3115 = vmatpush1.msra.mxu0 0.0
        %3116 = vmatprep.subr.mxu0 0.0
        %3117 = vmatpush1.msra.mxu0 0.0
        %3118 = vmatprep.subr.mxu0 0.0
        %3119 = vmatpush1.msra.mxu0 0.0
        %3120 = vmatprep.subr.mxu0 0.0
        %3121 = vmatpush1.msra.mxu0 0.0
        %3122 = vmatprep.subr.mxu0 0.0
        %3123 = vmatpush1.msra.mxu0 0.0
        %3124 = vmatprep.subr.mxu0 0.0
        %3125 = vmatpush1.msra.mxu0 0.0
        %3126 = vmatprep.subr.mxu0 0.0
        %3127 = vmatpush1.msra.mxu0 0.0
        %3128 = vmatprep.subr.mxu0 0.0
        %3129 = vmatpush1.msra.mxu0 0.0
        %3130 = vmatprep.subr.mxu0 0.0
        %3131 = vmatpush1.msra.mxu0 0.0
        %3132 = vmatprep.subr.mxu0 0.0
        %3133 = vmatpush1.msra.mxu0 0.0
        %3134 = vmatprep.subr.mxu0 0.0
        %3135 = vmatpush1.msra.mxu0 %v2821
        %3136 = vmatprep.subr.mxu0 0.0
        %3137 = vmatpush1.msra.mxu0 %v2812
        %3138 = vmatprep.subr.mxu0 0.0
        %3139 = vmatpush2.msra.mxu0 0.0
        %3140 = vmatprep.subr.mxu0 0.0
        %3141 = vmatpush2.msra.mxu0 0.0
        %3142 = vmatprep.subr.mxu0 0.0
        %3143 = vmatpush2.msra.mxu0 0.0
        %3144 = vmatprep.subr.mxu0 0.0
        %3145 = vmatpush2.msra.mxu0 0.0
        %3146 = vmatprep.subr.mxu0 0.0
        %3147 = vmatpush2.msra.mxu0 0.0
        %3148 = vmatprep.subr.mxu0 0.0
        %3149 = vmatpush2.msra.mxu0 0.0
        %3150 = vmatprep.subr.mxu0 0.0
        %3151 = vmatpush2.msra.mxu0 0.0
        %3152 = vmatprep.subr.mxu0 0.0
        %3153 = vmatpush2.msra.mxu0 0.0
        %3154 = vmatprep.subr.mxu0 0.0
        %3155 = vmatpush2.msra.mxu0 0.0
        %3156 = vmatprep.subr.mxu0 0.0
        %3157 = vmatpush2.msra.mxu0 0.0
        %3158 = vmatprep.subr.mxu0 0.0
        %3159 = vmatpush2.msra.mxu0 0.0
        %3160 = vmatprep.subr.mxu0 0.0
        %3161 = vmatpush2.msra.mxu0 0.0
        %3162 = vmatprep.subr.mxu0 0.0
        %3163 = vmatpush2.msra.mxu0 0.0
        %3164 = vmatprep.subr.mxu0 0.0
        %3165 = vmatpush2.msra.mxu0 0.0
        %3166 = vmatprep.subr.mxu0 0.0
        %3167 = vmatpush2.msra.mxu0 0.0
        %3168 = vmatprep.subr.mxu0 0.0
        %3169 = vmatpush2.msra.mxu0 0.0
        %3170 = vmatprep.mubr.f32.mxu0 0.0
        %3171 = vmatmul.mubr.f32.gmra.mxu0 %v3102
        %v3172 = vpop.f32.mrf.mxu0
        %v3173 = vadd.f32 0.0, %v3172
        %v3174 = vpop.f32.mrf.mxu0
        %3175 = vmatprep.mubr.f32.mxu0 0.0
        %3176 = vmatmul.mubr.f32.gmra.mxu0 %v3104
        %v3177 = vpop.f32.mrf.mxu0
        %v3178 = vadd.f32 0.0, %v3177
        %v3179 = vpop.f32.mrf.mxu0
        %3180 = vdwg.mxu0
        %v3181 = vld [vmem:[#allocation2] sm:$0xff]
        %v3182 = vld [vmem:[#allocation2 + $0x8] sm:$0xff]
        %3185 = vrot.lane.b32.xlu0 %v3173, 24
        %v3186 = vpop.permute.xlu0 %3185
        %3187 = vrot.lane.b32.xlu0 %v3178, 24
        %v3188 = vpop.permute.xlu0 %3187
        %v3191 = vadd.f32 %v3181, %v3186
        %v3192 = vadd.f32 %v3182, %v3188
        %3193 = vst.msk [vmem:[#allocation2] sm:$0xff] %vm568, %v3191
        %3194 = vst.msk [vmem:[#allocation2 + $0x8] sm:$0xff] %vm568, %v3192
        %3195 = vrot.lane.b32.xlu0 %v2803, 112
        %v3196 = vpop.permute.xlu0 %3195
        %3197 = vrot.lane.b32.xlu0 %v2808, 112
        %v3198 = vpop.permute.xlu0 %3197
        %v3199 = vsel %vm200, %v3196, 0
        %v3201 = vsel %vm200, %v3198, 0
        %3203 = vmatprep.subr.mxu0 0.0
        %3204 = vmatpush1.msra.mxu0 0.0
        %3205 = vmatprep.subr.mxu0 0.0
        %3206 = vmatpush1.msra.mxu0 0.0
        %3207 = vmatprep.subr.mxu0 0.0
        %3208 = vmatpush1.msra.mxu0 0.0
        %3209 = vmatprep.subr.mxu0 0.0
        %3210 = vmatpush1.msra.mxu0 0.0
        %3211 = vmatprep.subr.mxu0 0.0
        %3212 = vmatpush1.msra.mxu0 0.0
        %3213 = vmatprep.subr.mxu0 0.0
        %3214 = vmatpush1.msra.mxu0 0.0
        %3215 = vmatprep.subr.mxu0 0.0
        %3216 = vmatpush1.msra.mxu0 0.0
        %3217 = vmatprep.subr.mxu0 0.0
        %3218 = vmatpush1.msra.mxu0 0.0
        %3219 = vmatprep.subr.mxu0 0.0
        %3220 = vmatpush1.msra.mxu0 0.0
        %3221 = vmatprep.subr.mxu0 0.0
        %3222 = vmatpush1.msra.mxu0 0.0
        %3223 = vmatprep.subr.mxu0 0.0
        %3224 = vmatpush1.msra.mxu0 0.0
        %3225 = vmatprep.subr.mxu0 0.0
        %3226 = vmatpush1.msra.mxu0 0.0
        %3227 = vmatprep.subr.mxu0 0.0
        %3228 = vmatpush1.msra.mxu0 0.0
        %3229 = vmatprep.subr.mxu0 0.0
        %3230 = vmatpush1.msra.mxu0 0.0
        %3231 = vmatprep.subr.mxu0 0.0
        %3232 = vmatpush1.msra.mxu0 %v2821
        %3233 = vmatprep.subr.mxu0 0.0
        %3234 = vmatpush1.msra.mxu0 %v2812
        %3235 = vmatprep.subr.mxu0 0.0
        %3236 = vmatpush2.msra.mxu0 0.0
        %3237 = vmatprep.subr.mxu0 0.0
        %3238 = vmatpush2.msra.mxu0 0.0
        %3239 = vmatprep.subr.mxu0 0.0
        %3240 = vmatpush2.msra.mxu0 0.0
        %3241 = vmatprep.subr.mxu0 0.0
        %3242 = vmatpush2.msra.mxu0 0.0
        %3243 = vmatprep.subr.mxu0 0.0
        %3244 = vmatpush2.msra.mxu0 0.0
        %3245 = vmatprep.subr.mxu0 0.0
        %3246 = vmatpush2.msra.mxu0 0.0
        %3247 = vmatprep.subr.mxu0 0.0
        %3248 = vmatpush2.msra.mxu0 0.0
        %3249 = vmatprep.subr.mxu0 0.0
        %3250 = vmatpush2.msra.mxu0 0.0
        %3251 = vmatprep.subr.mxu0 0.0
        %3252 = vmatpush2.msra.mxu0 0.0
        %3253 = vmatprep.subr.mxu0 0.0
        %3254 = vmatpush2.msra.mxu0 0.0
        %3255 = vmatprep.subr.mxu0 0.0
        %3256 = vmatpush2.msra.mxu0 0.0
        %3257 = vmatprep.subr.mxu0 0.0
        %3258 = vmatpush2.msra.mxu0 0.0
        %3259 = vmatprep.subr.mxu0 0.0
        %3260 = vmatpush2.msra.mxu0 0.0
        %3261 = vmatprep.subr.mxu0 0.0
        %3262 = vmatpush2.msra.mxu0 0.0
        %3263 = vmatprep.subr.mxu0 0.0
        %3264 = vmatpush2.msra.mxu0 0.0
        %3265 = vmatprep.subr.mxu0 0.0
        %3266 = vmatpush2.msra.mxu0 0.0
        %3267 = vmatprep.mubr.f32.mxu0 0.0
        %3268 = vmatmul.mubr.f32.gmra.mxu0 %v3199
        %v3269 = vpop.f32.mrf.mxu0
        %v3270 = vadd.f32 0.0, %v3269
        %v3271 = vpop.f32.mrf.mxu0
        %3272 = vmatprep.mubr.f32.mxu0 0.0
        %3273 = vmatmul.mubr.f32.gmra.mxu0 %v3201
        %v3274 = vpop.f32.mrf.mxu0
        %v3275 = vadd.f32 0.0, %v3274
        %v3276 = vpop.f32.mrf.mxu0
        %3277 = vdwg.mxu0
        %v3278 = vld [vmem:[#allocation2] sm:$0xff]
        %v3279 = vld [vmem:[#allocation2 + $0x8] sm:$0xff]
        %3282 = vrot.lane.b32.xlu0 %v3270, 32
        %v3283 = vpop.permute.xlu0 %3282
        %3284 = vrot.lane.b32.xlu0 %v3275, 32
        %v3285 = vpop.permute.xlu0 %3284
        %v3288 = vadd.f32 %v3278, %v3283
        %v3289 = vadd.f32 %v3279, %v3285
        %3290 = vst.msk [vmem:[#allocation2] sm:$0xff] %vm662, %v3288
        %3291 = vst.msk [vmem:[#allocation2 + $0x8] sm:$0xff] %vm662, %v3289
        %3292 = vrot.lane.b32.xlu0 %v2803, 108
        %v3293 = vpop.permute.xlu0 %3292
        %3294 = vrot.lane.b32.xlu0 %v2808, 108
        %v3295 = vpop.permute.xlu0 %3294
        %v3296 = vsel %vm200, %v3293, 0
        %v3298 = vsel %vm200, %v3295, 0
        %3300 = vmatprep.subr.mxu0 0.0
        %3301 = vmatpush1.msra.mxu0 0.0
        %3302 = vmatprep.subr.mxu0 0.0
        %3303 = vmatpush1.msra.mxu0 0.0
        %3304 = vmatprep.subr.mxu0 0.0
        %3305 = vmatpush1.msra.mxu0 0.0
        %3306 = vmatprep.subr.mxu0 0.0
        %3307 = vmatpush1.msra.mxu0 0.0
        %3308 = vmatprep.subr.mxu0 0.0
        %3309 = vmatpush1.msra.mxu0 0.0
        %3310 = vmatprep.subr.mxu0 0.0
        %3311 = vmatpush1.msra.mxu0 0.0
        %3312 = vmatprep.subr.mxu0 0.0
        %3313 = vmatpush1.msra.mxu0 0.0
        %3314 = vmatprep.subr.mxu0 0.0
        %3315 = vmatpush1.msra.mxu0 0.0
        %3316 = vmatprep.subr.mxu0 0.0
        %3317 = vmatpush1.msra.mxu0 0.0
        %3318 = vmatprep.subr.mxu0 0.0
        %3319 = vmatpush1.msra.mxu0 0.0
        %3320 = vmatprep.subr.mxu0 0.0
        %3321 = vmatpush1.msra.mxu0 0.0
        %3322 = vmatprep.subr.mxu0 0.0
        %3323 = vmatpush1.msra.mxu0 0.0
        %3324 = vmatprep.subr.mxu0 0.0
        %3325 = vmatpush1.msra.mxu0 0.0
        %3326 = vmatprep.subr.mxu0 0.0
        %3327 = vmatpush1.msra.mxu0 0.0
        %3328 = vmatprep.subr.mxu0 0.0
        %3329 = vmatpush1.msra.mxu0 %v2821
        %3330 = vmatprep.subr.mxu0 0.0
        %3331 = vmatpush1.msra.mxu0 %v2812
        %3332 = vmatprep.subr.mxu0 0.0
        %3333 = vmatpush2.msra.mxu0 0.0
        %3334 = vmatprep.subr.mxu0 0.0
        %3335 = vmatpush2.msra.mxu0 0.0
        %3336 = vmatprep.subr.mxu0 0.0
        %3337 = vmatpush2.msra.mxu0 0.0
        %3338 = vmatprep.subr.mxu0 0.0
        %3339 = vmatpush2.msra.mxu0 0.0
        %3340 = vmatprep.subr.mxu0 0.0
        %3341 = vmatpush2.msra.mxu0 0.0
        %3342 = vmatprep.subr.mxu0 0.0
        %3343 = vmatpush2.msra.mxu0 0.0
        %3344 = vmatprep.subr.mxu0 0.0
        %3345 = vmatpush2.msra.mxu0 0.0
        %3346 = vmatprep.subr.mxu0 0.0
        %3347 = vmatpush2.msra.mxu0 0.0
        %3348 = vmatprep.subr.mxu0 0.0
        %3349 = vmatpush2.msra.mxu0 0.0
        %3350 = vmatprep.subr.mxu0 0.0
        %3351 = vmatpush2.msra.mxu0 0.0
        %3352 = vmatprep.subr.mxu0 0.0
        %3353 = vmatpush2.msra.mxu0 0.0
        %3354 = vmatprep.subr.mxu0 0.0
        %3355 = vmatpush2.msra.mxu0 0.0
        %3356 = vmatprep.subr.mxu0 0.0
        %3357 = vmatpush2.msra.mxu0 0.0
        %3358 = vmatprep.subr.mxu0 0.0
        %3359 = vmatpush2.msra.mxu0 0.0
        %3360 = vmatprep.subr.mxu0 0.0
        %3361 = vmatpush2.msra.mxu0 0.0
        %3362 = vmatprep.subr.mxu0 0.0
        %3363 = vmatpush2.msra.mxu0 0.0
        %3364 = vmatprep.mubr.f32.mxu0 0.0
        %3365 = vmatmul.mubr.f32.gmra.mxu0 %v3296
        %v3366 = vpop.f32.mrf.mxu0
        %v3367 = vadd.f32 0.0, %v3366
        %v3368 = vpop.f32.mrf.mxu0
        %3369 = vmatprep.mubr.f32.mxu0 0.0
        %3370 = vmatmul.mubr.f32.gmra.mxu0 %v3298
        %v3371 = vpop.f32.mrf.mxu0
        %v3372 = vadd.f32 0.0, %v3371
        %v3373 = vpop.f32.mrf.mxu0
        %3374 = vdwg.mxu0
        %v3375 = vld [vmem:[#allocation2] sm:$0xff]
        %v3376 = vld [vmem:[#allocation2 + $0x8] sm:$0xff]
        %3379 = vrot.lane.b32.xlu0 %v3367, 40
        %v3380 = vpop.permute.xlu0 %3379
        %3381 = vrot.lane.b32.xlu0 %v3372, 40
        %v3382 = vpop.permute.xlu0 %3381
        %v3385 = vadd.f32 %v3375, %v3380
        %v3386 = vadd.f32 %v3376, %v3382
        %3387 = vst.msk [vmem:[#allocation2] sm:$0xff] %vm756, %v3385
        %3388 = vst.msk [vmem:[#allocation2 + $0x8] sm:$0xff] %vm756, %v3386
        %v3389 = vld [vmem:[%s3] sm:$0x1]
        %v3390 = vld [vmem:[#allocation2] sm:$0xff]
        %v3391 = vld [vmem:[#allocation2 + $0x8] sm:$0xff]
        %v3394 = vadd.f32 %v3390, %v384
        %v3395 = vadd.f32 %v3391, %v386
        %vm3396 = vcmask 31744
        %3397 = vst.msk [vmem:[#allocation2] sm:$0xff] %vm3396, %v3394
        %3398 = vst.msk [vmem:[#allocation2 + $0x8] sm:$0xff] %vm3396, %v3395
        %v3399 = vld [vmem:[#allocation2] sm:$0xff]
        %v3400 = vld [vmem:[#allocation2 + $0x8] sm:$0xff]
        %v3402 = vlaneseq
        %v3403 = vshrl.u32 %v3402, 7
        %v3404 = vsub.s32 0, %v3403
        %v3405 = vrot.slane %v3389, %v3404
        %v3407 = vadd.f32 %v3399, %v3405
        %v3408 = vadd.f32 %v3400, %v3405
        %v3409 = vxor.u32 %v3407, 2147483648
        %v3410 = vxor.u32 %v3408, 2147483648
        %v3411 = vmul.f32 %v3409, 1.442695
        %v3412 = vpow.pop %v3411
        %v3413 = vmul.f32 %v3410, 1.442695
        %v3414 = vpow.pop %v3413
        %v3415 = vadd.f32 %v3412, 1.0
        %v3416 = vadd.f32 %v3414, 1.0
        %v3417 = vrcp.pop %v3415
        %v3418 = vmul.f32 1.0, %v3417
        %v3419 = vrcp.pop %v3416
        %v3420 = vmul.f32 1.0, %v3419
        %3423 = vrot.lane.b32.xlu0 %v3418, 124
        %v3424 = vpop.permute.xlu0 %3423
        %3425 = vrot.lane.b32.xlu0 %v3420, 124
        %v3426 = vpop.permute.xlu0 %3425
        %v3429 = vmul.f32 %v3407, %v3424
        %v3430 = vmul.f32 %v3408, %v3426
        %3431 = vst.msk [vmem:[%s190] sm:$0xff] %vm3396, %v3429
        %3432 = vst.msk [vmem:[%s190 + $0x8] sm:$0xff] %vm3396, %v3430
        %v3433 = vld [vmem:[#allocation2] sm:$0xff]
        %v3434 = vld [vmem:[#allocation2 + $0x8] sm:$0xff]
        %v3437 = vadd.f32 %v3433, %v290
        %v3438 = vadd.f32 %v3434, %v292
        %vm3439 = vcmask 97344
        %3440 = vst.msk [vmem:[#allocation2] sm:$0xff] %vm3439, %v3437
        %3441 = vst.msk [vmem:[#allocation2 + $0x8] sm:$0xff] %vm3439, %v3438
        %v3442 = vld [vmem:[#allocation2] sm:$0xff]
        %v3443 = vld [vmem:[#allocation2 + $0x8] sm:$0xff]
        %3444 = vrot.lane.b32.xlu0 %v3405, 8
        %v3445 = vpop.permute.xlu0 %3444
        %v3447 = vadd.f32 %v3442, %v3445
        %v3448 = vadd.f32 %v3443, %v3445
        %v3449 = vxor.u32 %v3447, 2147483648
        %v3450 = vxor.u32 %v3448, 2147483648
        %v3451 = vmul.f32 %v3449, 1.442695
        %v3452 = vpow.pop %v3451
        %v3453 = vmul.f32 %v3450, 1.442695
        %v3454 = vpow.pop %v3453
        %v3455 = vadd.f32 %v3452, 1.0
        %v3456 = vadd.f32 %v3454, 1.0
        %v3457 = vrcp.pop %v3455
        %v3458 = vmul.f32 1.0, %v3457
        %v3459 = vrcp.pop %v3456
        %v3460 = vmul.f32 1.0, %v3459
        %3463 = vrot.lane.b32.xlu0 %v3458, 124
        %v3464 = vpop.permute.xlu0 %3463
        %3465 = vrot.lane.b32.xlu0 %v3460, 124
        %v3466 = vpop.permute.xlu0 %3465
        %v3469 = vmul.f32 %v3447, %v3464
        %v3470 = vmul.f32 %v3448, %v3466
        %3473 = vrot.lane.b32.xlu0 %v3469, 124
        %v3474 = vpop.permute.xlu0 %3473
        %3475 = vrot.lane.b32.xlu0 %v3470, 124
        %v3476 = vpop.permute.xlu0 %3475
        %vm3479 = vcmask 64544
        %3480 = vst.msk [vmem:[%s190] sm:$0xff] %vm3479, %v3474
        %3481 = vst.msk [vmem:[%s190 + $0x8] sm:$0xff] %vm3479, %v3476
        %v3482 = vld [vmem:[#allocation2] sm:$0xff]
        %v3483 = vld [vmem:[#allocation2 + $0x8] sm:$0xff]
        %v3484 = vadd.f32 %v3482, %v196
        %v3485 = vadd.f32 %v3483, %v197
        %vm3486 = vcmask 162944
        %3487 = vst.msk [vmem:[#allocation2] sm:$0xff] %vm3486, %v3484
        %3488 = vst.msk [vmem:[#allocation2 + $0x8] sm:$0xff] %vm3486, %v3485
        %v3489 = vld [vmem:[#allocation2] sm:$0xff]
        %v3490 = vld [vmem:[#allocation2 + $0x8] sm:$0xff]
        %3491 = vrot.lane.b32.xlu0 %v3405, 16
        %v3492 = vpop.permute.xlu0 %3491
        %v3494 = vadd.f32 %v3489, %v3492
        %v3495 = vadd.f32 %v3490, %v3492
        %v3496 = vxor.u32 %v3494, 2147483648
        %v3497 = vxor.u32 %v3495, 2147483648
        %v3498 = vmul.f32 %v3496, 1.442695
        %v3499 = vpow.pop %v3498
        %v3500 = vmul.f32 %v3497, 1.442695
        %v3501 = vpow.pop %v3500
        %v3502 = vadd.f32 %v3499, 1.0
        %v3503 = vadd.f32 %v3501, 1.0
        %v3504 = vrcp.pop %v3502
        %v3505 = vmul.f32 1.0, %v3504
        %v3506 = vrcp.pop %v3503
        %v3507 = vmul.f32 1.0, %v3506
        %3510 = vrot.lane.b32.xlu0 %v3505, 124
        %v3511 = vpop.permute.xlu0 %3510
        %3512 = vrot.lane.b32.xlu0 %v3507, 124
        %v3513 = vpop.permute.xlu0 %3512
        %v3516 = vmul.f32 %v3494, %v3511
        %v3517 = vmul.f32 %v3495, %v3513
        %3520 = vrot.lane.b32.xlu0 %v3516, 120
        %v3521 = vpop.permute.xlu0 %3520
        %3522 = vrot.lane.b32.xlu0 %v3517, 120
        %v3523 = vpop.permute.xlu0 %3522
        %3526 = vst.msk [vmem:[%s190] sm:$0xff] %vm3439, %v3521
        %3527 = vst.msk [vmem:[%s190 + $0x8] sm:$0xff] %vm3439, %v3523
        %v3528 = vld [vmem:[#allocation2] sm:$0xff]
        %v3529 = vld [vmem:[#allocation2 + $0x8] sm:$0xff]
        %3530 = vrot.lane.b32.xlu0 %v196, 4
        %v3531 = vpop.permute.xlu0 %3530
        %3532 = vrot.lane.b32.xlu0 %v197, 4
        %v3533 = vpop.permute.xlu0 %3532
        %v3536 = vadd.f32 %v3528, %v3531
        %v3537 = vadd.f32 %v3529, %v3533
        %vm3538 = vcmask 228544
        %3539 = vst.msk [vmem:[#allocation2] sm:$0xff] %vm3538, %v3536
        %3540 = vst.msk [vmem:[#allocation2 + $0x8] sm:$0xff] %vm3538, %v3537
        %v3541 = vld [vmem:[#allocation2] sm:$0xff]
        %v3542 = vld [vmem:[#allocation2 + $0x8] sm:$0xff]
        %3543 = vrot.lane.b32.xlu0 %v3405, 24
        %v3544 = vpop.permute.xlu0 %3543
        %v3546 = vadd.f32 %v3541, %v3544
        %v3547 = vadd.f32 %v3542, %v3544
        %v3548 = vxor.u32 %v3546, 2147483648
        %v3549 = vxor.u32 %v3547, 2147483648
        %v3550 = vmul.f32 %v3548, 1.442695
        %v3551 = vpow.pop %v3550
        %v3552 = vmul.f32 %v3549, 1.442695
        %v3553 = vpow.pop %v3552
        %v3554 = vadd.f32 %v3551, 1.0
        %v3555 = vadd.f32 %v3553, 1.0
        %v3556 = vrcp.pop %v3554
        %v3557 = vmul.f32 1.0, %v3556
        %v3558 = vrcp.pop %v3555
        %v3559 = vmul.f32 1.0, %v3558
        %3562 = vrot.lane.b32.xlu0 %v3557, 124
        %v3563 = vpop.permute.xlu0 %3562
        %3564 = vrot.lane.b32.xlu0 %v3559, 124
        %v3565 = vpop.permute.xlu0 %3564
        %v3568 = vmul.f32 %v3546, %v3563
        %v3569 = vmul.f32 %v3547, %v3565
        %3572 = vrot.lane.b32.xlu0 %v3568, 116
        %v3573 = vpop.permute.xlu0 %3572
        %3574 = vrot.lane.b32.xlu0 %v3569, 116
        %v3575 = vpop.permute.xlu0 %3574
        %vm3578 = vcmask 130144
        %3579 = vst.msk [vmem:[%s190] sm:$0xff] %vm3578, %v3573
        %3580 = vst.msk [vmem:[%s190 + $0x8] sm:$0xff] %vm3578, %v3575
        %v3581 = vld [vmem:[#allocation2] sm:$0xff]
        %v3582 = vld [vmem:[#allocation2 + $0x8] sm:$0xff]
        %3583 = vrot.lane.b32.xlu0 %v196, 8
        %v3584 = vpop.permute.xlu0 %3583
        %3585 = vrot.lane.b32.xlu0 %v197, 8
        %v3586 = vpop.permute.xlu0 %3585
        %v3589 = vadd.f32 %v3581, %v3584
        %v3590 = vadd.f32 %v3582, %v3586
        %vm3591 = vcmask 294144
        %3592 = vst.msk [vmem:[#allocation2] sm:$0xff] %vm3591, %v3589
        %3593 = vst.msk [vmem:[#allocation2 + $0x8] sm:$0xff] %vm3591, %v3590
        %v3594 = vld [vmem:[#allocation2] sm:$0xff]
        %v3595 = vld [vmem:[#allocation2 + $0x8] sm:$0xff]
        %3596 = vrot.lane.b32.xlu0 %v3405, 32
        %v3597 = vpop.permute.xlu0 %3596
        %v3599 = vadd.f32 %v3594, %v3597
        %v3600 = vadd.f32 %v3595, %v3597
        %v3601 = vxor.u32 %v3599, 2147483648
        %v3602 = vxor.u32 %v3600, 2147483648
        %v3603 = vmul.f32 %v3601, 1.442695
        %v3604 = vpow.pop %v3603
        %v3605 = vmul.f32 %v3602, 1.442695
        %v3606 = vpow.pop %v3605
        %v3607 = vadd.f32 %v3604, 1.0
        %v3608 = vadd.f32 %v3606, 1.0
        %v3609 = vrcp.pop %v3607
        %v3610 = vmul.f32 1.0, %v3609
        %v3611 = vrcp.pop %v3608
        %v3612 = vmul.f32 1.0, %v3611
        %3615 = vrot.lane.b32.xlu0 %v3610, 124
        %v3616 = vpop.permute.xlu0 %3615
        %3617 = vrot.lane.b32.xlu0 %v3612, 124
        %v3618 = vpop.permute.xlu0 %3617
        %v3621 = vmul.f32 %v3599, %v3616
        %v3622 = vmul.f32 %v3600, %v3618
        %3625 = vrot.lane.b32.xlu0 %v3621, 112
        %v3626 = vpop.permute.xlu0 %3625
        %3627 = vrot.lane.b32.xlu0 %v3622, 112
        %v3628 = vpop.permute.xlu0 %3627
        %3631 = vst.msk [vmem:[%s190] sm:$0xff] %vm3486, %v3626
        %3632 = vst.msk [vmem:[%s190 + $0x8] sm:$0xff] %vm3486, %v3628
        %v3633 = vld [vmem:[#allocation2] sm:$0xff]
        %v3634 = vld [vmem:[#allocation2 + $0x8] sm:$0xff]
        %3635 = vrot.lane.b32.xlu0 %v196, 12
        %v3636 = vpop.permute.xlu0 %3635
        %3637 = vrot.lane.b32.xlu0 %v197, 12
        %v3638 = vpop.permute.xlu0 %3637
        %v3641 = vadd.f32 %v3633, %v3636
        %v3642 = vadd.f32 %v3634, %v3638
        %vm3643 = vcmask 359744
        %3644 = vst.msk [vmem:[#allocation2] sm:$0xff] %vm3643, %v3641
        %3645 = vst.msk [vmem:[#allocation2 + $0x8] sm:$0xff] %vm3643, %v3642
        %v3646 = vld [vmem:[#allocation2] sm:$0xff]
        %v3647 = vld [vmem:[#allocation2 + $0x8] sm:$0xff]
        %3648 = vrot.lane.b32.xlu0 %v3405, 40
        %v3649 = vpop.permute.xlu0 %3648
        %v3651 = vadd.f32 %v3646, %v3649
        %v3652 = vadd.f32 %v3647, %v3649
        %v3653 = vxor.u32 %v3651, 2147483648
        %v3654 = vxor.u32 %v3652, 2147483648
        %v3655 = vmul.f32 %v3653, 1.442695
        %v3656 = vpow.pop %v3655
        %v3657 = vmul.f32 %v3654, 1.442695
        %v3658 = vpow.pop %v3657
        %v3659 = vadd.f32 %v3656, 1.0
        %v3660 = vadd.f32 %v3658, 1.0
        %v3661 = vrcp.pop %v3659
        %v3662 = vmul.f32 1.0, %v3661
        %v3663 = vrcp.pop %v3660
        %v3664 = vmul.f32 1.0, %v3663
        %3667 = vrot.lane.b32.xlu0 %v3662, 124
        %v3668 = vpop.permute.xlu0 %3667
        %3669 = vrot.lane.b32.xlu0 %v3664, 124
        %v3670 = vpop.permute.xlu0 %3669
        %v3673 = vmul.f32 %v3651, %v3668
        %v3674 = vmul.f32 %v3652, %v3670
        %3677 = vrot.lane.b32.xlu0 %v3673, 108
        %v3678 = vpop.permute.xlu0 %3677
        %3679 = vrot.lane.b32.xlu0 %v3674, 108
        %v3680 = vpop.permute.xlu0 %3679
        %vm3683 = vcmask 195744
        %3684 = vst.msk [vmem:[%s190] sm:$0xff] %vm3683, %v3678
        %3685 = vst.msk [vmem:[%s190 + $0x8] sm:$0xff] %vm3683, %v3680
        %s3686 = sand.u32 %s115, 1
        %s3687 = scalar_lea.sflag [#allocation4], %s3686
        %s3688 = sand.u32 %s115, 1
        %s3689 = smul.addr %s3688, 16
        %s3690 = scalar_lea.vmem [#allocation3], %s3689
        // Predicated region
        $region37: #{tpu_custom_call.1} parent=35 // pred_check
          %p3691 = pneg %p125
        $region38: #{tpu_custom_call.1} parent=35 // pred_check_branch
          %3693 = sbr.rel (%p3691) target = $region40
        $region39: #{tpu_custom_call.1} parent=35 // pred_region
          %s3695 = ssub.s32 256, 256
          %3696 = vsyncadd %s3687, %s3695
          %s3697 = smul.addr %s18, 2
          %s3698 = smul.addr %s3697, 128
          %s3699 = scalar_lea.hbm %s4, %s3698
          %s3700 = sshll.u32 %s3690, 4
          %s3701 = int_to_ptr.vmem [resolvable:$true] %s3700
          %3706 = dma.vmem_to_hbm [thread:$0]  %s3701, 256, %s3699, %s3687, 128, 128, 8
        $region40: #{tpu_custom_call.1} parent=35 // pred_fallthru
          _
      $region36: #{tpu_custom_call.1} parent=5 // pred_fallthru
        _
      %p3707 = scmp.le.s32.totalorder 2, %s13
      // Predicated region
      $region41: #{tpu_custom_call.1} parent=5 // pred_check
        %p3708 = pneg %p3707
      $region42: #{tpu_custom_call.1} parent=5 // pred_check_branch
        %3710 = sbr.rel (%p3708) target = $region44
      $region43: #{tpu_custom_call.1} parent=5 // pred_region
        %s3711 = ssub.s32 %s13, 2
        // Predicated region
        $region45: #{tpu_custom_call.1} parent=43 // pred_check
          %p3712 = pneg %p131
        $region46: #{tpu_custom_call.1} parent=43 // pred_check_branch
          %3714 = sbr.rel (%p3712) target = $region48
        $region47: #{tpu_custom_call.1} parent=43 // pred_region
          %s3715 = sand.u32 %s116, 1
          %s3716 = scalar_lea.sflag [#allocation4], %s3715
          %s3717 = sand.u32 %s116, 1
          %s3718 = smul.addr %s3717, 16
          %s3719 = scalar_lea.vmem [#allocation3], %s3718
          %3720 = dma.done %s3716, 256
        $region48: #{tpu_custom_call.1} parent=43 // pred_fallthru
          _
      $region44: #{tpu_custom_call.1} parent=5 // pred_fallthru
        _
    $region6: #{tpu_custom_call.1} parent=1 // loop_footer
      %s17 = sadd.s32 1, %s13
    $region7: #{tpu_custom_call.1} parent=1 // loop_footer_branch
      %12 = sbr.rel target = $region3
    $region8: #{tpu_custom_call.1} parent=1 // loop_exit
      _
    %3721 = vsyncpa [#allocation4], 1
    %s3722 = scalar_lea.sflag [#allocation4], 1
    %3723 = vsyncpa %s3722, 1

</llo_original>
